<compile_context>
chip_gen: v7x
topology: tpu7x:2x2x1
jax: 0.10.0
libtpu: 0.0.40
codegen_flags: <defaults>
</compile_context>

<pallas_src>
import functools

import jax
import jax.numpy as jnp
from jax import lax
from jax.experimental import pallas as pl
from jax.experimental.pallas import tpu as pltpu

_LANE = 128
_MIB = 1024 * 1024


def _round_up(x, m):
    return (x + m - 1) // m * m


def _vmem_limit(nbytes):
    # Raise the scoped-VMEM limit when the per-stage working set needs it
    # (v5e scoped default is only 16 MiB), but stay under v7x's 64 MiB physical.
    # TODO(synk): for n_pad beyond ~10-16K rows, switch K2/K3 to a K-tiled
    #             contraction over A's columns (accumulator + "arbitrary" axis)
    #             instead of loading full (tile, n_pad) row blocks.
    return int(min(64 * _MIB, max(32 * _MIB, int(nbytes * 1.5))))


# --------------------------------------------------------------------------
# K2: hidden_blk = relu(A_blk @ XW1)        (A streamed in (tile, n_pad) blocks,
#                                            XW1 resident; bf16 feed, f32 acc)
# --------------------------------------------------------------------------
def _hidden_kernel(a_ref, xw1_ref, h_ref):
    h_ref[...] = jnp.maximum(
        jnp.dot(a_ref[...], xw1_ref[...], preferred_element_type=jnp.float32),
        0.0,
    ).astype(h_ref.dtype)


# --------------------------------------------------------------------------
# K3: [mu | logvar]_blk = (A_blk @ hidden) @ [W2 | W3]
# One streamed A row-block, one 256-wide fused RHS; also emits a bf16 copy of
# mu for the decoder (halves K4's mu DMA).
# --------------------------------------------------------------------------
def _mulv_kernel(a_ref, hid_ref, w23_ref, mu_ref, lv_ref, mu_dec_ref):
    t = jnp.dot(a_ref[...], hid_ref[...], preferred_element_type=jnp.float32)
    ml = jnp.dot(
        t.astype(w23_ref.dtype), w23_ref[...], preferred_element_type=jnp.float32
    )
    l_pad = mu_ref.shape[-1]
    mu = ml[:, :l_pad]
    mu_ref[...] = mu
    lv_ref[...] = ml[:, l_pad:]
    mu_dec_ref[...] = mu.astype(mu_dec_ref.dtype)


# --------------------------------------------------------------------------
# K4: recon row-slab = sigmoid( mu_i . mu_all^T )
# mu_all (bf16) is fully resident (constant index_map -> fetched once), mu_i is
# streamed per row tile.  dot_general contracts last axes (no explicit
# transpose); sigmoid(x) = 0.5*(tanh(x/2)+1) -> one EUP op per element.
# --------------------------------------------------------------------------
def _decoder_kernel(zi_ref, zall_ref, recon_ref):
    logits = lax.dot_general(
        zi_ref[...],
        zall_ref[...],
        (((1,), (1,)), ((), ())),
        preferred_element_type=jnp.float32,
    )
    recon_ref[...] = (0.5 * (jnp.tanh(0.5 * logits) + 1.0)).astype(recon_ref.dtype)


@functools.partial(
    jax.jit, static_argnames=("compute_dtype", "tile", "recon_dtype")
)
def gae_forward(
    adj,
    features,
    w1,
    w2,
    w3,
    *,
    compute_dtype=jnp.bfloat16,
    tile=256,
    recon_dtype=jnp.float32,
):
    n = features.shape[0]
    hdim = w1.shape[1]
    ldim = w2.shape[1]

    cdt = jnp.dtype(compute_dtype)
    rdt = jnp.dtype(recon_dtype)
    dtb = cdt.itemsize

    n_pad = _round_up(n, tile)
    h_pad = _round_up(hdim, _LANE)
    l_pad = _round_up(ldim, _LANE)
    n_blocks = n_pad // tile

    # XW1 = X @ W1 : tiny (K = input_feat_dim), handled by XLA in the wrapper.
    xw1 = jnp.dot(
        features.astype(jnp.float32), w1.astype(jnp.float32), precision="highest"
    )
    xw1_p = jnp.zeros((n_pad, h_pad), cdt).at[:n, :hdim].set(xw1.astype(cdt))

    # A: zero-pad only when needed (skips an extra N^2 pass when tile-aligned).
    if n == n_pad:
        a_p = adj.astype(cdt)
    else:
        a_p = jnp.zeros((n_pad, n_pad), cdt).at[:n, :n].set(adj.astype(cdt))

    # Fused [W2 | W3] RHS, zero-padded (exact).
    w23_p = jnp.zeros((h_pad, 2 * l_pad), cdt)
    w23_p = w23_p.at[:hdim, :ldim].set(w2.astype(cdt))
    w23_p = w23_p.at[:hdim, l_pad : l_pad + ldim].set(w3.astype(cdt))

    # ---- K2: hidden = relu(A @ XW1) ----------------------------------------
    k2_bytes = (
        2 * tile * n_pad * dtb       # A row-block, double-buffered
        + 2 * n_pad * h_pad * dtb    # resident XW1
        + 2 * tile * h_pad * dtb     # hidden output block
    )
    hidden = pl.pallas_call(
        _hidden_kernel,
        out_shape=jax.ShapeDtypeStruct((n_pad, h_pad), cdt),
        grid_spec=pltpu.PrefetchScalarGridSpec(
            num_scalar_prefetch=0,
            grid=(n_blocks,),
            in_specs=[
                pl.BlockSpec((tile, n_pad), lambda i: (i, 0)),    # A row-block
                pl.BlockSpec((n_pad, h_pad), lambda i: (0, 0)),   # XW1 resident
            ],
            out_specs=pl.BlockSpec((tile, h_pad), lambda i: (i, 0)),
        ),
        compiler_params=pltpu.CompilerParams(
            dimension_semantics=("parallel",),
            vmem_limit_bytes=_vmem_limit(k2_bytes),
        ),
    )(a_p, xw1_p)

    # ---- K3: [mu | logvar] = (A @ hidden) @ [W2 | W3] -----------------------
    k3_bytes = (
        2 * tile * n_pad * dtb
        + 2 * n_pad * h_pad * dtb
        + 2 * h_pad * 2 * l_pad * dtb
        + 2 * tile * l_pad * (4 + 4 + 2)
    )
    mu_p, logvar_p, mu_dec = pl.pallas_call(
        _mulv_kernel,
        out_shape=(
            jax.ShapeDtypeStruct((n_pad, l_pad), jnp.float32),
            jax.ShapeDtypeStruct((n_pad, l_pad), jnp.float32),
            jax.ShapeDtypeStruct((n_pad, l_pad), jnp.bfloat16),
        ),
        grid_spec=pltpu.PrefetchScalarGridSpec(
            num_scalar_prefetch=0,
            grid=(n_blocks,),
            in_specs=[
                pl.BlockSpec((tile, n_pad), lambda i: (i, 0)),        # A row-block
                pl.BlockSpec((n_pad, h_pad), lambda i: (0, 0)),       # hidden resident
                pl.BlockSpec((h_pad, 2 * l_pad), lambda i: (0, 0)),   # [W2|W3] resident
            ],
            out_specs=(
                pl.BlockSpec((tile, l_pad), lambda i: (i, 0)),
                pl.BlockSpec((tile, l_pad), lambda i: (i, 0)),
                pl.BlockSpec((tile, l_pad), lambda i: (i, 0)),
            ),
        ),
        compiler_params=pltpu.CompilerParams(
            dimension_semantics=("parallel",),
            vmem_limit_bytes=_vmem_limit(k3_bytes),
        ),
    )(a_p, hidden, w23_p)

    # ---- K4: recon = sigmoid(mu @ mu.T), mu resident in bf16 ----------------
    k4_bytes = (
        2 * tile * l_pad * 2
        + 2 * n_pad * l_pad * 2
        + 2 * tile * n_pad * rdt.itemsize
    )
    recon_p = pl.pallas_call(
        _decoder_kernel,
        out_shape=jax.ShapeDtypeStruct((n_pad, n_pad), rdt),
        grid_spec=pltpu.PrefetchScalarGridSpec(
            num_scalar_prefetch=0,
            grid=(n_blocks,),
            in_specs=[
                pl.BlockSpec((tile, l_pad), lambda i: (i, 0)),    # mu_i row tile
                pl.BlockSpec((n_pad, l_pad), lambda i: (0, 0)),   # mu resident (fetched once)
            ],
            out_specs=pl.BlockSpec((tile, n_pad), lambda i: (i, 0)),
        ),
        compiler_params=pltpu.CompilerParams(
            dimension_semantics=("parallel",),
            vmem_limit_bytes=_vmem_limit(k4_bytes),
        ),
    )(mu_dec, mu_dec)

    recon = recon_p if n == n_pad else recon_p[:n, :n]
    mu = mu_p[:n, :ldim]
    logvar = logvar_p[:n, :ldim]
    return recon, mu, logvar


def _reference(adj, features, w1, w2, w3):
    mm = functools.partial(jnp.matmul, precision="highest")
    hidden = jnp.maximum(mm(adj, mm(features, w1)), 0.0)
    mu = mm(adj, mm(hidden, w2))
    logvar = mm(adj, mm(hidden, w3))
    recon = jax.nn.sigmoid(mm(mu, mu.T))
    return recon, mu, logvar


if __name__ == "__main__":
    # N=600 nodes: exercises padding (600 -> 768) and a 3-block grid (both
    # TensorCores get work on v7x).  input_feat_dim=8, hidden=32, latent=16.
    N, F_IN, HID, LAT = 600, 8, 32, 16

    key = jax.random.PRNGKey(0)
    k_adj, k_x, k_w1, k_w2, k_w3 = jax.random.split(key, 5)

    # Symmetric normalized-ish adjacency (dense), deterministic.
    raw = (jax.random.uniform(k_adj, (N, N)) > 0.7).astype(jnp.float32)
    adj = raw + raw.T + jnp.eye(N, dtype=jnp.float32)
    adj = jnp.clip(adj, 0.0, 1.0)
    deg = jnp.sum(adj, axis=1, keepdims=True)
    adj = adj / jnp.sqrt(deg) / jnp.sqrt(deg.T)

    features = jax.random.normal(k_x, (N, F_IN), dtype=jnp.float32)

    # Deterministic (xavier-ish) weight init, matching GCN weight shapes.
    w1 = jax.random.normal(k_w1, (F_IN, HID), dtype=jnp.float32) / jnp.sqrt(F_IN)
    w2 = jax.random.normal(k_w2, (HID, LAT), dtype=jnp.float32) / jnp.sqrt(HID)
    w3 = jax.random.normal(k_w3, (HID, LAT), dtype=jnp.float32) / jnp.sqrt(HID)

    r_recon, r_mu, r_logvar = _reference(adj, features, w1, w2, w3)

    # f32 A-streaming path (tight mu/logvar check; recon is bf16-fed by design).
    recon, mu, logvar = jax.block_until_ready(
        gae_forward(adj, features, w1, w2, w3, compute_dtype=jnp.float32)
    )
    assert recon.shape == (N, N) and mu.shape == (N, LAT) and logvar.shape == (N, LAT)
    assert jnp.allclose(mu, r_mu, atol=1e-4, rtol=1e-4)
    assert jnp.allclose(logvar, r_logvar, atol=1e-4, rtol=1e-4)
    assert jnp.allclose(recon, r_recon, atol=1e-2, rtol=1e-2)

    # Default bf16-fed MXU path with f32 accumulation (loose check).
    recon_b, mu_b, logvar_b = jax.block_until_ready(
        gae_forward(adj, features, w1, w2, w3)
    )
    assert jnp.allclose(recon_b, r_recon, atol=6e-2, rtol=6e-2)
    assert jnp.allclose(mu_b, r_mu, atol=6e-2, rtol=6e-2)
    assert jnp.allclose(logvar_b, r_logvar, atol=6e-2, rtol=6e-2)

    print("KERNEL_OK")
</pallas_src>

<mosaic_0001>
module attributes {stable_mosaic.version = 11 : i64} {
  func.func @_hidden_kernel(%arg0: i32, %arg1: memref<256x768xf32, #tpu.memory_space<vmem>>, %arg2: memref<768x128xf32, #tpu.memory_space<vmem>>, %arg3: memref<256x128xf32, #tpu.memory_space<vmem>>) attributes {dimension_semantics = [#tpu.dimension_semantics<parallel>], iteration_bounds = array<i64: 3>, scalar_prefetch = 0 : i64, scratch_operands = 0 : i64, tpu.core_type = #tpu.core_type<tc>, window_params = [{transform_indices = @transform_0, window_bounds = array<i64: 256, 768>}, {pipeline_mode = #tpu.pipeline_mode<synchronous>, transform_indices = @transform_1, window_bounds = array<i64: 768, 128>}, {transform_indices = @transform_2, window_bounds = array<i64: 256, 128>}]} {
    %c0 = arith.constant 0 : index
    %c0_0 = arith.constant 0 : index
    %0 = vector.load %arg1[%c0, %c0_0] : memref<256x768xf32, #tpu.memory_space<vmem>>, vector<256x768xf32>
    %c0_1 = arith.constant 0 : index
    %c0_2 = arith.constant 0 : index
    %1 = vector.load %arg2[%c0_1, %c0_2] : memref<768x128xf32, #tpu.memory_space<vmem>>, vector<768x128xf32>
    %cst = arith.constant dense<0.000000e+00> : vector<256x128xf32>
    %2 = tpu.matmul %0, %1, %cst {dimension_numbers = #tpu.dot_dimension_numbers<[1], [0], [0], [1], [0, 0, 1, 1], [], []>} : vector<256x768xf32>, vector<768x128xf32>, vector<256x128xf32> -> vector<256x128xf32>
    %cst_3 = arith.constant 0.000000e+00 : f32
    %3 = vector.broadcast %cst_3 : f32 to vector<256x128xf32>
    %4 = arith.maximumf %2, %3 : vector<256x128xf32>
    %c0_4 = arith.constant 0 : index
    %c0_5 = arith.constant 0 : index
    %5 = vector.load %arg3[%c0_4, %c0_5] : memref<256x128xf32, #tpu.memory_space<vmem>>, vector<256x128xf32>
    tpu.vector_store %arg3[%c0_4, %c0_5], %4 {strides = array<i32>} : memref<256x128xf32, #tpu.memory_space<vmem>>, vector<256x128xf32>,
    return
  }
  func.func @transform_0(%arg0: i32) -> (i32, i32) {
    %c0_i32 = arith.constant 0 : i32
    %c0_i32_0 = arith.constant 0 : i32
    return %arg0, %c0_i32 : i32, i32
  }
  func.func @transform_1(%arg0: i32) -> (i32, i32) {
    %c0_i32 = arith.constant 0 : i32
    %c0_i32_0 = arith.constant 0 : i32
    %c0_i32_1 = arith.constant 0 : i32
    return %c0_i32, %c0_i32_0 : i32, i32
  }
  func.func @transform_2(%arg0: i32) -> (i32, i32) {
    %c0_i32 = arith.constant 0 : i32
    %c0_i32_0 = arith.constant 0 : i32
    return %arg0, %c0_i32 : i32, i32
  }
}

module attributes {stable_mosaic.version = 11 : i64} {
  func.func @_mulv_kernel(%arg0: i32, %arg1: memref<256x768xf32, #tpu.memory_space<vmem>>, %arg2: memref<768x128xf32, #tpu.memory_space<vmem>>, %arg3: memref<128x256xf32, #tpu.memory_space<vmem>>, %arg4: memref<256x128xf32, #tpu.memory_space<vmem>>, %arg5: memref<256x128xf32, #tpu.memory_space<vmem>>, %arg6: memref<256x128xbf16, #tpu.memory_space<vmem>>) attributes {dimension_semantics = [#tpu.dimension_semantics<parallel>], iteration_bounds = array<i64: 3>, scalar_prefetch = 0 : i64, scratch_operands = 0 : i64, tpu.core_type = #tpu.core_type<tc>, window_params = [{transform_indices = @transform_0, window_bounds = array<i64: 256, 768>}, {pipeline_mode = #tpu.pipeline_mode<synchronous>, transform_indices = @transform_1, window_bounds = array<i64: 768, 128>}, {pipeline_mode = #tpu.pipeline_mode<synchronous>, transform_indices = @transform_2, window_bounds = array<i64: 128, 256>}, {transform_indices = @transform_3, window_bounds = array<i64: 256, 128>}, {transform_indices = @transform_4, window_bounds = array<i64: 256, 128>}, {transform_indices = @transform_5, window_bounds = array<i64: 256, 128>}]} {
    %c0 = arith.constant 0 : index
    %c0_0 = arith.constant 0 : index
    %0 = vector.load %arg1[%c0, %c0_0] : memref<256x768xf32, #tpu.memory_space<vmem>>, vector<256x768xf32>
    %c0_1 = arith.constant 0 : index
    %c0_2 = arith.constant 0 : index
    %1 = vector.load %arg2[%c0_1, %c0_2] : memref<768x128xf32, #tpu.memory_space<vmem>>, vector<768x128xf32>
    %cst = arith.constant dense<0.000000e+00> : vector<256x128xf32>
    %2 = tpu.matmul %0, %1, %cst {dimension_numbers = #tpu.dot_dimension_numbers<[1], [0], [0], [1], [0, 0, 1, 1], [], []>} : vector<256x768xf32>, vector<768x128xf32>, vector<256x128xf32> -> vector<256x128xf32>
    %c0_3 = arith.constant 0 : index
    %c0_4 = arith.constant 0 : index
    %3 = vector.load %arg3[%c0_3, %c0_4] : memref<128x256xf32, #tpu.memory_space<vmem>>, vector<128x256xf32>
    %cst_5 = arith.constant dense<0.000000e+00> : vector<256x256xf32>
    %4 = tpu.matmul %2, %3, %cst_5 {dimension_numbers = #tpu.dot_dimension_numbers<[1], [0], [0], [1], [0, 0, 1, 1], [], []>} : vector<256x128xf32>, vector<128x256xf32>, vector<256x256xf32> -> vector<256x256xf32>
    %5 = vector.extract_strided_slice %4 {offsets = [0, 0], sizes = [256, 128], strides = [1, 1]} : vector<256x256xf32> to vector<256x128xf32>
    %c0_6 = arith.constant 0 : index
    %c0_7 = arith.constant 0 : index
    %6 = vector.load %arg4[%c0_6, %c0_7] : memref<256x128xf32, #tpu.memory_space<vmem>>, vector<256x128xf32>
    tpu.vector_store %arg4[%c0_6, %c0_7], %5 {strides = array<i32>} : memref<256x128xf32, #tpu.memory_space<vmem>>, vector<256x128xf32>,
    %7 = vector.extract_strided_slice %4 {offsets = [0, 128], sizes = [256, 128], strides = [1, 1]} : vector<256x256xf32> to vector<256x128xf32>
    %c0_8 = arith.constant 0 : index
    %c0_9 = arith.constant 0 : index
    %8 = vector.load %arg5[%c0_8, %c0_9] : memref<256x128xf32, #tpu.memory_space<vmem>>, vector<256x128xf32>
    tpu.vector_store %arg5[%c0_8, %c0_9], %7 {strides = array<i32>} : memref<256x128xf32, #tpu.memory_space<vmem>>, vector<256x128xf32>,
    %9 = arith.truncf %5 : vector<256x128xf32> to vector<256x128xbf16>
    %c0_10 = arith.constant 0 : index
    %c0_11 = arith.constant 0 : index
    %10 = vector.load %arg6[%c0_10, %c0_11] : memref<256x128xbf16, #tpu.memory_space<vmem>>, vector<256x128xbf16>
    tpu.vector_store %arg6[%c0_10, %c0_11], %9 {strides = array<i32>} : memref<256x128xbf16, #tpu.memory_space<vmem>>, vector<256x128xbf16>,
    return
  }
  func.func @transform_0(%arg0: i32) -> (i32, i32) {
    %c0_i32 = arith.constant 0 : i32
    %c0_i32_0 = arith.constant 0 : i32
    return %arg0, %c0_i32 : i32, i32
  }
  func.func @transform_1(%arg0: i32) -> (i32, i32) {
    %c0_i32 = arith.constant 0 : i32
    %c0_i32_0 = arith.constant 0 : i32
    %c0_i32_1 = arith.constant 0 : i32
    return %c0_i32, %c0_i32_0 : i32, i32
  }
  func.func @transform_2(%arg0: i32) -> (i32, i32) {
    %c0_i32 = arith.constant 0 : i32
    %c0_i32_0 = arith.constant 0 : i32
    %c0_i32_1 = arith.constant 0 : i32
    return %c0_i32, %c0_i32_0 : i32, i32
  }
  func.func @transform_3(%arg0: i32) -> (i32, i32) {
    %c0_i32 = arith.constant 0 : i32
    %c0_i32_0 = arith.constant 0 : i32
    return %arg0, %c0_i32 : i32, i32
  }
  func.func @transform_4(%arg0: i32) -> (i32, i32) {
    %c0_i32 = arith.constant 0 : i32
    %c0_i32_0 = arith.constant 0 : i32
    return %arg0, %c0_i32 : i32, i32
  }
  func.func @transform_5(%arg0: i32) -> (i32, i32) {
    %c0_i32 = arith.constant 0 : i32
    %c0_i32_0 = arith.constant 0 : i32
    return %arg0, %c0_i32 : i32, i32
  }
}

module attributes {stable_mosaic.version = 11 : i64} {
  func.func @_decoder_kernel(%arg0: i32, %arg1: memref<256x128xbf16, #tpu.memory_space<vmem>>, %arg2: memref<768x128xbf16, #tpu.memory_space<vmem>>, %arg3: memref<256x768xf32, #tpu.memory_space<vmem>>) attributes {dimension_semantics = [#tpu.dimension_semantics<parallel>], iteration_bounds = array<i64: 3>, scalar_prefetch = 0 : i64, scratch_operands = 0 : i64, tpu.core_type = #tpu.core_type<tc>, window_params = [{transform_indices = @transform_0, window_bounds = array<i64: 256, 128>}, {pipeline_mode = #tpu.pipeline_mode<synchronous>, transform_indices = @transform_1, window_bounds = array<i64: 768, 128>}, {transform_indices = @transform_2, window_bounds = array<i64: 256, 768>}]} {
    %c0 = arith.constant 0 : index
    %c0_0 = arith.constant 0 : index
    %0 = vector.load %arg1[%c0, %c0_0] : memref<256x128xbf16, #tpu.memory_space<vmem>>, vector<256x128xbf16>
    %c0_1 = arith.constant 0 : index
    %c0_2 = arith.constant 0 : index
    %1 = vector.load %arg2[%c0_1, %c0_2] : memref<768x128xbf16, #tpu.memory_space<vmem>>, vector<768x128xbf16>
    %cst = arith.constant dense<0.000000e+00> : vector<256x768xf32>
    %2 = tpu.matmul %0, %1, %cst {dimension_numbers = #tpu.dot_dimension_numbers<[1], [1], [0], [0], [0, 0, 1, 0], [], []>} : vector<256x128xbf16>, vector<768x128xbf16>, vector<256x768xf32> -> vector<256x768xf32>
    %cst_3 = arith.constant 5.000000e-01 : f32
    %3 = vector.broadcast %cst_3 : f32 to vector<256x768xf32>
    %4 = arith.mulf %3, %2 : vector<256x768xf32>
    %5 = math.tanh %4 : vector<256x768xf32>
    %cst_4 = arith.constant 1.000000e+00 : f32
    %6 = vector.broadcast %cst_4 : f32 to vector<256x768xf32>
    %7 = arith.addf %5, %6 : vector<256x768xf32>
    %cst_5 = arith.constant 5.000000e-01 : f32
    %8 = vector.broadcast %cst_5 : f32 to vector<256x768xf32>
    %9 = arith.mulf %8, %7 : vector<256x768xf32>
    %c0_6 = arith.constant 0 : index
    %c0_7 = arith.constant 0 : index
    %10 = vector.load %arg3[%c0_6, %c0_7] : memref<256x768xf32, #tpu.memory_space<vmem>>, vector<256x768xf32>
    tpu.vector_store %arg3[%c0_6, %c0_7], %9 {strides = array<i32>} : memref<256x768xf32, #tpu.memory_space<vmem>>, vector<256x768xf32>,
    return
  }
  func.func @transform_0(%arg0: i32) -> (i32, i32) {
    %c0_i32 = arith.constant 0 : i32
    %c0_i32_0 = arith.constant 0 : i32
    return %arg0, %c0_i32 : i32, i32
  }
  func.func @transform_1(%arg0: i32) -> (i32, i32) {
    %c0_i32 = arith.constant 0 : i32
    %c0_i32_0 = arith.constant 0 : i32
    %c0_i32_1 = arith.constant 0 : i32
    return %c0_i32, %c0_i32_0 : i32, i32
  }
  func.func @transform_2(%arg0: i32) -> (i32, i32) {
    %c0_i32 = arith.constant 0 : i32
    %c0_i32_0 = arith.constant 0 : i32
    return %arg0, %c0_i32 : i32, i32
  }
}

</mosaic_0001>

<llo_original>
// kernel: gae_forward.3
$region0: #{gae_forward.3}
  #allocation0 [shape = 'u32[]', space=smem, size = 0x4, offset = 0x4, fixed_abs, tag = 'smem constant byte address 0x4 - core index']
  #allocation1 [shape = 'u32[144,128]{1,0:T(1,128)}', space=vmem, size = 0x12000, scoped, tag = 'internal scratch']
  %s0 = inlined_call_operand.vmem [shape: f32[768,768], index: 0, kind: input, shape index: {}]
  %s1 = inlined_call_operand.vmem [shape: f32[768,128], index: 1, kind: input, shape index: {}]
  %s2 = inlined_call_operand.vmem [shape: f32[768,128], index: 2, kind: output, shape index: {}]
  %s3 = sld [smem:[#allocation0]]
  $region41: #{gae_forward.3} parent=0
    _
  %s5 = ssub.s32 1, %s3
  %s6 = scalar_select 0, %s5, %s3
  loop: start=0, step=1, limit=5
  $region2: #{gae_forward.3} parent=0 // loop_pre_header
    _
  $region3: #{gae_forward.3} parent=0 // loop_header
    %s8 = sphi 0, %s12
    %p9 = scmp.ge.s32.totalorder %s8, 5
    %s18 = sphi 0, %s20
    %s21 = sphi 0, %s18
    %s22 = sphi 0, %s21
    %s38 = sphi 0, %s22
    %s42 = sphi 0, %s42
    %s44 = sphi 0, %s42
    %s45 = sphi 0, %s44
    %s59 = sphi 0, %s45
    %s65 = sphi 0, %s67
    %s68 = sphi 0, %s65
    %s69 = sphi 0, %s68
    %s85 = sphi 0, %s69
  $region4: #{gae_forward.3} parent=0 // loop_header_branch
    %11 = sbr.rel (%p9) target = $region8
  $region5: #{gae_forward.3} parent=0 // loop_body
    %s13 = ssub.s32 %s8, 1
    %s14 = ssub.s32 %s8, 2
    %s15 = sadd.s32 %s8, 1
    %s16 = ssub.s32 %s8, %s15
    %p17 = scmp.eq.s32.totalorder %s16, 0
    %s19 = sadd.s32 %s18, 1
    %s20 = scalar_select %p17, %s18, %s19
    %p23 = pneg %p17
    %p24 = scmp.eq.s32.totalorder %s8, 2
    %p25 = por %p23, %p24
    %p26 = scmp.ne.s32.totalorder %s18, %s21
    %p27 = scmp.eq.s32.totalorder %s8, 0
    %p28 = por %p26, %p27
    %p29 = scmp.ne.s32.totalorder %s18, %s21
    %p30 = scmp.eq.s32.totalorder %s13, 2
    %p31 = por %p29, %p30
    %p32 = scmp.ne.s32.totalorder %s21, %s22
    %p33 = scmp.eq.s32.totalorder %s13, 0
    %p34 = por %p32, %p33
    %p35 = scmp.ne.s32.totalorder %s21, %s22
    %p36 = scmp.eq.s32.totalorder %s14, 2
    %p37 = por %p35, %p36
    %p39 = scmp.ne.s32.totalorder %s22, %s38
    %p40 = scmp.eq.s32.totalorder %s14, 0
    %p41 = por %p39, %p40
    %s43 = sadd.s32 %s42, 1
    %p46 = scmp.eq.s32.totalorder %s8, 2
    %p47 = scmp.ne.s32.totalorder %s42, %s44
    %p48 = scmp.eq.s32.totalorder %s8, 0
    %p49 = por %p47, %p48
    %p50 = scmp.ne.s32.totalorder %s42, %s44
    %p51 = scmp.eq.s32.totalorder %s13, 2
    %p52 = por %p50, %p51
    %p53 = scmp.ne.s32.totalorder %s44, %s45
    %p54 = scmp.eq.s32.totalorder %s13, 0
    %p55 = por %p53, %p54
    %p56 = scmp.ne.s32.totalorder %s44, %s45
    %p57 = scmp.eq.s32.totalorder %s14, 2
    %p58 = por %p56, %p57
    %p60 = scmp.ne.s32.totalorder %s45, %s59
    %p61 = scmp.eq.s32.totalorder %s14, 0
    %p62 = por %p60, %p61
    %s63 = ssub.s32 %s8, %s15
    %p64 = scmp.eq.s32.totalorder %s63, 0
    %s66 = sadd.s32 %s65, 1
    %s67 = scalar_select %p64, %s65, %s66
    %p70 = pneg %p64
    %p71 = scmp.eq.s32.totalorder %s8, 2
    %p72 = por %p70, %p71
    %p73 = scmp.ne.s32.totalorder %s65, %s68
    %p74 = scmp.eq.s32.totalorder %s8, 0
    %p75 = por %p73, %p74
    %p76 = scmp.ne.s32.totalorder %s65, %s68
    %p77 = scmp.eq.s32.totalorder %s13, 2
    %p78 = por %p76, %p77
    %p79 = scmp.ne.s32.totalorder %s68, %s69
    %p80 = scmp.eq.s32.totalorder %s13, 0
    %p81 = por %p79, %p80
    %p82 = scmp.ne.s32.totalorder %s68, %s69
    %p83 = scmp.eq.s32.totalorder %s14, 2
    %p84 = por %p82, %p83
    %p86 = scmp.ne.s32.totalorder %s69, %s85
    %p87 = scmp.eq.s32.totalorder %s14, 0
    %p88 = por %p86, %p87
    %p89 = scmp.le.s32.totalorder 1, %s8
    %p90 = scmp.lt.s32.totalorder %s8, 4
    %p91 = pnand %p89, %p90
    %p92 = pneg %p91
    // Predicated region
    $region9: #{gae_forward.3} parent=5 // pred_check
      _
    $region10: #{gae_forward.3} parent=5 // pred_check_branch
      %94 = sbr.rel (%p91) target = $region12
    $region11: #{gae_forward.3} parent=5 // pred_region
      %s95 = ssub.s32 %s8, 1
      // Predicated region
      $region13: #{gae_forward.3} parent=11 // pred_check
        %p96 = pneg %p55
      $region14: #{gae_forward.3} parent=11 // pred_check_branch
        %98 = sbr.rel (%p96) target = $region16
      $region15: #{gae_forward.3} parent=11 // pred_region
        _
      $region16: #{gae_forward.3} parent=11 // pred_fallthru
        _
    $region12: #{gae_forward.3} parent=5 // pred_fallthru
      _
    %p99 = scmp.lt.s32.totalorder %s8, 3
    // Predicated region
    $region17: #{gae_forward.3} parent=5 // pred_check
      %p100 = pneg %p99
    $region18: #{gae_forward.3} parent=5 // pred_check_branch
      %102 = sbr.rel (%p100) target = $region20
    $region19: #{gae_forward.3} parent=5 // pred_region
      // Predicated region
      $region21: #{gae_forward.3} parent=19 // pred_check
        %p103 = pneg %p28
      $region22: #{gae_forward.3} parent=19 // pred_check_branch
        %105 = sbr.rel (%p103) target = $region24
      $region23: #{gae_forward.3} parent=19 // pred_region
        %s106 = smul.u32 32, %s8
        %p107 = scmp.lt.s32.totalorder %s106, 95
        %s108 = scalar_select %p107, %s106, 95
        %s109 = smul.addr %s108, 6
        %s110 = smul.addr %s109, 8
        %s111 = scalar_lea.vmem %s0, %s110
        %s112 = smul.u32 32, %s8
      $region24: #{gae_forward.3} parent=19 // pred_fallthru
        _
    $region20: #{gae_forward.3} parent=5 // pred_fallthru
      _
    %p113 = scmp.le.s32.totalorder 1, %s8
    %p114 = scmp.lt.s32.totalorder %s8, 4
    %p115 = pnand %p113, %p114
    %p116 = pneg %p115
    // Predicated region
    $region25: #{gae_forward.3} parent=5 // pred_check
      _
    $region26: #{gae_forward.3} parent=5 // pred_check_branch
      %118 = sbr.rel (%p115) target = $region28
    $region27: #{gae_forward.3} parent=5 // pred_region
      %s119 = ssub.s32 %s8, 1
      %s120 = smul.u32 32, %s13
      %p121 = scmp.lt.s32.totalorder %s120, 95
      %s122 = scalar_select %p121, %s120, 95
      %s123 = smul.addr %s122, 6
      %s124 = smul.addr %s123, 8
      %s125 = scalar_lea.vmem %s0, %s124
      %p126 = pneg %p34
      %p127 = pneg %p31
      %p128 = pneg %p55
      %p129 = pneg %p52
      %p130 = pneg %p81
      %p131 = pneg %p78
      %s132 = smul.u32 32, %s13
      %p133 = scmp.lt.s32.totalorder %s132, 95
      %s134 = scalar_select %p133, %s132, 95
      %s135 = smul.addr %s134, 8
      %s136 = scalar_lea.vmem %s2, %s135
      %s137 = smul.u32 32, %s13
      %p138 = scmp.lt.s32.totalorder %s137, 95
      %s139 = scalar_select %p138, %s137, 95
      %s140 = smul.addr %s139, 6
      %s141 = smul.addr %s140, 8
      %s142 = scalar_lea.vmem %s0, %s141
      %s143 = smul.u32 32, %s13
      %s144 = smul.u32 32, %s13
      %p145 = scmp.lt.s32.totalorder %s144, 95
      %s146 = scalar_select %p145, %s144, 95
      %s147 = smul.addr %s146, 8
      %s148 = scalar_lea.vmem %s2, %s147
      %s149 = smul.u32 32, %s13
      %v150 = vld [vmem:[%s142] sm:$0xff]
      %v151 = vld [vmem:[%s142 + $0x8] sm:$0xff]
      %v152 = vld [vmem:[%s142 + $0x10] sm:$0xff]
      %v153 = vld [vmem:[%s142 + $0x18] sm:$0xff]
      %v154 = vld [vmem:[%s142 + $0x20] sm:$0xff]
      %v155 = vld [vmem:[%s142 + $0x28] sm:$0xff]
      %v156 = vld [vmem:[%s142 + $0x30] sm:$0xff]
      %v157 = vld [vmem:[%s142 + $0x38] sm:$0xff]
      %v158 = vld [vmem:[%s142 + $0x40] sm:$0xff]
      %v159 = vld [vmem:[%s142 + $0x48] sm:$0xff]
      %v160 = vld [vmem:[%s142 + $0x50] sm:$0xff]
      %v161 = vld [vmem:[%s142 + $0x58] sm:$0xff]
      %v162 = vld [vmem:[%s142 + $0x60] sm:$0xff]
      %v163 = vld [vmem:[%s142 + $0x68] sm:$0xff]
      %v164 = vld [vmem:[%s142 + $0x70] sm:$0xff]
      %v165 = vld [vmem:[%s142 + $0x78] sm:$0xff]
      %v166 = vld [vmem:[%s142 + $0x80] sm:$0xff]
      %v167 = vld [vmem:[%s142 + $0x88] sm:$0xff]
      %v168 = vld [vmem:[%s142 + $0x90] sm:$0xff]
      %v169 = vld [vmem:[%s142 + $0x98] sm:$0xff]
      %v170 = vld [vmem:[%s142 + $0xa0] sm:$0xff]
      %v171 = vld [vmem:[%s142 + $0xa8] sm:$0xff]
      %v172 = vld [vmem:[%s142 + $0xb0] sm:$0xff]
      %v173 = vld [vmem:[%s142 + $0xb8] sm:$0xff]
      %v174 = vld [vmem:[%s142 + $0xc0] sm:$0xff]
      %v175 = vld [vmem:[%s142 + $0xc8] sm:$0xff]
      %v176 = vld [vmem:[%s142 + $0xd0] sm:$0xff]
      %v177 = vld [vmem:[%s142 + $0xd8] sm:$0xff]
      %v178 = vld [vmem:[%s142 + $0xe0] sm:$0xff]
      %v179 = vld [vmem:[%s142 + $0xe8] sm:$0xff]
      %v180 = vld [vmem:[%s142 + $0xf0] sm:$0xff]
      %v181 = vld [vmem:[%s142 + $0xf8] sm:$0xff]
      %v182 = vld [vmem:[%s142 + $0x100] sm:$0xff]
      %v183 = vld [vmem:[%s142 + $0x108] sm:$0xff]
      %v184 = vld [vmem:[%s142 + $0x110] sm:$0xff]
      %v185 = vld [vmem:[%s142 + $0x118] sm:$0xff]
      %v186 = vld [vmem:[%s142 + $0x120] sm:$0xff]
      %v187 = vld [vmem:[%s142 + $0x128] sm:$0xff]
      %v188 = vld [vmem:[%s142 + $0x130] sm:$0xff]
      %v189 = vld [vmem:[%s142 + $0x138] sm:$0xff]
      %v190 = vld [vmem:[%s142 + $0x140] sm:$0xff]
      %v191 = vld [vmem:[%s142 + $0x148] sm:$0xff]
      %v192 = vld [vmem:[%s142 + $0x150] sm:$0xff]
      %v193 = vld [vmem:[%s142 + $0x158] sm:$0xff]
      %v194 = vld [vmem:[%s142 + $0x160] sm:$0xff]
      %v195 = vld [vmem:[%s142 + $0x168] sm:$0xff]
      %v196 = vld [vmem:[%s142 + $0x170] sm:$0xff]
      %v197 = vld [vmem:[%s142 + $0x178] sm:$0xff]
      %v198 = vld [vmem:[%s142 + $0x180] sm:$0xff]
      %v199 = vld [vmem:[%s142 + $0x188] sm:$0xff]
      %v200 = vld [vmem:[%s142 + $0x190] sm:$0xff]
      %v201 = vld [vmem:[%s142 + $0x198] sm:$0xff]
      %v202 = vld [vmem:[%s142 + $0x1a0] sm:$0xff]
      %v203 = vld [vmem:[%s142 + $0x1a8] sm:$0xff]
      %v204 = vld [vmem:[%s142 + $0x1b0] sm:$0xff]
      %v205 = vld [vmem:[%s142 + $0x1b8] sm:$0xff]
      %v206 = vld [vmem:[%s142 + $0x1c0] sm:$0xff]
      %v207 = vld [vmem:[%s142 + $0x1c8] sm:$0xff]
      %v208 = vld [vmem:[%s142 + $0x1d0] sm:$0xff]
      %v209 = vld [vmem:[%s142 + $0x1d8] sm:$0xff]
      %v210 = vld [vmem:[%s142 + $0x1e0] sm:$0xff]
      %v211 = vld [vmem:[%s142 + $0x1e8] sm:$0xff]
      %v212 = vld [vmem:[%s142 + $0x1f0] sm:$0xff]
      %v213 = vld [vmem:[%s142 + $0x1f8] sm:$0xff]
      %v214 = vld [vmem:[%s142 + $0x200] sm:$0xff]
      %v215 = vld [vmem:[%s142 + $0x208] sm:$0xff]
      %v216 = vld [vmem:[%s142 + $0x210] sm:$0xff]
      %v217 = vld [vmem:[%s142 + $0x218] sm:$0xff]
      %v218 = vld [vmem:[%s142 + $0x220] sm:$0xff]
      %v219 = vld [vmem:[%s142 + $0x228] sm:$0xff]
      %v220 = vld [vmem:[%s142 + $0x230] sm:$0xff]
      %v221 = vld [vmem:[%s142 + $0x238] sm:$0xff]
      %v222 = vld [vmem:[%s142 + $0x240] sm:$0xff]
      %v223 = vld [vmem:[%s142 + $0x248] sm:$0xff]
      %v224 = vld [vmem:[%s142 + $0x250] sm:$0xff]
      %v225 = vld [vmem:[%s142 + $0x258] sm:$0xff]
      %v226 = vld [vmem:[%s142 + $0x260] sm:$0xff]
      %v227 = vld [vmem:[%s142 + $0x268] sm:$0xff]
      %v228 = vld [vmem:[%s142 + $0x270] sm:$0xff]
      %v229 = vld [vmem:[%s142 + $0x278] sm:$0xff]
      %v230 = vld [vmem:[%s142 + $0x280] sm:$0xff]
      %v231 = vld [vmem:[%s142 + $0x288] sm:$0xff]
      %v232 = vld [vmem:[%s142 + $0x290] sm:$0xff]
      %v233 = vld [vmem:[%s142 + $0x298] sm:$0xff]
      %v234 = vld [vmem:[%s142 + $0x2a0] sm:$0xff]
      %v235 = vld [vmem:[%s142 + $0x2a8] sm:$0xff]
      %v236 = vld [vmem:[%s142 + $0x2b0] sm:$0xff]
      %v237 = vld [vmem:[%s142 + $0x2b8] sm:$0xff]
      %v238 = vld [vmem:[%s142 + $0x2c0] sm:$0xff]
      %v239 = vld [vmem:[%s142 + $0x2c8] sm:$0xff]
      %v240 = vld [vmem:[%s142 + $0x2d0] sm:$0xff]
      %v241 = vld [vmem:[%s142 + $0x2d8] sm:$0xff]
      %v242 = vld [vmem:[%s142 + $0x2e0] sm:$0xff]
      %v243 = vld [vmem:[%s142 + $0x2e8] sm:$0xff]
      %v244 = vld [vmem:[%s142 + $0x2f0] sm:$0xff]
      %v245 = vld [vmem:[%s142 + $0x2f8] sm:$0xff]
      %v246 = vld [vmem:[%s142 + $0x300] sm:$0xff]
      %v247 = vld [vmem:[%s142 + $0x308] sm:$0xff]
      %v248 = vld [vmem:[%s142 + $0x310] sm:$0xff]
      %v249 = vld [vmem:[%s142 + $0x318] sm:$0xff]
      %v250 = vld [vmem:[%s142 + $0x320] sm:$0xff]
      %v251 = vld [vmem:[%s142 + $0x328] sm:$0xff]
      %v252 = vld [vmem:[%s142 + $0x330] sm:$0xff]
      %v253 = vld [vmem:[%s142 + $0x338] sm:$0xff]
      %v254 = vld [vmem:[%s142 + $0x340] sm:$0xff]
      %v255 = vld [vmem:[%s142 + $0x348] sm:$0xff]
      %v256 = vld [vmem:[%s142 + $0x350] sm:$0xff]
      %v257 = vld [vmem:[%s142 + $0x358] sm:$0xff]
      %v258 = vld [vmem:[%s142 + $0x360] sm:$0xff]
      %v259 = vld [vmem:[%s142 + $0x368] sm:$0xff]
      %v260 = vld [vmem:[%s142 + $0x370] sm:$0xff]
      %v261 = vld [vmem:[%s142 + $0x378] sm:$0xff]
      %v262 = vld [vmem:[%s142 + $0x380] sm:$0xff]
      %v263 = vld [vmem:[%s142 + $0x388] sm:$0xff]
      %v264 = vld [vmem:[%s142 + $0x390] sm:$0xff]
      %v265 = vld [vmem:[%s142 + $0x398] sm:$0xff]
      %v266 = vld [vmem:[%s142 + $0x3a0] sm:$0xff]
      %v267 = vld [vmem:[%s142 + $0x3a8] sm:$0xff]
      %v268 = vld [vmem:[%s142 + $0x3b0] sm:$0xff]
      %v269 = vld [vmem:[%s142 + $0x3b8] sm:$0xff]
      %v270 = vld [vmem:[%s142 + $0x3c0] sm:$0xff]
      %v271 = vld [vmem:[%s142 + $0x3c8] sm:$0xff]
      %v272 = vld [vmem:[%s142 + $0x3d0] sm:$0xff]
      %v273 = vld [vmem:[%s142 + $0x3d8] sm:$0xff]
      %v274 = vld [vmem:[%s142 + $0x3e0] sm:$0xff]
      %v275 = vld [vmem:[%s142 + $0x3e8] sm:$0xff]
      %v276 = vld [vmem:[%s142 + $0x3f0] sm:$0xff]
      %v277 = vld [vmem:[%s142 + $0x3f8] sm:$0xff]
      %v278 = vld [vmem:[%s142 + $0x400] sm:$0xff]
      %v279 = vld [vmem:[%s142 + $0x408] sm:$0xff]
      %v280 = vld [vmem:[%s142 + $0x410] sm:$0xff]
      %v281 = vld [vmem:[%s142 + $0x418] sm:$0xff]
      %v282 = vld [vmem:[%s142 + $0x420] sm:$0xff]
      %v283 = vld [vmem:[%s142 + $0x428] sm:$0xff]
      %v284 = vld [vmem:[%s142 + $0x430] sm:$0xff]
      %v285 = vld [vmem:[%s142 + $0x438] sm:$0xff]
      %v286 = vld [vmem:[%s142 + $0x440] sm:$0xff]
      %v287 = vld [vmem:[%s142 + $0x448] sm:$0xff]
      %v288 = vld [vmem:[%s142 + $0x450] sm:$0xff]
      %v289 = vld [vmem:[%s142 + $0x458] sm:$0xff]
      %v290 = vld [vmem:[%s142 + $0x460] sm:$0xff]
      %v291 = vld [vmem:[%s142 + $0x468] sm:$0xff]
      %v292 = vld [vmem:[%s142 + $0x470] sm:$0xff]
      %v293 = vld [vmem:[%s142 + $0x478] sm:$0xff]
      %v294 = vld [vmem:[%s142 + $0x480] sm:$0xff]
      %v295 = vld [vmem:[%s142 + $0x488] sm:$0xff]
      %v296 = vld [vmem:[%s142 + $0x490] sm:$0xff]
      %v297 = vld [vmem:[%s142 + $0x498] sm:$0xff]
      %v298 = vld [vmem:[%s142 + $0x4a0] sm:$0xff]
      %v299 = vld [vmem:[%s142 + $0x4a8] sm:$0xff]
      %v300 = vld [vmem:[%s142 + $0x4b0] sm:$0xff]
      %v301 = vld [vmem:[%s142 + $0x4b8] sm:$0xff]
      %v302 = vld [vmem:[%s142 + $0x4c0] sm:$0xff]
      %v303 = vld [vmem:[%s142 + $0x4c8] sm:$0xff]
      %v304 = vld [vmem:[%s142 + $0x4d0] sm:$0xff]
      %v305 = vld [vmem:[%s142 + $0x4d8] sm:$0xff]
      %v306 = vld [vmem:[%s142 + $0x4e0] sm:$0xff]
      %v307 = vld [vmem:[%s142 + $0x4e8] sm:$0xff]
      %v308 = vld [vmem:[%s142 + $0x4f0] sm:$0xff]
      %v309 = vld [vmem:[%s142 + $0x4f8] sm:$0xff]
      %v310 = vld [vmem:[%s142 + $0x500] sm:$0xff]
      %v311 = vld [vmem:[%s142 + $0x508] sm:$0xff]
      %v312 = vld [vmem:[%s142 + $0x510] sm:$0xff]
      %v313 = vld [vmem:[%s142 + $0x518] sm:$0xff]
      %v314 = vld [vmem:[%s142 + $0x520] sm:$0xff]
      %v315 = vld [vmem:[%s142 + $0x528] sm:$0xff]
      %v316 = vld [vmem:[%s142 + $0x530] sm:$0xff]
      %v317 = vld [vmem:[%s142 + $0x538] sm:$0xff]
      %v318 = vld [vmem:[%s142 + $0x540] sm:$0xff]
      %v319 = vld [vmem:[%s142 + $0x548] sm:$0xff]
      %v320 = vld [vmem:[%s142 + $0x550] sm:$0xff]
      %v321 = vld [vmem:[%s142 + $0x558] sm:$0xff]
      %v322 = vld [vmem:[%s142 + $0x560] sm:$0xff]
      %v323 = vld [vmem:[%s142 + $0x568] sm:$0xff]
      %v324 = vld [vmem:[%s142 + $0x570] sm:$0xff]
      %v325 = vld [vmem:[%s142 + $0x578] sm:$0xff]
      %v326 = vld [vmem:[%s142 + $0x580] sm:$0xff]
      %v327 = vld [vmem:[%s142 + $0x588] sm:$0xff]
      %v328 = vld [vmem:[%s142 + $0x590] sm:$0xff]
      %v329 = vld [vmem:[%s142 + $0x598] sm:$0xff]
      %v330 = vld [vmem:[%s142 + $0x5a0] sm:$0xff]
      %v331 = vld [vmem:[%s142 + $0x5a8] sm:$0xff]
      %v332 = vld [vmem:[%s142 + $0x5b0] sm:$0xff]
      %v333 = vld [vmem:[%s142 + $0x5b8] sm:$0xff]
      %v334 = vld [vmem:[%s142 + $0x5c0] sm:$0xff]
      %v335 = vld [vmem:[%s142 + $0x5c8] sm:$0xff]
      %v336 = vld [vmem:[%s142 + $0x5d0] sm:$0xff]
      %v337 = vld [vmem:[%s142 + $0x5d8] sm:$0xff]
      %v338 = vld [vmem:[%s142 + $0x5e0] sm:$0xff]
      %v339 = vld [vmem:[%s142 + $0x5e8] sm:$0xff]
      %v340 = vld [vmem:[%s142 + $0x5f0] sm:$0xff]
      %v341 = vld [vmem:[%s142 + $0x5f8] sm:$0xff]
      %v342 = vld [vmem:[%s1] sm:$0xff]
      %v343 = vld [vmem:[%s1 + $0x8] sm:$0xff]
      %v344 = vld [vmem:[%s1 + $0x10] sm:$0xff]
      %v345 = vld [vmem:[%s1 + $0x18] sm:$0xff]
      %v346 = vld [vmem:[%s1 + $0x20] sm:$0xff]
      %v347 = vld [vmem:[%s1 + $0x28] sm:$0xff]
      %v348 = vld [vmem:[%s1 + $0x30] sm:$0xff]
      %v349 = vld [vmem:[%s1 + $0x38] sm:$0xff]
      %v350 = vld [vmem:[%s1 + $0x40] sm:$0xff]
      %v351 = vld [vmem:[%s1 + $0x48] sm:$0xff]
      %v352 = vld [vmem:[%s1 + $0x50] sm:$0xff]
      %v353 = vld [vmem:[%s1 + $0x58] sm:$0xff]
      %v354 = vld [vmem:[%s1 + $0x60] sm:$0xff]
      %v355 = vld [vmem:[%s1 + $0x68] sm:$0xff]
      %v356 = vld [vmem:[%s1 + $0x70] sm:$0xff]
      %v357 = vld [vmem:[%s1 + $0x78] sm:$0xff]
      %v358 = vld [vmem:[%s1 + $0x80] sm:$0xff]
      %v359 = vld [vmem:[%s1 + $0x88] sm:$0xff]
      %v360 = vld [vmem:[%s1 + $0x90] sm:$0xff]
      %v361 = vld [vmem:[%s1 + $0x98] sm:$0xff]
      %v362 = vld [vmem:[%s1 + $0xa0] sm:$0xff]
      %v363 = vld [vmem:[%s1 + $0xa8] sm:$0xff]
      %v364 = vld [vmem:[%s1 + $0xb0] sm:$0xff]
      %v365 = vld [vmem:[%s1 + $0xb8] sm:$0xff]
      %v366 = vld [vmem:[%s1 + $0xc0] sm:$0xff]
      %v367 = vld [vmem:[%s1 + $0xc8] sm:$0xff]
      %v368 = vld [vmem:[%s1 + $0xd0] sm:$0xff]
      %v369 = vld [vmem:[%s1 + $0xd8] sm:$0xff]
      %v370 = vld [vmem:[%s1 + $0xe0] sm:$0xff]
      %v371 = vld [vmem:[%s1 + $0xe8] sm:$0xff]
      %v372 = vld [vmem:[%s1 + $0xf0] sm:$0xff]
      %v373 = vld [vmem:[%s1 + $0xf8] sm:$0xff]
      %v374 = vld [vmem:[%s1 + $0x100] sm:$0xff]
      %v375 = vld [vmem:[%s1 + $0x108] sm:$0xff]
      %v376 = vld [vmem:[%s1 + $0x110] sm:$0xff]
      %v377 = vld [vmem:[%s1 + $0x118] sm:$0xff]
      %v378 = vld [vmem:[%s1 + $0x120] sm:$0xff]
      %v379 = vld [vmem:[%s1 + $0x128] sm:$0xff]
      %v380 = vld [vmem:[%s1 + $0x130] sm:$0xff]
      %v381 = vld [vmem:[%s1 + $0x138] sm:$0xff]
      %v382 = vld [vmem:[%s1 + $0x140] sm:$0xff]
      %v383 = vld [vmem:[%s1 + $0x148] sm:$0xff]
      %v384 = vld [vmem:[%s1 + $0x150] sm:$0xff]
      %v385 = vld [vmem:[%s1 + $0x158] sm:$0xff]
      %v386 = vld [vmem:[%s1 + $0x160] sm:$0xff]
      %v387 = vld [vmem:[%s1 + $0x168] sm:$0xff]
      %v388 = vld [vmem:[%s1 + $0x170] sm:$0xff]
      %v389 = vld [vmem:[%s1 + $0x178] sm:$0xff]
      %v390 = vld [vmem:[%s1 + $0x180] sm:$0xff]
      %v391 = vld [vmem:[%s1 + $0x188] sm:$0xff]
      %v392 = vld [vmem:[%s1 + $0x190] sm:$0xff]
      %v393 = vld [vmem:[%s1 + $0x198] sm:$0xff]
      %v394 = vld [vmem:[%s1 + $0x1a0] sm:$0xff]
      %v395 = vld [vmem:[%s1 + $0x1a8] sm:$0xff]
      %v396 = vld [vmem:[%s1 + $0x1b0] sm:$0xff]
      %v397 = vld [vmem:[%s1 + $0x1b8] sm:$0xff]
      %v398 = vld [vmem:[%s1 + $0x1c0] sm:$0xff]
      %v399 = vld [vmem:[%s1 + $0x1c8] sm:$0xff]
      %v400 = vld [vmem:[%s1 + $0x1d0] sm:$0xff]
      %v401 = vld [vmem:[%s1 + $0x1d8] sm:$0xff]
      %v402 = vld [vmem:[%s1 + $0x1e0] sm:$0xff]
      %v403 = vld [vmem:[%s1 + $0x1e8] sm:$0xff]
      %v404 = vld [vmem:[%s1 + $0x1f0] sm:$0xff]
      %v405 = vld [vmem:[%s1 + $0x1f8] sm:$0xff]
      %v406 = vld [vmem:[%s1 + $0x200] sm:$0xff]
      %v407 = vld [vmem:[%s1 + $0x208] sm:$0xff]
      %v408 = vld [vmem:[%s1 + $0x210] sm:$0xff]
      %v409 = vld [vmem:[%s1 + $0x218] sm:$0xff]
      %v410 = vld [vmem:[%s1 + $0x220] sm:$0xff]
      %v411 = vld [vmem:[%s1 + $0x228] sm:$0xff]
      %v412 = vld [vmem:[%s1 + $0x230] sm:$0xff]
      %v413 = vld [vmem:[%s1 + $0x238] sm:$0xff]
      %v414 = vld [vmem:[%s1 + $0x240] sm:$0xff]
      %v415 = vld [vmem:[%s1 + $0x248] sm:$0xff]
      %v416 = vld [vmem:[%s1 + $0x250] sm:$0xff]
      %v417 = vld [vmem:[%s1 + $0x258] sm:$0xff]
      %v418 = vld [vmem:[%s1 + $0x260] sm:$0xff]
      %v419 = vld [vmem:[%s1 + $0x268] sm:$0xff]
      %v420 = vld [vmem:[%s1 + $0x270] sm:$0xff]
      %v421 = vld [vmem:[%s1 + $0x278] sm:$0xff]
      %v422 = vld [vmem:[%s1 + $0x280] sm:$0xff]
      %v423 = vld [vmem:[%s1 + $0x288] sm:$0xff]
      %v424 = vld [vmem:[%s1 + $0x290] sm:$0xff]
      %v425 = vld [vmem:[%s1 + $0x298] sm:$0xff]
      %v426 = vld [vmem:[%s1 + $0x2a0] sm:$0xff]
      %v427 = vld [vmem:[%s1 + $0x2a8] sm:$0xff]
      %v428 = vld [vmem:[%s1 + $0x2b0] sm:$0xff]
      %v429 = vld [vmem:[%s1 + $0x2b8] sm:$0xff]
      %v430 = vld [vmem:[%s1 + $0x2c0] sm:$0xff]
      %v431 = vld [vmem:[%s1 + $0x2c8] sm:$0xff]
      %v432 = vld [vmem:[%s1 + $0x2d0] sm:$0xff]
      %v433 = vld [vmem:[%s1 + $0x2d8] sm:$0xff]
      %v434 = vld [vmem:[%s1 + $0x2e0] sm:$0xff]
      %v435 = vld [vmem:[%s1 + $0x2e8] sm:$0xff]
      %v436 = vld [vmem:[%s1 + $0x2f0] sm:$0xff]
      %v437 = vld [vmem:[%s1 + $0x2f8] sm:$0xff]
      %438 = vmatprep.subr.mxu0 0.0
      %439 = vmatpush1.msra.mxu0 %v342
      %440 = vmatprep.subr.mxu0 0.0
      %441 = vmatpush1.msra.mxu0 %v343
      %442 = vmatprep.subr.mxu0 0.0
      %443 = vmatpush1.msra.mxu0 %v344
      %444 = vmatprep.subr.mxu0 0.0
      %445 = vmatpush1.msra.mxu0 %v345
      %446 = vmatprep.subr.mxu0 0.0
      %447 = vmatpush1.msra.mxu0 %v346
      %448 = vmatprep.subr.mxu0 0.0
      %449 = vmatpush1.msra.mxu0 %v347
      %450 = vmatprep.subr.mxu0 0.0
      %451 = vmatpush1.msra.mxu0 %v348
      %452 = vmatprep.subr.mxu0 0.0
      %453 = vmatpush1.msra.mxu0 %v349
      %454 = vmatprep.subr.mxu0 0.0
      %455 = vmatpush1.msra.mxu0 %v350
      %456 = vmatprep.subr.mxu0 0.0
      %457 = vmatpush1.msra.mxu0 %v351
      %458 = vmatprep.subr.mxu0 0.0
      %459 = vmatpush1.msra.mxu0 %v352
      %460 = vmatprep.subr.mxu0 0.0
      %461 = vmatpush1.msra.mxu0 %v353
      %462 = vmatprep.subr.mxu0 0.0
      %463 = vmatpush1.msra.mxu0 %v354
      %464 = vmatprep.subr.mxu0 0.0
      %465 = vmatpush1.msra.mxu0 %v355
      %466 = vmatprep.subr.mxu0 0.0
      %467 = vmatpush1.msra.mxu0 %v356
      %468 = vmatprep.subr.mxu0 0.0
      %469 = vmatpush1.msra.mxu0 %v357
      %470 = vmatprep.subr.mxu0 0.0
      %471 = vmatpush1.msra.mxu0 %v358
      %472 = vmatprep.subr.mxu0 0.0
      %473 = vmatpush1.msra.mxu0 %v359
      %474 = vmatprep.subr.mxu0 0.0
      %475 = vmatpush1.msra.mxu0 %v360
      %476 = vmatprep.subr.mxu0 0.0
      %477 = vmatpush1.msra.mxu0 %v361
      %478 = vmatprep.subr.mxu0 0.0
      %479 = vmatpush1.msra.mxu0 %v362
      %480 = vmatprep.subr.mxu0 0.0
      %481 = vmatpush1.msra.mxu0 %v363
      %482 = vmatprep.subr.mxu0 0.0
      %483 = vmatpush1.msra.mxu0 %v364
      %484 = vmatprep.subr.mxu0 0.0
      %485 = vmatpush1.msra.mxu0 %v365
      %486 = vmatprep.subr.mxu0 0.0
      %487 = vmatpush1.msra.mxu0 %v366
      %488 = vmatprep.subr.mxu0 0.0
      %489 = vmatpush1.msra.mxu0 %v367
      %490 = vmatprep.subr.mxu0 0.0
      %491 = vmatpush1.msra.mxu0 %v368
      %492 = vmatprep.subr.mxu0 0.0
      %493 = vmatpush1.msra.mxu0 %v369
      %494 = vmatprep.subr.mxu0 0.0
      %495 = vmatpush1.msra.mxu0 %v370
      %496 = vmatprep.subr.mxu0 0.0
      %497 = vmatpush1.msra.mxu0 %v371
      %498 = vmatprep.subr.mxu0 0.0
      %499 = vmatpush1.msra.mxu0 %v372
      %500 = vmatprep.subr.mxu0 0.0
      %501 = vmatpush1.msra.mxu0 %v373
      %502 = vmatprep.mubr.f32.mxu0 %v151
      %503 = vmatmul.mubr.f32.gmra.mrb[0].mxu0 %v150
      %v504 = vpop.f32.mrb[0].mxu0
      %v505 = vadd.f32 0.0, %v504
      %v506 = vpop.f32.mrb[0].mxu0
      %507 = vmatprep.mubr.f32.mxu0 %v157
      %508 = vmatmul.mubr.f32.gmra.mrb[0].mxu0 %v156
      %v509 = vpop.f32.mrb[0].mxu0
      %v510 = vadd.f32 0.0, %v509
      %v511 = vpop.f32.mrb[0].mxu0
      %512 = vmatprep.mubr.f32.mxu0 %v163
      %513 = vmatmul.mubr.f32.gmra.mrb[0].mxu0 %v162
      %v514 = vpop.f32.mrb[0].mxu0
      %v515 = vadd.f32 0.0, %v514
      %v516 = vpop.f32.mrb[0].mxu0
      %517 = vmatprep.mubr.f32.mxu0 %v169
      %518 = vmatmul.mubr.f32.gmra.mrb[0].mxu0 %v168
      %v519 = vpop.f32.mrb[0].mxu0
      %v520 = vadd.f32 0.0, %v519
      %v521 = vpop.f32.mrb[0].mxu0
      %522 = vmatprep.mubr.f32.mxu0 %v175
      %523 = vmatmul.mubr.f32.gmra.mrb[0].mxu0 %v174
      %v524 = vpop.f32.mrb[0].mxu0
      %v525 = vadd.f32 0.0, %v524
      %v526 = vpop.f32.mrb[0].mxu0
      %527 = vmatprep.mubr.f32.mxu0 %v181
      %528 = vmatmul.mubr.f32.gmra.mrb[0].mxu0 %v180
      %v529 = vpop.f32.mrb[0].mxu0
      %v530 = vadd.f32 0.0, %v529
      %v531 = vpop.f32.mrb[0].mxu0
      %532 = vmatprep.mubr.f32.mxu0 %v187
      %533 = vmatmul.mubr.f32.gmra.mrb[0].mxu0 %v186
      %v534 = vpop.f32.mrb[0].mxu0
      %v535 = vadd.f32 0.0, %v534
      %v536 = vpop.f32.mrb[0].mxu0
      %537 = vmatprep.mubr.f32.mxu0 %v193
      %538 = vmatmul.mubr.f32.gmra.mrb[0].mxu0 %v192
      %v539 = vpop.f32.mrb[0].mxu0
      %v540 = vadd.f32 0.0, %v539
      %v541 = vpop.f32.mrb[0].mxu0
      %542 = vmatprep.mubr.f32.mxu0 %v199
      %543 = vmatmul.mubr.f32.gmra.mrb[0].mxu0 %v198
      %v544 = vpop.f32.mrb[0].mxu0
      %v545 = vadd.f32 0.0, %v544
      %v546 = vpop.f32.mrb[0].mxu0
      %547 = vmatprep.mubr.f32.mxu0 %v205
      %548 = vmatmul.mubr.f32.gmra.mrb[0].mxu0 %v204
      %v549 = vpop.f32.mrb[0].mxu0
      %v550 = vadd.f32 0.0, %v549
      %v551 = vpop.f32.mrb[0].mxu0
      %552 = vmatprep.mubr.f32.mxu0 %v211
      %553 = vmatmul.mubr.f32.gmra.mrb[0].mxu0 %v210
      %v554 = vpop.f32.mrb[0].mxu0
      %v555 = vadd.f32 0.0, %v554
      %v556 = vpop.f32.mrb[0].mxu0
      %557 = vmatprep.mubr.f32.mxu0 %v217
      %558 = vmatmul.mubr.f32.gmra.mrb[0].mxu0 %v216
      %v559 = vpop.f32.mrb[0].mxu0
      %v560 = vadd.f32 0.0, %v559
      %v561 = vpop.f32.mrb[0].mxu0
      %562 = vmatprep.mubr.f32.mxu0 %v223
      %563 = vmatmul.mubr.f32.gmra.mrb[0].mxu0 %v222
      %v564 = vpop.f32.mrb[0].mxu0
      %v565 = vadd.f32 0.0, %v564
      %v566 = vpop.f32.mrb[0].mxu0
      %567 = vmatprep.mubr.f32.mxu0 %v229
      %568 = vmatmul.mubr.f32.gmra.mrb[0].mxu0 %v228
      %v569 = vpop.f32.mrb[0].mxu0
      %v570 = vadd.f32 0.0, %v569
      %v571 = vpop.f32.mrb[0].mxu0
      %572 = vmatprep.mubr.f32.mxu0 %v235
      %573 = vmatmul.mubr.f32.gmra.mrb[0].mxu0 %v234
      %v574 = vpop.f32.mrb[0].mxu0
      %v575 = vadd.f32 0.0, %v574
      %v576 = vpop.f32.mrb[0].mxu0
      %577 = vmatprep.mubr.f32.mxu0 %v241
      %578 = vmatmul.mubr.f32.gmra.mrb[0].mxu0 %v240
      %v579 = vpop.f32.mrb[0].mxu0
      %v580 = vadd.f32 0.0, %v579
      %v581 = vpop.f32.mrb[0].mxu0
      %582 = vmatprep.mubr.f32.mxu0 %v247
      %583 = vmatmul.mubr.f32.gmra.mrb[0].mxu0 %v246
      %v584 = vpop.f32.mrb[0].mxu0
      %v585 = vadd.f32 0.0, %v584
      %v586 = vpop.f32.mrb[0].mxu0
      %587 = vmatprep.mubr.f32.mxu0 %v253
      %588 = vmatmul.mubr.f32.gmra.mrb[0].mxu0 %v252
      %v589 = vpop.f32.mrb[0].mxu0
      %v590 = vadd.f32 0.0, %v589
      %v591 = vpop.f32.mrb[0].mxu0
      %592 = vmatprep.mubr.f32.mxu0 %v259
      %593 = vmatmul.mubr.f32.gmra.mrb[0].mxu0 %v258
      %v594 = vpop.f32.mrb[0].mxu0
      %v595 = vadd.f32 0.0, %v594
      %v596 = vpop.f32.mrb[0].mxu0
      %597 = vmatprep.mubr.f32.mxu0 %v265
      %598 = vmatmul.mubr.f32.gmra.mrb[0].mxu0 %v264
      %v599 = vpop.f32.mrb[0].mxu0
      %v600 = vadd.f32 0.0, %v599
      %v601 = vpop.f32.mrb[0].mxu0
      %602 = vmatprep.mubr.f32.mxu0 %v271
      %603 = vmatmul.mubr.f32.gmra.mrb[0].mxu0 %v270
      %v604 = vpop.f32.mrb[0].mxu0
      %v605 = vadd.f32 0.0, %v604
      %v606 = vpop.f32.mrb[0].mxu0
      %607 = vmatprep.mubr.f32.mxu0 %v277
      %608 = vmatmul.mubr.f32.gmra.mrb[0].mxu0 %v276
      %v609 = vpop.f32.mrb[0].mxu0
      %v610 = vadd.f32 0.0, %v609
      %v611 = vpop.f32.mrb[0].mxu0
      %612 = vmatprep.mubr.f32.mxu0 %v283
      %613 = vmatmul.mubr.f32.gmra.mrb[0].mxu0 %v282
      %v614 = vpop.f32.mrb[0].mxu0
      %v615 = vadd.f32 0.0, %v614
      %v616 = vpop.f32.mrb[0].mxu0
      %617 = vmatprep.mubr.f32.mxu0 %v289
      %618 = vmatmul.mubr.f32.gmra.mrb[0].mxu0 %v288
      %v619 = vpop.f32.mrb[0].mxu0
      %v620 = vadd.f32 0.0, %v619
      %v621 = vpop.f32.mrb[0].mxu0
      %622 = vmatprep.mubr.f32.mxu0 %v295
      %623 = vmatmul.mubr.f32.gmra.mrb[0].mxu0 %v294
      %v624 = vpop.f32.mrb[0].mxu0
      %v625 = vadd.f32 0.0, %v624
      %v626 = vpop.f32.mrb[0].mxu0
      %627 = vmatprep.mubr.f32.mxu0 %v301
      %628 = vmatmul.mubr.f32.gmra.mrb[0].mxu0 %v300
      %v629 = vpop.f32.mrb[0].mxu0
      %v630 = vadd.f32 0.0, %v629
      %v631 = vpop.f32.mrb[0].mxu0
      %632 = vmatprep.mubr.f32.mxu0 %v307
      %633 = vmatmul.mubr.f32.gmra.mrb[0].mxu0 %v306
      %v634 = vpop.f32.mrb[0].mxu0
      %v635 = vadd.f32 0.0, %v634
      %v636 = vpop.f32.mrb[0].mxu0
      %637 = vmatprep.mubr.f32.mxu0 %v313
      %638 = vmatmul.mubr.f32.gmra.mrb[0].mxu0 %v312
      %v639 = vpop.f32.mrb[0].mxu0
      %v640 = vadd.f32 0.0, %v639
      %v641 = vpop.f32.mrb[0].mxu0
      %642 = vmatprep.mubr.f32.mxu0 %v319
      %643 = vmatmul.mubr.f32.gmra.mrb[0].mxu0 %v318
      %v644 = vpop.f32.mrb[0].mxu0
      %v645 = vadd.f32 0.0, %v644
      %v646 = vpop.f32.mrb[0].mxu0
      %647 = vmatprep.mubr.f32.mxu0 %v325
      %648 = vmatmul.mubr.f32.gmra.mrb[0].mxu0 %v324
      %v649 = vpop.f32.mrb[0].mxu0
      %v650 = vadd.f32 0.0, %v649
      %v651 = vpop.f32.mrb[0].mxu0
      %652 = vmatprep.mubr.f32.mxu0 %v331
      %653 = vmatmul.mubr.f32.gmra.mrb[0].mxu0 %v330
      %v654 = vpop.f32.mrb[0].mxu0
      %v655 = vadd.f32 0.0, %v654
      %v656 = vpop.f32.mrb[0].mxu0
      %657 = vmatprep.mubr.f32.mxu0 %v337
      %658 = vmatmul.mubr.f32.gmra.mrb[0].mxu0 %v336
      %v659 = vpop.f32.mrb[0].mxu0
      %v660 = vadd.f32 0.0, %v659
      %v661 = vpop.f32.mrb[0].mxu0
      %662 = vdwg.mxu0
      %663 = vmatprep.subr.mxu0 0.0
      %664 = vmatpush1.msra.mxu0 %v374
      %665 = vmatprep.subr.mxu0 0.0
      %666 = vmatpush1.msra.mxu0 %v375
      %667 = vmatprep.subr.mxu0 0.0
      %668 = vmatpush1.msra.mxu0 %v376
      %669 = vmatprep.subr.mxu0 0.0
      %670 = vmatpush1.msra.mxu0 %v377
      %671 = vmatprep.subr.mxu0 0.0
      %672 = vmatpush1.msra.mxu0 %v378
      %673 = vmatprep.subr.mxu0 0.0
      %674 = vmatpush1.msra.mxu0 %v379
      %675 = vmatprep.subr.mxu0 0.0
      %676 = vmatpush1.msra.mxu0 %v380
      %677 = vmatprep.subr.mxu0 0.0
      %678 = vmatpush1.msra.mxu0 %v381
      %679 = vmatprep.subr.mxu0 0.0
      %680 = vmatpush1.msra.mxu0 %v382
      %681 = vmatprep.subr.mxu0 0.0
      %682 = vmatpush1.msra.mxu0 %v383
      %683 = vmatprep.subr.mxu0 0.0
      %684 = vmatpush1.msra.mxu0 %v384
      %685 = vmatprep.subr.mxu0 0.0
      %686 = vmatpush1.msra.mxu0 %v385
      %687 = vmatprep.subr.mxu0 0.0
      %688 = vmatpush1.msra.mxu0 %v386
      %689 = vmatprep.subr.mxu0 0.0
      %690 = vmatpush1.msra.mxu0 %v387
      %691 = vmatprep.subr.mxu0 0.0
      %692 = vmatpush1.msra.mxu0 %v388
      %693 = vmatprep.subr.mxu0 0.0
      %694 = vmatpush1.msra.mxu0 %v389
      %695 = vmatprep.subr.mxu0 0.0
      %696 = vmatpush1.msra.mxu0 %v390
      %697 = vmatprep.subr.mxu0 0.0
      %698 = vmatpush1.msra.mxu0 %v391
      %699 = vmatprep.subr.mxu0 0.0
      %700 = vmatpush1.msra.mxu0 %v392
      %701 = vmatprep.subr.mxu0 0.0
      %702 = vmatpush1.msra.mxu0 %v393
      %703 = vmatprep.subr.mxu0 0.0
      %704 = vmatpush1.msra.mxu0 %v394
      %705 = vmatprep.subr.mxu0 0.0
      %706 = vmatpush1.msra.mxu0 %v395
      %707 = vmatprep.subr.mxu0 0.0
      %708 = vmatpush1.msra.mxu0 %v396
      %709 = vmatprep.subr.mxu0 0.0
      %710 = vmatpush1.msra.mxu0 %v397
      %711 = vmatprep.subr.mxu0 0.0
      %712 = vmatpush1.msra.mxu0 %v398
      %713 = vmatprep.subr.mxu0 0.0
      %714 = vmatpush1.msra.mxu0 %v399
      %715 = vmatprep.subr.mxu0 0.0
      %716 = vmatpush1.msra.mxu0 %v400
      %717 = vmatprep.subr.mxu0 0.0
      %718 = vmatpush1.msra.mxu0 %v401
      %719 = vmatprep.subr.mxu0 0.0
      %720 = vmatpush1.msra.mxu0 %v402
      %721 = vmatprep.subr.mxu0 0.0
      %722 = vmatpush1.msra.mxu0 %v403
      %723 = vmatprep.subr.mxu0 0.0
      %724 = vmatpush1.msra.mxu0 %v404
      %725 = vmatprep.subr.mxu0 0.0
      %726 = vmatpush1.msra.mxu0 %v405
      %727 = vmatprep.mubr.f32.mxu0 %v153
      %728 = vmatmul.mubr.f32.gmra.mrb[0].mxu0 %v152
      %v729 = vpop.f32.mrb[0].mxu0
      %v730 = vadd.f32 %v505, %v729
      %v731 = vpop.f32.mrb[0].mxu0
      %732 = vmatprep.mubr.f32.mxu0 %v159
      %733 = vmatmul.mubr.f32.gmra.mrb[0].mxu0 %v158
      %v734 = vpop.f32.mrb[0].mxu0
      %v735 = vadd.f32 %v510, %v734
      %v736 = vpop.f32.mrb[0].mxu0
      %737 = vmatprep.mubr.f32.mxu0 %v165
      %738 = vmatmul.mubr.f32.gmra.mrb[0].mxu0 %v164
      %v739 = vpop.f32.mrb[0].mxu0
      %v740 = vadd.f32 %v515, %v739
      %v741 = vpop.f32.mrb[0].mxu0
      %742 = vmatprep.mubr.f32.mxu0 %v171
      %743 = vmatmul.mubr.f32.gmra.mrb[0].mxu0 %v170
      %v744 = vpop.f32.mrb[0].mxu0
      %v745 = vadd.f32 %v520, %v744
      %v746 = vpop.f32.mrb[0].mxu0
      %747 = vmatprep.mubr.f32.mxu0 %v177
      %748 = vmatmul.mubr.f32.gmra.mrb[0].mxu0 %v176
      %v749 = vpop.f32.mrb[0].mxu0
      %v750 = vadd.f32 %v525, %v749
      %v751 = vpop.f32.mrb[0].mxu0
      %752 = vmatprep.mubr.f32.mxu0 %v183
      %753 = vmatmul.mubr.f32.gmra.mrb[0].mxu0 %v182
      %v754 = vpop.f32.mrb[0].mxu0
      %v755 = vadd.f32 %v530, %v754
      %v756 = vpop.f32.mrb[0].mxu0
      %757 = vmatprep.mubr.f32.mxu0 %v189
      %758 = vmatmul.mubr.f32.gmra.mrb[0].mxu0 %v188
      %v759 = vpop.f32.mrb[0].mxu0
      %v760 = vadd.f32 %v535, %v759
      %v761 = vpop.f32.mrb[0].mxu0
      %762 = vmatprep.mubr.f32.mxu0 %v195
      %763 = vmatmul.mubr.f32.gmra.mrb[0].mxu0 %v194
      %v764 = vpop.f32.mrb[0].mxu0
      %v765 = vadd.f32 %v540, %v764
      %v766 = vpop.f32.mrb[0].mxu0
      %767 = vmatprep.mubr.f32.mxu0 %v201
      %768 = vmatmul.mubr.f32.gmra.mrb[0].mxu0 %v200
      %v769 = vpop.f32.mrb[0].mxu0
      %v770 = vadd.f32 %v545, %v769
      %v771 = vpop.f32.mrb[0].mxu0
      %772 = vmatprep.mubr.f32.mxu0 %v207
      %773 = vmatmul.mubr.f32.gmra.mrb[0].mxu0 %v206
      %v774 = vpop.f32.mrb[0].mxu0
      %v775 = vadd.f32 %v550, %v774
      %v776 = vpop.f32.mrb[0].mxu0
      %777 = vmatprep.mubr.f32.mxu0 %v213
      %778 = vmatmul.mubr.f32.gmra.mrb[0].mxu0 %v212
      %v779 = vpop.f32.mrb[0].mxu0
      %v780 = vadd.f32 %v555, %v779
      %v781 = vpop.f32.mrb[0].mxu0
      %782 = vmatprep.mubr.f32.mxu0 %v219
      %783 = vmatmul.mubr.f32.gmra.mrb[0].mxu0 %v218
      %v784 = vpop.f32.mrb[0].mxu0
      %v785 = vadd.f32 %v560, %v784
      %v786 = vpop.f32.mrb[0].mxu0
      %787 = vmatprep.mubr.f32.mxu0 %v225
      %788 = vmatmul.mubr.f32.gmra.mrb[0].mxu0 %v224
      %v789 = vpop.f32.mrb[0].mxu0
      %v790 = vadd.f32 %v565, %v789
      %v791 = vpop.f32.mrb[0].mxu0
      %792 = vmatprep.mubr.f32.mxu0 %v231
      %793 = vmatmul.mubr.f32.gmra.mrb[0].mxu0 %v230
      %v794 = vpop.f32.mrb[0].mxu0
      %v795 = vadd.f32 %v570, %v794
      %v796 = vpop.f32.mrb[0].mxu0
      %797 = vmatprep.mubr.f32.mxu0 %v237
      %798 = vmatmul.mubr.f32.gmra.mrb[0].mxu0 %v236
      %v799 = vpop.f32.mrb[0].mxu0
      %v800 = vadd.f32 %v575, %v799
      %v801 = vpop.f32.mrb[0].mxu0
      %802 = vmatprep.mubr.f32.mxu0 %v243
      %803 = vmatmul.mubr.f32.gmra.mrb[0].mxu0 %v242
      %v804 = vpop.f32.mrb[0].mxu0
      %v805 = vadd.f32 %v580, %v804
      %v806 = vpop.f32.mrb[0].mxu0
      %807 = vmatprep.mubr.f32.mxu0 %v249
      %808 = vmatmul.mubr.f32.gmra.mrb[0].mxu0 %v248
      %v809 = vpop.f32.mrb[0].mxu0
      %v810 = vadd.f32 %v585, %v809
      %v811 = vpop.f32.mrb[0].mxu0
      %812 = vmatprep.mubr.f32.mxu0 %v255
      %813 = vmatmul.mubr.f32.gmra.mrb[0].mxu0 %v254
      %v814 = vpop.f32.mrb[0].mxu0
      %v815 = vadd.f32 %v590, %v814
      %v816 = vpop.f32.mrb[0].mxu0
      %817 = vmatprep.mubr.f32.mxu0 %v261
      %818 = vmatmul.mubr.f32.gmra.mrb[0].mxu0 %v260
      %v819 = vpop.f32.mrb[0].mxu0
      %v820 = vadd.f32 %v595, %v819
      %v821 = vpop.f32.mrb[0].mxu0
      %822 = vmatprep.mubr.f32.mxu0 %v267
      %823 = vmatmul.mubr.f32.gmra.mrb[0].mxu0 %v266
      %v824 = vpop.f32.mrb[0].mxu0
      %v825 = vadd.f32 %v600, %v824
      %v826 = vpop.f32.mrb[0].mxu0
      %827 = vmatprep.mubr.f32.mxu0 %v273
      %828 = vmatmul.mubr.f32.gmra.mrb[0].mxu0 %v272
      %v829 = vpop.f32.mrb[0].mxu0
      %v830 = vadd.f32 %v605, %v829
      %v831 = vpop.f32.mrb[0].mxu0
      %832 = vmatprep.mubr.f32.mxu0 %v279
      %833 = vmatmul.mubr.f32.gmra.mrb[0].mxu0 %v278
      %v834 = vpop.f32.mrb[0].mxu0
      %v835 = vadd.f32 %v610, %v834
      %v836 = vpop.f32.mrb[0].mxu0
      %837 = vmatprep.mubr.f32.mxu0 %v285
      %838 = vmatmul.mubr.f32.gmra.mrb[0].mxu0 %v284
      %v839 = vpop.f32.mrb[0].mxu0
      %v840 = vadd.f32 %v615, %v839
      %v841 = vpop.f32.mrb[0].mxu0
      %842 = vmatprep.mubr.f32.mxu0 %v291
      %843 = vmatmul.mubr.f32.gmra.mrb[0].mxu0 %v290
      %v844 = vpop.f32.mrb[0].mxu0
      %v845 = vadd.f32 %v620, %v844
      %v846 = vpop.f32.mrb[0].mxu0
      %847 = vmatprep.mubr.f32.mxu0 %v297
      %848 = vmatmul.mubr.f32.gmra.mrb[0].mxu0 %v296
      %v849 = vpop.f32.mrb[0].mxu0
      %v850 = vadd.f32 %v625, %v849
      %v851 = vpop.f32.mrb[0].mxu0
      %852 = vmatprep.mubr.f32.mxu0 %v303
      %853 = vmatmul.mubr.f32.gmra.mrb[0].mxu0 %v302
      %v854 = vpop.f32.mrb[0].mxu0
      %v855 = vadd.f32 %v630, %v854
      %v856 = vpop.f32.mrb[0].mxu0
      %857 = vmatprep.mubr.f32.mxu0 %v309
      %858 = vmatmul.mubr.f32.gmra.mrb[0].mxu0 %v308
      %v859 = vpop.f32.mrb[0].mxu0
      %v860 = vadd.f32 %v635, %v859
      %v861 = vpop.f32.mrb[0].mxu0
      %862 = vmatprep.mubr.f32.mxu0 %v315
      %863 = vmatmul.mubr.f32.gmra.mrb[0].mxu0 %v314
      %v864 = vpop.f32.mrb[0].mxu0
      %v865 = vadd.f32 %v640, %v864
      %v866 = vpop.f32.mrb[0].mxu0
      %867 = vmatprep.mubr.f32.mxu0 %v321
      %868 = vmatmul.mubr.f32.gmra.mrb[0].mxu0 %v320
      %v869 = vpop.f32.mrb[0].mxu0
      %v870 = vadd.f32 %v645, %v869
      %v871 = vpop.f32.mrb[0].mxu0
      %872 = vmatprep.mubr.f32.mxu0 %v327
      %873 = vmatmul.mubr.f32.gmra.mrb[0].mxu0 %v326
      %v874 = vpop.f32.mrb[0].mxu0
      %v875 = vadd.f32 %v650, %v874
      %v876 = vpop.f32.mrb[0].mxu0
      %877 = vmatprep.mubr.f32.mxu0 %v333
      %878 = vmatmul.mubr.f32.gmra.mrb[0].mxu0 %v332
      %v879 = vpop.f32.mrb[0].mxu0
      %v880 = vadd.f32 %v655, %v879
      %v881 = vpop.f32.mrb[0].mxu0
      %882 = vmatprep.mubr.f32.mxu0 %v339
      %883 = vmatmul.mubr.f32.gmra.mrb[0].mxu0 %v338
      %v884 = vpop.f32.mrb[0].mxu0
      %v885 = vadd.f32 %v660, %v884
      %v886 = vpop.f32.mrb[0].mxu0
      %887 = vdwg.mxu0
      %888 = vmatprep.subr.mxu0 0.0
      %889 = vmatpush1.msra.mxu0 %v406
      %890 = vmatprep.subr.mxu0 0.0
      %891 = vmatpush1.msra.mxu0 %v407
      %892 = vmatprep.subr.mxu0 0.0
      %893 = vmatpush1.msra.mxu0 %v408
      %894 = vmatprep.subr.mxu0 0.0
      %895 = vmatpush1.msra.mxu0 %v409
      %896 = vmatprep.subr.mxu0 0.0
      %897 = vmatpush1.msra.mxu0 %v410
      %898 = vmatprep.subr.mxu0 0.0
      %899 = vmatpush1.msra.mxu0 %v411
      %900 = vmatprep.subr.mxu0 0.0
      %901 = vmatpush1.msra.mxu0 %v412
      %902 = vmatprep.subr.mxu0 0.0
      %903 = vmatpush1.msra.mxu0 %v413
      %904 = vmatprep.subr.mxu0 0.0
      %905 = vmatpush1.msra.mxu0 %v414
      %906 = vmatprep.subr.mxu0 0.0
      %907 = vmatpush1.msra.mxu0 %v415
      %908 = vmatprep.subr.mxu0 0.0
      %909 = vmatpush1.msra.mxu0 %v416
      %910 = vmatprep.subr.mxu0 0.0
      %911 = vmatpush1.msra.mxu0 %v417
      %912 = vmatprep.subr.mxu0 0.0
      %913 = vmatpush1.msra.mxu0 %v418
      %914 = vmatprep.subr.mxu0 0.0
      %915 = vmatpush1.msra.mxu0 %v419
      %916 = vmatprep.subr.mxu0 0.0
      %917 = vmatpush1.msra.mxu0 %v420
      %918 = vmatprep.subr.mxu0 0.0
      %919 = vmatpush1.msra.mxu0 %v421
      %920 = vmatprep.subr.mxu0 0.0
      %921 = vmatpush1.msra.mxu0 %v422
      %922 = vmatprep.subr.mxu0 0.0
      %923 = vmatpush1.msra.mxu0 %v423
      %924 = vmatprep.subr.mxu0 0.0
      %925 = vmatpush1.msra.mxu0 %v424
      %926 = vmatprep.subr.mxu0 0.0
      %927 = vmatpush1.msra.mxu0 %v425
      %928 = vmatprep.subr.mxu0 0.0
      %929 = vmatpush1.msra.mxu0 %v426
      %930 = vmatprep.subr.mxu0 0.0
      %931 = vmatpush1.msra.mxu0 %v427
      %932 = vmatprep.subr.mxu0 0.0
      %933 = vmatpush1.msra.mxu0 %v428
      %934 = vmatprep.subr.mxu0 0.0
      %935 = vmatpush1.msra.mxu0 %v429
      %936 = vmatprep.subr.mxu0 0.0
      %937 = vmatpush1.msra.mxu0 %v430
      %938 = vmatprep.subr.mxu0 0.0
      %939 = vmatpush1.msra.mxu0 %v431
      %940 = vmatprep.subr.mxu0 0.0
      %941 = vmatpush1.msra.mxu0 %v432
      %942 = vmatprep.subr.mxu0 0.0
      %943 = vmatpush1.msra.mxu0 %v433
      %944 = vmatprep.subr.mxu0 0.0
      %945 = vmatpush1.msra.mxu0 %v434
      %946 = vmatprep.subr.mxu0 0.0
      %947 = vmatpush1.msra.mxu0 %v435
      %948 = vmatprep.subr.mxu0 0.0
      %949 = vmatpush1.msra.mxu0 %v436
      %950 = vmatprep.subr.mxu0 0.0
      %951 = vmatpush1.msra.mxu0 %v437
      %952 = vmatprep.mubr.f32.mxu0 %v155
      %953 = vmatmul.mubr.f32.gmra.mrb[0].mxu0 %v154
      %v954 = vpop.f32.mrb[0].mxu0
      %v955 = vadd.f32 %v730, %v954
      %v956 = vpop.f32.mrb[0].mxu0
      %957 = vmatprep.mubr.f32.mxu0 %v161
      %958 = vmatmul.mubr.f32.gmra.mrb[0].mxu0 %v160
      %v959 = vpop.f32.mrb[0].mxu0
      %v960 = vadd.f32 %v735, %v959
      %v961 = vpop.f32.mrb[0].mxu0
      %962 = vmatprep.mubr.f32.mxu0 %v167
      %963 = vmatmul.mubr.f32.gmra.mrb[0].mxu0 %v166
      %v964 = vpop.f32.mrb[0].mxu0
      %v965 = vadd.f32 %v740, %v964
      %v966 = vpop.f32.mrb[0].mxu0
      %967 = vmatprep.mubr.f32.mxu0 %v173
      %968 = vmatmul.mubr.f32.gmra.mrb[0].mxu0 %v172
      %v969 = vpop.f32.mrb[0].mxu0
      %v970 = vadd.f32 %v745, %v969
      %v971 = vpop.f32.mrb[0].mxu0
      %972 = vmatprep.mubr.f32.mxu0 %v179
      %973 = vmatmul.mubr.f32.gmra.mrb[0].mxu0 %v178
      %v974 = vpop.f32.mrb[0].mxu0
      %v975 = vadd.f32 %v750, %v974
      %v976 = vpop.f32.mrb[0].mxu0
      %977 = vmatprep.mubr.f32.mxu0 %v185
      %978 = vmatmul.mubr.f32.gmra.mrb[0].mxu0 %v184
      %v979 = vpop.f32.mrb[0].mxu0
      %v980 = vadd.f32 %v755, %v979
      %v981 = vpop.f32.mrb[0].mxu0
      %982 = vmatprep.mubr.f32.mxu0 %v191
      %983 = vmatmul.mubr.f32.gmra.mrb[0].mxu0 %v190
      %v984 = vpop.f32.mrb[0].mxu0
      %v985 = vadd.f32 %v760, %v984
      %v986 = vpop.f32.mrb[0].mxu0
      %987 = vmatprep.mubr.f32.mxu0 %v197
      %988 = vmatmul.mubr.f32.gmra.mrb[0].mxu0 %v196
      %v989 = vpop.f32.mrb[0].mxu0
      %v990 = vadd.f32 %v765, %v989
      %v991 = vpop.f32.mrb[0].mxu0
      %992 = vmatprep.mubr.f32.mxu0 %v203
      %993 = vmatmul.mubr.f32.gmra.mrb[0].mxu0 %v202
      %v994 = vpop.f32.mrb[0].mxu0
      %v995 = vadd.f32 %v770, %v994
      %v996 = vpop.f32.mrb[0].mxu0
      %997 = vmatprep.mubr.f32.mxu0 %v209
      %998 = vmatmul.mubr.f32.gmra.mrb[0].mxu0 %v208
      %v999 = vpop.f32.mrb[0].mxu0
      %v1000 = vadd.f32 %v775, %v999
      %v1001 = vpop.f32.mrb[0].mxu0
      %1002 = vmatprep.mubr.f32.mxu0 %v215
      %1003 = vmatmul.mubr.f32.gmra.mrb[0].mxu0 %v214
      %v1004 = vpop.f32.mrb[0].mxu0
      %v1005 = vadd.f32 %v780, %v1004
      %v1006 = vpop.f32.mrb[0].mxu0
      %1007 = vmatprep.mubr.f32.mxu0 %v221
      %1008 = vmatmul.mubr.f32.gmra.mrb[0].mxu0 %v220
      %v1009 = vpop.f32.mrb[0].mxu0
      %v1010 = vadd.f32 %v785, %v1009
      %v1011 = vpop.f32.mrb[0].mxu0
      %1012 = vmatprep.mubr.f32.mxu0 %v227
      %1013 = vmatmul.mubr.f32.gmra.mrb[0].mxu0 %v226
      %v1014 = vpop.f32.mrb[0].mxu0
      %v1015 = vadd.f32 %v790, %v1014
      %v1016 = vpop.f32.mrb[0].mxu0
      %1017 = vmatprep.mubr.f32.mxu0 %v233
      %1018 = vmatmul.mubr.f32.gmra.mrb[0].mxu0 %v232
      %v1019 = vpop.f32.mrb[0].mxu0
      %v1020 = vadd.f32 %v795, %v1019
      %v1021 = vpop.f32.mrb[0].mxu0
      %1022 = vmatprep.mubr.f32.mxu0 %v239
      %1023 = vmatmul.mubr.f32.gmra.mrb[0].mxu0 %v238
      %v1024 = vpop.f32.mrb[0].mxu0
      %v1025 = vadd.f32 %v800, %v1024
      %v1026 = vpop.f32.mrb[0].mxu0
      %1027 = vmatprep.mubr.f32.mxu0 %v245
      %1028 = vmatmul.mubr.f32.gmra.mrb[0].mxu0 %v244
      %v1029 = vpop.f32.mrb[0].mxu0
      %v1030 = vadd.f32 %v805, %v1029
      %v1031 = vpop.f32.mrb[0].mxu0
      %1032 = vmatprep.mubr.f32.mxu0 %v251
      %1033 = vmatmul.mubr.f32.gmra.mrb[0].mxu0 %v250
      %v1034 = vpop.f32.mrb[0].mxu0
      %v1035 = vadd.f32 %v810, %v1034
      %v1036 = vpop.f32.mrb[0].mxu0
      %1037 = vmatprep.mubr.f32.mxu0 %v257
      %1038 = vmatmul.mubr.f32.gmra.mrb[0].mxu0 %v256
      %v1039 = vpop.f32.mrb[0].mxu0
      %v1040 = vadd.f32 %v815, %v1039
      %v1041 = vpop.f32.mrb[0].mxu0
      %1042 = vmatprep.mubr.f32.mxu0 %v263
      %1043 = vmatmul.mubr.f32.gmra.mrb[0].mxu0 %v262
      %v1044 = vpop.f32.mrb[0].mxu0
      %v1045 = vadd.f32 %v820, %v1044
      %v1046 = vpop.f32.mrb[0].mxu0
      %1047 = vmatprep.mubr.f32.mxu0 %v269
      %1048 = vmatmul.mubr.f32.gmra.mrb[0].mxu0 %v268
      %v1049 = vpop.f32.mrb[0].mxu0
      %v1050 = vadd.f32 %v825, %v1049
      %v1051 = vpop.f32.mrb[0].mxu0
      %1052 = vmatprep.mubr.f32.mxu0 %v275
      %1053 = vmatmul.mubr.f32.gmra.mrb[0].mxu0 %v274
      %v1054 = vpop.f32.mrb[0].mxu0
      %v1055 = vadd.f32 %v830, %v1054
      %v1056 = vpop.f32.mrb[0].mxu0
      %1057 = vmatprep.mubr.f32.mxu0 %v281
      %1058 = vmatmul.mubr.f32.gmra.mrb[0].mxu0 %v280
      %v1059 = vpop.f32.mrb[0].mxu0
      %v1060 = vadd.f32 %v835, %v1059
      %v1061 = vpop.f32.mrb[0].mxu0
      %1062 = vmatprep.mubr.f32.mxu0 %v287
      %1063 = vmatmul.mubr.f32.gmra.mrb[0].mxu0 %v286
      %v1064 = vpop.f32.mrb[0].mxu0
      %v1065 = vadd.f32 %v840, %v1064
      %v1066 = vpop.f32.mrb[0].mxu0
      %1067 = vmatprep.mubr.f32.mxu0 %v293
      %1068 = vmatmul.mubr.f32.gmra.mrb[0].mxu0 %v292
      %v1069 = vpop.f32.mrb[0].mxu0
      %v1070 = vadd.f32 %v845, %v1069
      %v1071 = vpop.f32.mrb[0].mxu0
      %1072 = vmatprep.mubr.f32.mxu0 %v299
      %1073 = vmatmul.mubr.f32.gmra.mrb[0].mxu0 %v298
      %v1074 = vpop.f32.mrb[0].mxu0
      %v1075 = vadd.f32 %v850, %v1074
      %v1076 = vpop.f32.mrb[0].mxu0
      %1077 = vmatprep.mubr.f32.mxu0 %v305
      %1078 = vmatmul.mubr.f32.gmra.mrb[0].mxu0 %v304
      %v1079 = vpop.f32.mrb[0].mxu0
      %v1080 = vadd.f32 %v855, %v1079
      %v1081 = vpop.f32.mrb[0].mxu0
      %1082 = vmatprep.mubr.f32.mxu0 %v311
      %1083 = vmatmul.mubr.f32.gmra.mrb[0].mxu0 %v310
      %v1084 = vpop.f32.mrb[0].mxu0
      %v1085 = vadd.f32 %v860, %v1084
      %v1086 = vpop.f32.mrb[0].mxu0
      %1087 = vmatprep.mubr.f32.mxu0 %v317
      %1088 = vmatmul.mubr.f32.gmra.mrb[0].mxu0 %v316
      %v1089 = vpop.f32.mrb[0].mxu0
      %v1090 = vadd.f32 %v865, %v1089
      %v1091 = vpop.f32.mrb[0].mxu0
      %1092 = vmatprep.mubr.f32.mxu0 %v323
      %1093 = vmatmul.mubr.f32.gmra.mrb[0].mxu0 %v322
      %v1094 = vpop.f32.mrb[0].mxu0
      %v1095 = vadd.f32 %v870, %v1094
      %v1096 = vpop.f32.mrb[0].mxu0
      %1097 = vmatprep.mubr.f32.mxu0 %v329
      %1098 = vmatmul.mubr.f32.gmra.mrb[0].mxu0 %v328
      %v1099 = vpop.f32.mrb[0].mxu0
      %v1100 = vadd.f32 %v875, %v1099
      %v1101 = vpop.f32.mrb[0].mxu0
      %1102 = vmatprep.mubr.f32.mxu0 %v335
      %1103 = vmatmul.mubr.f32.gmra.mrb[0].mxu0 %v334
      %v1104 = vpop.f32.mrb[0].mxu0
      %v1105 = vadd.f32 %v880, %v1104
      %v1106 = vpop.f32.mrb[0].mxu0
      %1107 = vmatprep.mubr.f32.mxu0 %v341
      %1108 = vmatmul.mubr.f32.gmra.mrb[0].mxu0 %v340
      %v1109 = vpop.f32.mrb[0].mxu0
      %v1110 = vadd.f32 %v885, %v1109
      %v1111 = vpop.f32.mrb[0].mxu0
      %1112 = vdwg.mxu0
      %v1113 = vmax.f32 %v955, 0.0
      %v1114 = vmax.f32 %v960, 0.0
      %v1115 = vmax.f32 %v965, 0.0
      %v1116 = vmax.f32 %v970, 0.0
      %v1117 = vmax.f32 %v975, 0.0
      %v1118 = vmax.f32 %v980, 0.0
      %v1119 = vmax.f32 %v985, 0.0
      %v1120 = vmax.f32 %v990, 0.0
      %v1121 = vmax.f32 %v995, 0.0
      %v1122 = vmax.f32 %v1000, 0.0
      %v1123 = vmax.f32 %v1005, 0.0
      %v1124 = vmax.f32 %v1010, 0.0
      %v1125 = vmax.f32 %v1015, 0.0
      %v1126 = vmax.f32 %v1020, 0.0
      %v1127 = vmax.f32 %v1025, 0.0
      %v1128 = vmax.f32 %v1030, 0.0
      %v1129 = vmax.f32 %v1035, 0.0
      %v1130 = vmax.f32 %v1040, 0.0
      %v1131 = vmax.f32 %v1045, 0.0
      %v1132 = vmax.f32 %v1050, 0.0
      %v1133 = vmax.f32 %v1055, 0.0
      %v1134 = vmax.f32 %v1060, 0.0
      %v1135 = vmax.f32 %v1065, 0.0
      %v1136 = vmax.f32 %v1070, 0.0
      %v1137 = vmax.f32 %v1075, 0.0
      %v1138 = vmax.f32 %v1080, 0.0
      %v1139 = vmax.f32 %v1085, 0.0
      %v1140 = vmax.f32 %v1090, 0.0
      %v1141 = vmax.f32 %v1095, 0.0
      %v1142 = vmax.f32 %v1100, 0.0
      %v1143 = vmax.f32 %v1105, 0.0
      %v1144 = vmax.f32 %v1110, 0.0
      %1145 = vst [vmem:[%s148] sm:$0xff] %v1113
      %1146 = vst [vmem:[%s148 + $0x8] sm:$0xff] %v1114
      %1147 = vst [vmem:[%s148 + $0x10] sm:$0xff] %v1115
      %1148 = vst [vmem:[%s148 + $0x18] sm:$0xff] %v1116
      %1149 = vst [vmem:[%s148 + $0x20] sm:$0xff] %v1117
      %1150 = vst [vmem:[%s148 + $0x28] sm:$0xff] %v1118
      %1151 = vst [vmem:[%s148 + $0x30] sm:$0xff] %v1119
      %1152 = vst [vmem:[%s148 + $0x38] sm:$0xff] %v1120
      %1153 = vst [vmem:[%s148 + $0x40] sm:$0xff] %v1121
      %1154 = vst [vmem:[%s148 + $0x48] sm:$0xff] %v1122
      %1155 = vst [vmem:[%s148 + $0x50] sm:$0xff] %v1123
      %1156 = vst [vmem:[%s148 + $0x58] sm:$0xff] %v1124
      %1157 = vst [vmem:[%s148 + $0x60] sm:$0xff] %v1125
      %1158 = vst [vmem:[%s148 + $0x68] sm:$0xff] %v1126
      %1159 = vst [vmem:[%s148 + $0x70] sm:$0xff] %v1127
      %1160 = vst [vmem:[%s148 + $0x78] sm:$0xff] %v1128
      %1161 = vst [vmem:[%s148 + $0x80] sm:$0xff] %v1129
      %1162 = vst [vmem:[%s148 + $0x88] sm:$0xff] %v1130
      %1163 = vst [vmem:[%s148 + $0x90] sm:$0xff] %v1131
      %1164 = vst [vmem:[%s148 + $0x98] sm:$0xff] %v1132
      %1165 = vst [vmem:[%s148 + $0xa0] sm:$0xff] %v1133
      %1166 = vst [vmem:[%s148 + $0xa8] sm:$0xff] %v1134
      %1167 = vst [vmem:[%s148 + $0xb0] sm:$0xff] %v1135
      %1168 = vst [vmem:[%s148 + $0xb8] sm:$0xff] %v1136
      %1169 = vst [vmem:[%s148 + $0xc0] sm:$0xff] %v1137
      %1170 = vst [vmem:[%s148 + $0xc8] sm:$0xff] %v1138
      %1171 = vst [vmem:[%s148 + $0xd0] sm:$0xff] %v1139
      %1172 = vst [vmem:[%s148 + $0xd8] sm:$0xff] %v1140
      %1173 = vst [vmem:[%s148 + $0xe0] sm:$0xff] %v1141
      %1174 = vst [vmem:[%s148 + $0xe8] sm:$0xff] %v1142
      %1175 = vst [vmem:[%s148 + $0xf0] sm:$0xff] %v1143
      %1176 = vst [vmem:[%s148 + $0xf8] sm:$0xff] %v1144
      %s1177 = smul.u32 32, %s13
      %p1178 = scmp.lt.s32.totalorder %s1177, 95
      %s1179 = scalar_select %p1178, %s1177, 95
      %s1180 = smul.addr %s1179, 8
      %s1181 = scalar_lea.vmem %s2, %s1180
      // Predicated region
      $region29: #{gae_forward.3} parent=27 // pred_check
        %p1182 = pneg %p78
      $region30: #{gae_forward.3} parent=27 // pred_check_branch
        %1184 = sbr.rel (%p1182) target = $region32
      $region31: #{gae_forward.3} parent=27 // pred_region
        %s1185 = smul.u32 32, %s13
      $region32: #{gae_forward.3} parent=27 // pred_fallthru
        _
    $region28: #{gae_forward.3} parent=5 // pred_fallthru
      _
    %p1186 = scmp.le.s32.totalorder 2, %s8
    // Predicated region
    $region33: #{gae_forward.3} parent=5 // pred_check
      %p1187 = pneg %p1186
    $region34: #{gae_forward.3} parent=5 // pred_check_branch
      %1189 = sbr.rel (%p1187) target = $region36
    $region35: #{gae_forward.3} parent=5 // pred_region
      %s1190 = ssub.s32 %s8, 2
      // Predicated region
      $region37: #{gae_forward.3} parent=35 // pred_check
        %p1191 = pneg %p84
      $region38: #{gae_forward.3} parent=35 // pred_check_branch
        %1193 = sbr.rel (%p1191) target = $region40
      $region39: #{gae_forward.3} parent=35 // pred_region
        %s1194 = smul.u32 32, %s14
        %p1195 = scmp.lt.s32.totalorder %s1194, 95
        %s1196 = scalar_select %p1195, %s1194, 95
        %s1197 = smul.addr %s1196, 8
        %s1198 = scalar_lea.vmem %s2, %s1197
      $region40: #{gae_forward.3} parent=35 // pred_fallthru
        _
    $region36: #{gae_forward.3} parent=5 // pred_fallthru
      _
  $region6: #{gae_forward.3} parent=0 // loop_footer
    %s12 = sadd.s32 1, %s8
  $region7: #{gae_forward.3} parent=0 // loop_footer_branch
    %7 = sbr.rel target = $region3
  $region8: #{gae_forward.3} parent=0 // loop_exit
    _

// kernel: gae_forward.4
$region0: #{gae_forward.4}
  #allocation0 [shape = 'u32[]', space=smem, size = 0x4, offset = 0x4, fixed_abs, tag = 'smem constant byte address 0x4 - core index']
  #allocation1 [shape = 'u32[144,128]{1,0:T(1,128)}', space=vmem, size = 0x12000, scoped, tag = 'internal scratch']
  %s0 = inlined_call_operand.vmem [shape: f32[768,768], index: 0, kind: input, shape index: {}]
  %s1 = inlined_call_operand.vmem [shape: f32[768,128], index: 1, kind: input, shape index: {}]
  %s2 = inlined_call_operand.vmem [shape: f32[128,256], index: 2, kind: input, shape index: {}]
  %s3 = inlined_call_operand.vmem [shape: f32[768,128], index: 3, kind: output, shape index: {0}]
  %s4 = inlined_call_operand.vmem [shape: f32[768,128], index: 4, kind: output, shape index: {1}]
  %s5 = inlined_call_operand.vmem [shape: bf16[768,128], index: 5, kind: output, shape index: {2}]
  %6 = xla_tuple %s3, %s4, %s5
  %s7 = sld [smem:[#allocation0]]
  $region61: #{gae_forward.4} parent=0
    _
  %s9 = ssub.s32 1, %s7
  %s10 = scalar_select 0, %s9, %s7
  loop: start=0, step=1, limit=5
  $region2: #{gae_forward.4} parent=0 // loop_pre_header
    _
  $region3: #{gae_forward.4} parent=0 // loop_header
    %s12 = sphi 0, %s16
    %p13 = scmp.ge.s32.totalorder %s12, 5
    %s22 = sphi 0, %s24
    %s25 = sphi 0, %s22
    %s26 = sphi 0, %s25
    %s42 = sphi 0, %s26
    %s46 = sphi 0, %s46
    %s48 = sphi 0, %s46
    %s49 = sphi 0, %s48
    %s63 = sphi 0, %s49
    %s67 = sphi 0, %s67
    %s69 = sphi 0, %s67
    %s70 = sphi 0, %s69
    %s84 = sphi 0, %s70
    %s90 = sphi 0, %s92
    %s93 = sphi 0, %s90
    %s94 = sphi 0, %s93
    %s110 = sphi 0, %s94
    %s116 = sphi 0, %s118
    %s119 = sphi 0, %s116
    %s120 = sphi 0, %s119
    %s136 = sphi 0, %s120
    %s142 = sphi 0, %s144
    %s145 = sphi 0, %s142
    %s146 = sphi 0, %s145
    %s162 = sphi 0, %s146
  $region4: #{gae_forward.4} parent=0 // loop_header_branch
    %15 = sbr.rel (%p13) target = $region8
  $region5: #{gae_forward.4} parent=0 // loop_body
    %s17 = ssub.s32 %s12, 1
    %s18 = ssub.s32 %s12, 2
    %s19 = sadd.s32 %s12, 1
    %s20 = ssub.s32 %s12, %s19
    %p21 = scmp.eq.s32.totalorder %s20, 0
    %s23 = sadd.s32 %s22, 1
    %s24 = scalar_select %p21, %s22, %s23
    %p27 = pneg %p21
    %p28 = scmp.eq.s32.totalorder %s12, 2
    %p29 = por %p27, %p28
    %p30 = scmp.ne.s32.totalorder %s22, %s25
    %p31 = scmp.eq.s32.totalorder %s12, 0
    %p32 = por %p30, %p31
    %p33 = scmp.ne.s32.totalorder %s22, %s25
    %p34 = scmp.eq.s32.totalorder %s17, 2
    %p35 = por %p33, %p34
    %p36 = scmp.ne.s32.totalorder %s25, %s26
    %p37 = scmp.eq.s32.totalorder %s17, 0
    %p38 = por %p36, %p37
    %p39 = scmp.ne.s32.totalorder %s25, %s26
    %p40 = scmp.eq.s32.totalorder %s18, 2
    %p41 = por %p39, %p40
    %p43 = scmp.ne.s32.totalorder %s26, %s42
    %p44 = scmp.eq.s32.totalorder %s18, 0
    %p45 = por %p43, %p44
    %s47 = sadd.s32 %s46, 1
    %p50 = scmp.eq.s32.totalorder %s12, 2
    %p51 = scmp.ne.s32.totalorder %s46, %s48
    %p52 = scmp.eq.s32.totalorder %s12, 0
    %p53 = por %p51, %p52
    %p54 = scmp.ne.s32.totalorder %s46, %s48
    %p55 = scmp.eq.s32.totalorder %s17, 2
    %p56 = por %p54, %p55
    %p57 = scmp.ne.s32.totalorder %s48, %s49
    %p58 = scmp.eq.s32.totalorder %s17, 0
    %p59 = por %p57, %p58
    %p60 = scmp.ne.s32.totalorder %s48, %s49
    %p61 = scmp.eq.s32.totalorder %s18, 2
    %p62 = por %p60, %p61
    %p64 = scmp.ne.s32.totalorder %s49, %s63
    %p65 = scmp.eq.s32.totalorder %s18, 0
    %p66 = por %p64, %p65
    %s68 = sadd.s32 %s67, 1
    %p71 = scmp.eq.s32.totalorder %s12, 2
    %p72 = scmp.ne.s32.totalorder %s67, %s69
    %p73 = scmp.eq.s32.totalorder %s12, 0
    %p74 = por %p72, %p73
    %p75 = scmp.ne.s32.totalorder %s67, %s69
    %p76 = scmp.eq.s32.totalorder %s17, 2
    %p77 = por %p75, %p76
    %p78 = scmp.ne.s32.totalorder %s69, %s70
    %p79 = scmp.eq.s32.totalorder %s17, 0
    %p80 = por %p78, %p79
    %p81 = scmp.ne.s32.totalorder %s69, %s70
    %p82 = scmp.eq.s32.totalorder %s18, 2
    %p83 = por %p81, %p82
    %p85 = scmp.ne.s32.totalorder %s70, %s84
    %p86 = scmp.eq.s32.totalorder %s18, 0
    %p87 = por %p85, %p86
    %s88 = ssub.s32 %s12, %s19
    %p89 = scmp.eq.s32.totalorder %s88, 0
    %s91 = sadd.s32 %s90, 1
    %s92 = scalar_select %p89, %s90, %s91
    %p95 = pneg %p89
    %p96 = scmp.eq.s32.totalorder %s12, 2
    %p97 = por %p95, %p96
    %p98 = scmp.ne.s32.totalorder %s90, %s93
    %p99 = scmp.eq.s32.totalorder %s12, 0
    %p100 = por %p98, %p99
    %p101 = scmp.ne.s32.totalorder %s90, %s93
    %p102 = scmp.eq.s32.totalorder %s17, 2
    %p103 = por %p101, %p102
    %p104 = scmp.ne.s32.totalorder %s93, %s94
    %p105 = scmp.eq.s32.totalorder %s17, 0
    %p106 = por %p104, %p105
    %p107 = scmp.ne.s32.totalorder %s93, %s94
    %p108 = scmp.eq.s32.totalorder %s18, 2
    %p109 = por %p107, %p108
    %p111 = scmp.ne.s32.totalorder %s94, %s110
    %p112 = scmp.eq.s32.totalorder %s18, 0
    %p113 = por %p111, %p112
    %s114 = ssub.s32 %s12, %s19
    %p115 = scmp.eq.s32.totalorder %s114, 0
    %s117 = sadd.s32 %s116, 1
    %s118 = scalar_select %p115, %s116, %s117
    %p121 = pneg %p115
    %p122 = scmp.eq.s32.totalorder %s12, 2
    %p123 = por %p121, %p122
    %p124 = scmp.ne.s32.totalorder %s116, %s119
    %p125 = scmp.eq.s32.totalorder %s12, 0
    %p126 = por %p124, %p125
    %p127 = scmp.ne.s32.totalorder %s116, %s119
    %p128 = scmp.eq.s32.totalorder %s17, 2
    %p129 = por %p127, %p128
    %p130 = scmp.ne.s32.totalorder %s119, %s120
    %p131 = scmp.eq.s32.totalorder %s17, 0
    %p132 = por %p130, %p131
    %p133 = scmp.ne.s32.totalorder %s119, %s120
    %p134 = scmp.eq.s32.totalorder %s18, 2
    %p135 = por %p133, %p134
    %p137 = scmp.ne.s32.totalorder %s120, %s136
    %p138 = scmp.eq.s32.totalorder %s18, 0
    %p139 = por %p137, %p138
    %s140 = ssub.s32 %s12, %s19
    %p141 = scmp.eq.s32.totalorder %s140, 0
    %s143 = sadd.s32 %s142, 1
    %s144 = scalar_select %p141, %s142, %s143
    %p147 = pneg %p141
    %p148 = scmp.eq.s32.totalorder %s12, 2
    %p149 = por %p147, %p148
    %p150 = scmp.ne.s32.totalorder %s142, %s145
    %p151 = scmp.eq.s32.totalorder %s12, 0
    %p152 = por %p150, %p151
    %p153 = scmp.ne.s32.totalorder %s142, %s145
    %p154 = scmp.eq.s32.totalorder %s17, 2
    %p155 = por %p153, %p154
    %p156 = scmp.ne.s32.totalorder %s145, %s146
    %p157 = scmp.eq.s32.totalorder %s17, 0
    %p158 = por %p156, %p157
    %p159 = scmp.ne.s32.totalorder %s145, %s146
    %p160 = scmp.eq.s32.totalorder %s18, 2
    %p161 = por %p159, %p160
    %p163 = scmp.ne.s32.totalorder %s146, %s162
    %p164 = scmp.eq.s32.totalorder %s18, 0
    %p165 = por %p163, %p164
    %p166 = scmp.le.s32.totalorder 1, %s12
    %p167 = scmp.lt.s32.totalorder %s12, 4
    %p168 = pnand %p166, %p167
    %p169 = pneg %p168
    // Predicated region
    $region9: #{gae_forward.4} parent=5 // pred_check
      _
    $region10: #{gae_forward.4} parent=5 // pred_check_branch
      %171 = sbr.rel (%p168) target = $region12
    $region11: #{gae_forward.4} parent=5 // pred_region
      %s172 = ssub.s32 %s12, 1
      // Predicated region
      $region13: #{gae_forward.4} parent=11 // pred_check
        %p173 = pneg %p59
      $region14: #{gae_forward.4} parent=11 // pred_check_branch
        %175 = sbr.rel (%p173) target = $region16
      $region15: #{gae_forward.4} parent=11 // pred_region
        _
      $region16: #{gae_forward.4} parent=11 // pred_fallthru
        _
      // Predicated region
      $region17: #{gae_forward.4} parent=11 // pred_check
        %p176 = pneg %p80
      $region18: #{gae_forward.4} parent=11 // pred_check_branch
        %178 = sbr.rel (%p176) target = $region20
      $region19: #{gae_forward.4} parent=11 // pred_region
        _
      $region20: #{gae_forward.4} parent=11 // pred_fallthru
        _
    $region12: #{gae_forward.4} parent=5 // pred_fallthru
      _
    %p179 = scmp.lt.s32.totalorder %s12, 3
    // Predicated region
    $region21: #{gae_forward.4} parent=5 // pred_check
      %p180 = pneg %p179
    $region22: #{gae_forward.4} parent=5 // pred_check_branch
      %182 = sbr.rel (%p180) target = $region24
    $region23: #{gae_forward.4} parent=5 // pred_region
      // Predicated region
      $region25: #{gae_forward.4} parent=23 // pred_check
        %p183 = pneg %p32
      $region26: #{gae_forward.4} parent=23 // pred_check_branch
        %185 = sbr.rel (%p183) target = $region28
      $region27: #{gae_forward.4} parent=23 // pred_region
        %s186 = smul.u32 32, %s12
        %p187 = scmp.lt.s32.totalorder %s186, 95
        %s188 = scalar_select %p187, %s186, 95
        %s189 = smul.addr %s188, 6
        %s190 = smul.addr %s189, 8
        %s191 = scalar_lea.vmem %s0, %s190
        %s192 = smul.u32 32, %s12
      $region28: #{gae_forward.4} parent=23 // pred_fallthru
        _
    $region24: #{gae_forward.4} parent=5 // pred_fallthru
      _
    %p193 = scmp.le.s32.totalorder 1, %s12
    %p194 = scmp.lt.s32.totalorder %s12, 4
    %p195 = pnand %p193, %p194
    %p196 = pneg %p195
    // Predicated region
    $region29: #{gae_forward.4} parent=5 // pred_check
      _
    $region30: #{gae_forward.4} parent=5 // pred_check_branch
      %198 = sbr.rel (%p195) target = $region32
    $region31: #{gae_forward.4} parent=5 // pred_region
      %s199 = ssub.s32 %s12, 1
      %s200 = smul.u32 32, %s17
      %p201 = scmp.lt.s32.totalorder %s200, 95
      %s202 = scalar_select %p201, %s200, 95
      %s203 = smul.addr %s202, 6
      %s204 = smul.addr %s203, 8
      %s205 = scalar_lea.vmem %s0, %s204
      %p206 = pneg %p38
      %p207 = pneg %p35
      %p208 = pneg %p59
      %p209 = pneg %p56
      %p210 = pneg %p80
      %p211 = pneg %p77
      %p212 = pneg %p106
      %p213 = pneg %p103
      %s214 = smul.u32 32, %s17
      %p215 = scmp.lt.s32.totalorder %s214, 95
      %s216 = scalar_select %p215, %s214, 95
      %s217 = smul.addr %s216, 8
      %s218 = scalar_lea.vmem %s3, %s217
      %p219 = pneg %p132
      %p220 = pneg %p129
      %s221 = smul.u32 32, %s17
      %p222 = scmp.lt.s32.totalorder %s221, 95
      %s223 = scalar_select %p222, %s221, 95
      %s224 = smul.addr %s223, 8
      %s225 = scalar_lea.vmem %s4, %s224
      %p226 = pneg %p158
      %p227 = pneg %p155
      %s228 = smul.u32 32, %s17
      %p229 = scmp.lt.s32.totalorder %s228, 95
      %s230 = scalar_select %p229, %s228, 95
      %s231 = smul.addr %s230, 4
      %s232 = scalar_lea.vmem %s5, %s231
      %s233 = smul.u32 32, %s17
      %p234 = scmp.lt.s32.totalorder %s233, 95
      %s235 = scalar_select %p234, %s233, 95
      %s236 = smul.addr %s235, 6
      %s237 = smul.addr %s236, 8
      %s238 = scalar_lea.vmem %s0, %s237
      %s239 = smul.u32 32, %s17
      %s240 = smul.u32 32, %s17
      %p241 = scmp.lt.s32.totalorder %s240, 95
      %s242 = scalar_select %p241, %s240, 95
      %s243 = smul.addr %s242, 8
      %s244 = scalar_lea.vmem %s3, %s243
      %s245 = smul.u32 32, %s17
      %s246 = smul.u32 32, %s17
      %p247 = scmp.lt.s32.totalorder %s246, 95
      %s248 = scalar_select %p247, %s246, 95
      %s249 = smul.addr %s248, 8
      %s250 = scalar_lea.vmem %s4, %s249
      %s251 = smul.u32 32, %s17
      %s252 = smul.u32 32, %s17
      %p253 = scmp.lt.s32.totalorder %s252, 95
      %s254 = scalar_select %p253, %s252, 95
      %s255 = smul.addr %s254, 4
      %s256 = scalar_lea.vmem %s5, %s255
      %s257 = smul.u32 32, %s17
      %v258 = vld [vmem:[%s238] sm:$0xff]
      %v259 = vld [vmem:[%s238 + $0x8] sm:$0xff]
      %v260 = vld [vmem:[%s238 + $0x10] sm:$0xff]
      %v261 = vld [vmem:[%s238 + $0x18] sm:$0xff]
      %v262 = vld [vmem:[%s238 + $0x20] sm:$0xff]
      %v263 = vld [vmem:[%s238 + $0x28] sm:$0xff]
      %v264 = vld [vmem:[%s238 + $0x30] sm:$0xff]
      %v265 = vld [vmem:[%s238 + $0x38] sm:$0xff]
      %v266 = vld [vmem:[%s238 + $0x40] sm:$0xff]
      %v267 = vld [vmem:[%s238 + $0x48] sm:$0xff]
      %v268 = vld [vmem:[%s238 + $0x50] sm:$0xff]
      %v269 = vld [vmem:[%s238 + $0x58] sm:$0xff]
      %v270 = vld [vmem:[%s238 + $0x60] sm:$0xff]
      %v271 = vld [vmem:[%s238 + $0x68] sm:$0xff]
      %v272 = vld [vmem:[%s238 + $0x70] sm:$0xff]
      %v273 = vld [vmem:[%s238 + $0x78] sm:$0xff]
      %v274 = vld [vmem:[%s238 + $0x80] sm:$0xff]
      %v275 = vld [vmem:[%s238 + $0x88] sm:$0xff]
      %v276 = vld [vmem:[%s238 + $0x90] sm:$0xff]
      %v277 = vld [vmem:[%s238 + $0x98] sm:$0xff]
      %v278 = vld [vmem:[%s238 + $0xa0] sm:$0xff]
      %v279 = vld [vmem:[%s238 + $0xa8] sm:$0xff]
      %v280 = vld [vmem:[%s238 + $0xb0] sm:$0xff]
      %v281 = vld [vmem:[%s238 + $0xb8] sm:$0xff]
      %v282 = vld [vmem:[%s238 + $0xc0] sm:$0xff]
      %v283 = vld [vmem:[%s238 + $0xc8] sm:$0xff]
      %v284 = vld [vmem:[%s238 + $0xd0] sm:$0xff]
      %v285 = vld [vmem:[%s238 + $0xd8] sm:$0xff]
      %v286 = vld [vmem:[%s238 + $0xe0] sm:$0xff]
      %v287 = vld [vmem:[%s238 + $0xe8] sm:$0xff]
      %v288 = vld [vmem:[%s238 + $0xf0] sm:$0xff]
      %v289 = vld [vmem:[%s238 + $0xf8] sm:$0xff]
      %v290 = vld [vmem:[%s238 + $0x100] sm:$0xff]
      %v291 = vld [vmem:[%s238 + $0x108] sm:$0xff]
      %v292 = vld [vmem:[%s238 + $0x110] sm:$0xff]
      %v293 = vld [vmem:[%s238 + $0x118] sm:$0xff]
      %v294 = vld [vmem:[%s238 + $0x120] sm:$0xff]
      %v295 = vld [vmem:[%s238 + $0x128] sm:$0xff]
      %v296 = vld [vmem:[%s238 + $0x130] sm:$0xff]
      %v297 = vld [vmem:[%s238 + $0x138] sm:$0xff]
      %v298 = vld [vmem:[%s238 + $0x140] sm:$0xff]
      %v299 = vld [vmem:[%s238 + $0x148] sm:$0xff]
      %v300 = vld [vmem:[%s238 + $0x150] sm:$0xff]
      %v301 = vld [vmem:[%s238 + $0x158] sm:$0xff]
      %v302 = vld [vmem:[%s238 + $0x160] sm:$0xff]
      %v303 = vld [vmem:[%s238 + $0x168] sm:$0xff]
      %v304 = vld [vmem:[%s238 + $0x170] sm:$0xff]
      %v305 = vld [vmem:[%s238 + $0x178] sm:$0xff]
      %v306 = vld [vmem:[%s238 + $0x180] sm:$0xff]
      %v307 = vld [vmem:[%s238 + $0x188] sm:$0xff]
      %v308 = vld [vmem:[%s238 + $0x190] sm:$0xff]
      %v309 = vld [vmem:[%s238 + $0x198] sm:$0xff]
      %v310 = vld [vmem:[%s238 + $0x1a0] sm:$0xff]
      %v311 = vld [vmem:[%s238 + $0x1a8] sm:$0xff]
      %v312 = vld [vmem:[%s238 + $0x1b0] sm:$0xff]
      %v313 = vld [vmem:[%s238 + $0x1b8] sm:$0xff]
      %v314 = vld [vmem:[%s238 + $0x1c0] sm:$0xff]
      %v315 = vld [vmem:[%s238 + $0x1c8] sm:$0xff]
      %v316 = vld [vmem:[%s238 + $0x1d0] sm:$0xff]
      %v317 = vld [vmem:[%s238 + $0x1d8] sm:$0xff]
      %v318 = vld [vmem:[%s238 + $0x1e0] sm:$0xff]
      %v319 = vld [vmem:[%s238 + $0x1e8] sm:$0xff]
      %v320 = vld [vmem:[%s238 + $0x1f0] sm:$0xff]
      %v321 = vld [vmem:[%s238 + $0x1f8] sm:$0xff]
      %v322 = vld [vmem:[%s238 + $0x200] sm:$0xff]
      %v323 = vld [vmem:[%s238 + $0x208] sm:$0xff]
      %v324 = vld [vmem:[%s238 + $0x210] sm:$0xff]
      %v325 = vld [vmem:[%s238 + $0x218] sm:$0xff]
      %v326 = vld [vmem:[%s238 + $0x220] sm:$0xff]
      %v327 = vld [vmem:[%s238 + $0x228] sm:$0xff]
      %v328 = vld [vmem:[%s238 + $0x230] sm:$0xff]
      %v329 = vld [vmem:[%s238 + $0x238] sm:$0xff]
      %v330 = vld [vmem:[%s238 + $0x240] sm:$0xff]
      %v331 = vld [vmem:[%s238 + $0x248] sm:$0xff]
      %v332 = vld [vmem:[%s238 + $0x250] sm:$0xff]
      %v333 = vld [vmem:[%s238 + $0x258] sm:$0xff]
      %v334 = vld [vmem:[%s238 + $0x260] sm:$0xff]
      %v335 = vld [vmem:[%s238 + $0x268] sm:$0xff]
      %v336 = vld [vmem:[%s238 + $0x270] sm:$0xff]
      %v337 = vld [vmem:[%s238 + $0x278] sm:$0xff]
      %v338 = vld [vmem:[%s238 + $0x280] sm:$0xff]
      %v339 = vld [vmem:[%s238 + $0x288] sm:$0xff]
      %v340 = vld [vmem:[%s238 + $0x290] sm:$0xff]
      %v341 = vld [vmem:[%s238 + $0x298] sm:$0xff]
      %v342 = vld [vmem:[%s238 + $0x2a0] sm:$0xff]
      %v343 = vld [vmem:[%s238 + $0x2a8] sm:$0xff]
      %v344 = vld [vmem:[%s238 + $0x2b0] sm:$0xff]
      %v345 = vld [vmem:[%s238 + $0x2b8] sm:$0xff]
      %v346 = vld [vmem:[%s238 + $0x2c0] sm:$0xff]
      %v347 = vld [vmem:[%s238 + $0x2c8] sm:$0xff]
      %v348 = vld [vmem:[%s238 + $0x2d0] sm:$0xff]
      %v349 = vld [vmem:[%s238 + $0x2d8] sm:$0xff]
      %v350 = vld [vmem:[%s238 + $0x2e0] sm:$0xff]
      %v351 = vld [vmem:[%s238 + $0x2e8] sm:$0xff]
      %v352 = vld [vmem:[%s238 + $0x2f0] sm:$0xff]
      %v353 = vld [vmem:[%s238 + $0x2f8] sm:$0xff]
      %v354 = vld [vmem:[%s238 + $0x300] sm:$0xff]
      %v355 = vld [vmem:[%s238 + $0x308] sm:$0xff]
      %v356 = vld [vmem:[%s238 + $0x310] sm:$0xff]
      %v357 = vld [vmem:[%s238 + $0x318] sm:$0xff]
      %v358 = vld [vmem:[%s238 + $0x320] sm:$0xff]
      %v359 = vld [vmem:[%s238 + $0x328] sm:$0xff]
      %v360 = vld [vmem:[%s238 + $0x330] sm:$0xff]
      %v361 = vld [vmem:[%s238 + $0x338] sm:$0xff]
      %v362 = vld [vmem:[%s238 + $0x340] sm:$0xff]
      %v363 = vld [vmem:[%s238 + $0x348] sm:$0xff]
      %v364 = vld [vmem:[%s238 + $0x350] sm:$0xff]
      %v365 = vld [vmem:[%s238 + $0x358] sm:$0xff]
      %v366 = vld [vmem:[%s238 + $0x360] sm:$0xff]
      %v367 = vld [vmem:[%s238 + $0x368] sm:$0xff]
      %v368 = vld [vmem:[%s238 + $0x370] sm:$0xff]
      %v369 = vld [vmem:[%s238 + $0x378] sm:$0xff]
      %v370 = vld [vmem:[%s238 + $0x380] sm:$0xff]
      %v371 = vld [vmem:[%s238 + $0x388] sm:$0xff]
      %v372 = vld [vmem:[%s238 + $0x390] sm:$0xff]
      %v373 = vld [vmem:[%s238 + $0x398] sm:$0xff]
      %v374 = vld [vmem:[%s238 + $0x3a0] sm:$0xff]
      %v375 = vld [vmem:[%s238 + $0x3a8] sm:$0xff]
      %v376 = vld [vmem:[%s238 + $0x3b0] sm:$0xff]
      %v377 = vld [vmem:[%s238 + $0x3b8] sm:$0xff]
      %v378 = vld [vmem:[%s238 + $0x3c0] sm:$0xff]
      %v379 = vld [vmem:[%s238 + $0x3c8] sm:$0xff]
      %v380 = vld [vmem:[%s238 + $0x3d0] sm:$0xff]
      %v381 = vld [vmem:[%s238 + $0x3d8] sm:$0xff]
      %v382 = vld [vmem:[%s238 + $0x3e0] sm:$0xff]
      %v383 = vld [vmem:[%s238 + $0x3e8] sm:$0xff]
      %v384 = vld [vmem:[%s238 + $0x3f0] sm:$0xff]
      %v385 = vld [vmem:[%s238 + $0x3f8] sm:$0xff]
      %v386 = vld [vmem:[%s238 + $0x400] sm:$0xff]
      %v387 = vld [vmem:[%s238 + $0x408] sm:$0xff]
      %v388 = vld [vmem:[%s238 + $0x410] sm:$0xff]
      %v389 = vld [vmem:[%s238 + $0x418] sm:$0xff]
      %v390 = vld [vmem:[%s238 + $0x420] sm:$0xff]
      %v391 = vld [vmem:[%s238 + $0x428] sm:$0xff]
      %v392 = vld [vmem:[%s238 + $0x430] sm:$0xff]
      %v393 = vld [vmem:[%s238 + $0x438] sm:$0xff]
      %v394 = vld [vmem:[%s238 + $0x440] sm:$0xff]
      %v395 = vld [vmem:[%s238 + $0x448] sm:$0xff]
      %v396 = vld [vmem:[%s238 + $0x450] sm:$0xff]
      %v397 = vld [vmem:[%s238 + $0x458] sm:$0xff]
      %v398 = vld [vmem:[%s238 + $0x460] sm:$0xff]
      %v399 = vld [vmem:[%s238 + $0x468] sm:$0xff]
      %v400 = vld [vmem:[%s238 + $0x470] sm:$0xff]
      %v401 = vld [vmem:[%s238 + $0x478] sm:$0xff]
      %v402 = vld [vmem:[%s238 + $0x480] sm:$0xff]
      %v403 = vld [vmem:[%s238 + $0x488] sm:$0xff]
      %v404 = vld [vmem:[%s238 + $0x490] sm:$0xff]
      %v405 = vld [vmem:[%s238 + $0x498] sm:$0xff]
      %v406 = vld [vmem:[%s238 + $0x4a0] sm:$0xff]
      %v407 = vld [vmem:[%s238 + $0x4a8] sm:$0xff]
      %v408 = vld [vmem:[%s238 + $0x4b0] sm:$0xff]
      %v409 = vld [vmem:[%s238 + $0x4b8] sm:$0xff]
      %v410 = vld [vmem:[%s238 + $0x4c0] sm:$0xff]
      %v411 = vld [vmem:[%s238 + $0x4c8] sm:$0xff]
      %v412 = vld [vmem:[%s238 + $0x4d0] sm:$0xff]
      %v413 = vld [vmem:[%s238 + $0x4d8] sm:$0xff]
      %v414 = vld [vmem:[%s238 + $0x4e0] sm:$0xff]
      %v415 = vld [vmem:[%s238 + $0x4e8] sm:$0xff]
      %v416 = vld [vmem:[%s238 + $0x4f0] sm:$0xff]
      %v417 = vld [vmem:[%s238 + $0x4f8] sm:$0xff]
      %v418 = vld [vmem:[%s238 + $0x500] sm:$0xff]
      %v419 = vld [vmem:[%s238 + $0x508] sm:$0xff]
      %v420 = vld [vmem:[%s238 + $0x510] sm:$0xff]
      %v421 = vld [vmem:[%s238 + $0x518] sm:$0xff]
      %v422 = vld [vmem:[%s238 + $0x520] sm:$0xff]
      %v423 = vld [vmem:[%s238 + $0x528] sm:$0xff]
      %v424 = vld [vmem:[%s238 + $0x530] sm:$0xff]
      %v425 = vld [vmem:[%s238 + $0x538] sm:$0xff]
      %v426 = vld [vmem:[%s238 + $0x540] sm:$0xff]
      %v427 = vld [vmem:[%s238 + $0x548] sm:$0xff]
      %v428 = vld [vmem:[%s238 + $0x550] sm:$0xff]
      %v429 = vld [vmem:[%s238 + $0x558] sm:$0xff]
      %v430 = vld [vmem:[%s238 + $0x560] sm:$0xff]
      %v431 = vld [vmem:[%s238 + $0x568] sm:$0xff]
      %v432 = vld [vmem:[%s238 + $0x570] sm:$0xff]
      %v433 = vld [vmem:[%s238 + $0x578] sm:$0xff]
      %v434 = vld [vmem:[%s238 + $0x580] sm:$0xff]
      %v435 = vld [vmem:[%s238 + $0x588] sm:$0xff]
      %v436 = vld [vmem:[%s238 + $0x590] sm:$0xff]
      %v437 = vld [vmem:[%s238 + $0x598] sm:$0xff]
      %v438 = vld [vmem:[%s238 + $0x5a0] sm:$0xff]
      %v439 = vld [vmem:[%s238 + $0x5a8] sm:$0xff]
      %v440 = vld [vmem:[%s238 + $0x5b0] sm:$0xff]
      %v441 = vld [vmem:[%s238 + $0x5b8] sm:$0xff]
      %v442 = vld [vmem:[%s238 + $0x5c0] sm:$0xff]
      %v443 = vld [vmem:[%s238 + $0x5c8] sm:$0xff]
      %v444 = vld [vmem:[%s238 + $0x5d0] sm:$0xff]
      %v445 = vld [vmem:[%s238 + $0x5d8] sm:$0xff]
      %v446 = vld [vmem:[%s238 + $0x5e0] sm:$0xff]
      %v447 = vld [vmem:[%s238 + $0x5e8] sm:$0xff]
      %v448 = vld [vmem:[%s238 + $0x5f0] sm:$0xff]
      %v449 = vld [vmem:[%s238 + $0x5f8] sm:$0xff]
      %v450 = vld [vmem:[%s1] sm:$0xff]
      %v451 = vld [vmem:[%s1 + $0x8] sm:$0xff]
      %v452 = vld [vmem:[%s1 + $0x10] sm:$0xff]
      %v453 = vld [vmem:[%s1 + $0x18] sm:$0xff]
      %v454 = vld [vmem:[%s1 + $0x20] sm:$0xff]
      %v455 = vld [vmem:[%s1 + $0x28] sm:$0xff]
      %v456 = vld [vmem:[%s1 + $0x30] sm:$0xff]
      %v457 = vld [vmem:[%s1 + $0x38] sm:$0xff]
      %v458 = vld [vmem:[%s1 + $0x40] sm:$0xff]
      %v459 = vld [vmem:[%s1 + $0x48] sm:$0xff]
      %v460 = vld [vmem:[%s1 + $0x50] sm:$0xff]
      %v461 = vld [vmem:[%s1 + $0x58] sm:$0xff]
      %v462 = vld [vmem:[%s1 + $0x60] sm:$0xff]
      %v463 = vld [vmem:[%s1 + $0x68] sm:$0xff]
      %v464 = vld [vmem:[%s1 + $0x70] sm:$0xff]
      %v465 = vld [vmem:[%s1 + $0x78] sm:$0xff]
      %v466 = vld [vmem:[%s1 + $0x80] sm:$0xff]
      %v467 = vld [vmem:[%s1 + $0x88] sm:$0xff]
      %v468 = vld [vmem:[%s1 + $0x90] sm:$0xff]
      %v469 = vld [vmem:[%s1 + $0x98] sm:$0xff]
      %v470 = vld [vmem:[%s1 + $0xa0] sm:$0xff]
      %v471 = vld [vmem:[%s1 + $0xa8] sm:$0xff]
      %v472 = vld [vmem:[%s1 + $0xb0] sm:$0xff]
      %v473 = vld [vmem:[%s1 + $0xb8] sm:$0xff]
      %v474 = vld [vmem:[%s1 + $0xc0] sm:$0xff]
      %v475 = vld [vmem:[%s1 + $0xc8] sm:$0xff]
      %v476 = vld [vmem:[%s1 + $0xd0] sm:$0xff]
      %v477 = vld [vmem:[%s1 + $0xd8] sm:$0xff]
      %v478 = vld [vmem:[%s1 + $0xe0] sm:$0xff]
      %v479 = vld [vmem:[%s1 + $0xe8] sm:$0xff]
      %v480 = vld [vmem:[%s1 + $0xf0] sm:$0xff]
      %v481 = vld [vmem:[%s1 + $0xf8] sm:$0xff]
      %v482 = vld [vmem:[%s1 + $0x100] sm:$0xff]
      %v483 = vld [vmem:[%s1 + $0x108] sm:$0xff]
      %v484 = vld [vmem:[%s1 + $0x110] sm:$0xff]
      %v485 = vld [vmem:[%s1 + $0x118] sm:$0xff]
      %v486 = vld [vmem:[%s1 + $0x120] sm:$0xff]
      %v487 = vld [vmem:[%s1 + $0x128] sm:$0xff]
      %v488 = vld [vmem:[%s1 + $0x130] sm:$0xff]
      %v489 = vld [vmem:[%s1 + $0x138] sm:$0xff]
      %v490 = vld [vmem:[%s1 + $0x140] sm:$0xff]
      %v491 = vld [vmem:[%s1 + $0x148] sm:$0xff]
      %v492 = vld [vmem:[%s1 + $0x150] sm:$0xff]
      %v493 = vld [vmem:[%s1 + $0x158] sm:$0xff]
      %v494 = vld [vmem:[%s1 + $0x160] sm:$0xff]
      %v495 = vld [vmem:[%s1 + $0x168] sm:$0xff]
      %v496 = vld [vmem:[%s1 + $0x170] sm:$0xff]
      %v497 = vld [vmem:[%s1 + $0x178] sm:$0xff]
      %v498 = vld [vmem:[%s1 + $0x180] sm:$0xff]
      %v499 = vld [vmem:[%s1 + $0x188] sm:$0xff]
      %v500 = vld [vmem:[%s1 + $0x190] sm:$0xff]
      %v501 = vld [vmem:[%s1 + $0x198] sm:$0xff]
      %v502 = vld [vmem:[%s1 + $0x1a0] sm:$0xff]
      %v503 = vld [vmem:[%s1 + $0x1a8] sm:$0xff]
      %v504 = vld [vmem:[%s1 + $0x1b0] sm:$0xff]
      %v505 = vld [vmem:[%s1 + $0x1b8] sm:$0xff]
      %v506 = vld [vmem:[%s1 + $0x1c0] sm:$0xff]
      %v507 = vld [vmem:[%s1 + $0x1c8] sm:$0xff]
      %v508 = vld [vmem:[%s1 + $0x1d0] sm:$0xff]
      %v509 = vld [vmem:[%s1 + $0x1d8] sm:$0xff]
      %v510 = vld [vmem:[%s1 + $0x1e0] sm:$0xff]
      %v511 = vld [vmem:[%s1 + $0x1e8] sm:$0xff]
      %v512 = vld [vmem:[%s1 + $0x1f0] sm:$0xff]
      %v513 = vld [vmem:[%s1 + $0x1f8] sm:$0xff]
      %v514 = vld [vmem:[%s1 + $0x200] sm:$0xff]
      %v515 = vld [vmem:[%s1 + $0x208] sm:$0xff]
      %v516 = vld [vmem:[%s1 + $0x210] sm:$0xff]
      %v517 = vld [vmem:[%s1 + $0x218] sm:$0xff]
      %v518 = vld [vmem:[%s1 + $0x220] sm:$0xff]
      %v519 = vld [vmem:[%s1 + $0x228] sm:$0xff]
      %v520 = vld [vmem:[%s1 + $0x230] sm:$0xff]
      %v521 = vld [vmem:[%s1 + $0x238] sm:$0xff]
      %v522 = vld [vmem:[%s1 + $0x240] sm:$0xff]
      %v523 = vld [vmem:[%s1 + $0x248] sm:$0xff]
      %v524 = vld [vmem:[%s1 + $0x250] sm:$0xff]
      %v525 = vld [vmem:[%s1 + $0x258] sm:$0xff]
      %v526 = vld [vmem:[%s1 + $0x260] sm:$0xff]
      %v527 = vld [vmem:[%s1 + $0x268] sm:$0xff]
      %v528 = vld [vmem:[%s1 + $0x270] sm:$0xff]
      %v529 = vld [vmem:[%s1 + $0x278] sm:$0xff]
      %v530 = vld [vmem:[%s1 + $0x280] sm:$0xff]
      %v531 = vld [vmem:[%s1 + $0x288] sm:$0xff]
      %v532 = vld [vmem:[%s1 + $0x290] sm:$0xff]
      %v533 = vld [vmem:[%s1 + $0x298] sm:$0xff]
      %v534 = vld [vmem:[%s1 + $0x2a0] sm:$0xff]
      %v535 = vld [vmem:[%s1 + $0x2a8] sm:$0xff]
      %v536 = vld [vmem:[%s1 + $0x2b0] sm:$0xff]
      %v537 = vld [vmem:[%s1 + $0x2b8] sm:$0xff]
      %v538 = vld [vmem:[%s1 + $0x2c0] sm:$0xff]
      %v539 = vld [vmem:[%s1 + $0x2c8] sm:$0xff]
      %v540 = vld [vmem:[%s1 + $0x2d0] sm:$0xff]
      %v541 = vld [vmem:[%s1 + $0x2d8] sm:$0xff]
      %v542 = vld [vmem:[%s1 + $0x2e0] sm:$0xff]
      %v543 = vld [vmem:[%s1 + $0x2e8] sm:$0xff]
      %v544 = vld [vmem:[%s1 + $0x2f0] sm:$0xff]
      %v545 = vld [vmem:[%s1 + $0x2f8] sm:$0xff]
      %546 = vmatprep.subr.mxu0 0.0
      %547 = vmatpush1.msra.mxu0 %v450
      %548 = vmatprep.subr.mxu0 0.0
      %549 = vmatpush1.msra.mxu0 %v451
      %550 = vmatprep.subr.mxu0 0.0
      %551 = vmatpush1.msra.mxu0 %v452
      %552 = vmatprep.subr.mxu0 0.0
      %553 = vmatpush1.msra.mxu0 %v453
      %554 = vmatprep.subr.mxu0 0.0
      %555 = vmatpush1.msra.mxu0 %v454
      %556 = vmatprep.subr.mxu0 0.0
      %557 = vmatpush1.msra.mxu0 %v455
      %558 = vmatprep.subr.mxu0 0.0
      %559 = vmatpush1.msra.mxu0 %v456
      %560 = vmatprep.subr.mxu0 0.0
      %561 = vmatpush1.msra.mxu0 %v457
      %562 = vmatprep.subr.mxu0 0.0
      %563 = vmatpush1.msra.mxu0 %v458
      %564 = vmatprep.subr.mxu0 0.0
      %565 = vmatpush1.msra.mxu0 %v459
      %566 = vmatprep.subr.mxu0 0.0
      %567 = vmatpush1.msra.mxu0 %v460
      %568 = vmatprep.subr.mxu0 0.0
      %569 = vmatpush1.msra.mxu0 %v461
      %570 = vmatprep.subr.mxu0 0.0
      %571 = vmatpush1.msra.mxu0 %v462
      %572 = vmatprep.subr.mxu0 0.0
      %573 = vmatpush1.msra.mxu0 %v463
      %574 = vmatprep.subr.mxu0 0.0
      %575 = vmatpush1.msra.mxu0 %v464
      %576 = vmatprep.subr.mxu0 0.0
      %577 = vmatpush1.msra.mxu0 %v465
      %578 = vmatprep.subr.mxu0 0.0
      %579 = vmatpush1.msra.mxu0 %v466
      %580 = vmatprep.subr.mxu0 0.0
      %581 = vmatpush1.msra.mxu0 %v467
      %582 = vmatprep.subr.mxu0 0.0
      %583 = vmatpush1.msra.mxu0 %v468
      %584 = vmatprep.subr.mxu0 0.0
      %585 = vmatpush1.msra.mxu0 %v469
      %586 = vmatprep.subr.mxu0 0.0
      %587 = vmatpush1.msra.mxu0 %v470
      %588 = vmatprep.subr.mxu0 0.0
      %589 = vmatpush1.msra.mxu0 %v471
      %590 = vmatprep.subr.mxu0 0.0
      %591 = vmatpush1.msra.mxu0 %v472
      %592 = vmatprep.subr.mxu0 0.0
      %593 = vmatpush1.msra.mxu0 %v473
      %594 = vmatprep.subr.mxu0 0.0
      %595 = vmatpush1.msra.mxu0 %v474
      %596 = vmatprep.subr.mxu0 0.0
      %597 = vmatpush1.msra.mxu0 %v475
      %598 = vmatprep.subr.mxu0 0.0
      %599 = vmatpush1.msra.mxu0 %v476
      %600 = vmatprep.subr.mxu0 0.0
      %601 = vmatpush1.msra.mxu0 %v477
      %602 = vmatprep.subr.mxu0 0.0
      %603 = vmatpush1.msra.mxu0 %v478
      %604 = vmatprep.subr.mxu0 0.0
      %605 = vmatpush1.msra.mxu0 %v479
      %606 = vmatprep.subr.mxu0 0.0
      %607 = vmatpush1.msra.mxu0 %v480
      %608 = vmatprep.subr.mxu0 0.0
      %609 = vmatpush1.msra.mxu0 %v481
      %610 = vmatprep.mubr.f32.mxu0 %v259
      %611 = vmatmul.mubr.f32.gmra.mrb[0].mxu0 %v258
      %v612 = vpop.f32.mrb[0].mxu0
      %v613 = vadd.f32 0.0, %v612
      %v614 = vpop.f32.mrb[0].mxu0
      %615 = vmatprep.mubr.f32.mxu0 %v265
      %616 = vmatmul.mubr.f32.gmra.mrb[0].mxu0 %v264
      %v617 = vpop.f32.mrb[0].mxu0
      %v618 = vadd.f32 0.0, %v617
      %v619 = vpop.f32.mrb[0].mxu0
      %620 = vmatprep.mubr.f32.mxu0 %v271
      %621 = vmatmul.mubr.f32.gmra.mrb[0].mxu0 %v270
      %v622 = vpop.f32.mrb[0].mxu0
      %v623 = vadd.f32 0.0, %v622
      %v624 = vpop.f32.mrb[0].mxu0
      %625 = vmatprep.mubr.f32.mxu0 %v277
      %626 = vmatmul.mubr.f32.gmra.mrb[0].mxu0 %v276
      %v627 = vpop.f32.mrb[0].mxu0
      %v628 = vadd.f32 0.0, %v627
      %v629 = vpop.f32.mrb[0].mxu0
      %630 = vmatprep.mubr.f32.mxu0 %v283
      %631 = vmatmul.mubr.f32.gmra.mrb[0].mxu0 %v282
      %v632 = vpop.f32.mrb[0].mxu0
      %v633 = vadd.f32 0.0, %v632
      %v634 = vpop.f32.mrb[0].mxu0
      %635 = vmatprep.mubr.f32.mxu0 %v289
      %636 = vmatmul.mubr.f32.gmra.mrb[0].mxu0 %v288
      %v637 = vpop.f32.mrb[0].mxu0
      %v638 = vadd.f32 0.0, %v637
      %v639 = vpop.f32.mrb[0].mxu0
      %640 = vmatprep.mubr.f32.mxu0 %v295
      %641 = vmatmul.mubr.f32.gmra.mrb[0].mxu0 %v294
      %v642 = vpop.f32.mrb[0].mxu0
      %v643 = vadd.f32 0.0, %v642
      %v644 = vpop.f32.mrb[0].mxu0
      %645 = vmatprep.mubr.f32.mxu0 %v301
      %646 = vmatmul.mubr.f32.gmra.mrb[0].mxu0 %v300
      %v647 = vpop.f32.mrb[0].mxu0
      %v648 = vadd.f32 0.0, %v647
      %v649 = vpop.f32.mrb[0].mxu0
      %650 = vmatprep.mubr.f32.mxu0 %v307
      %651 = vmatmul.mubr.f32.gmra.mrb[0].mxu0 %v306
      %v652 = vpop.f32.mrb[0].mxu0
      %v653 = vadd.f32 0.0, %v652
      %v654 = vpop.f32.mrb[0].mxu0
      %655 = vmatprep.mubr.f32.mxu0 %v313
      %656 = vmatmul.mubr.f32.gmra.mrb[0].mxu0 %v312
      %v657 = vpop.f32.mrb[0].mxu0
      %v658 = vadd.f32 0.0, %v657
      %v659 = vpop.f32.mrb[0].mxu0
      %660 = vmatprep.mubr.f32.mxu0 %v319
      %661 = vmatmul.mubr.f32.gmra.mrb[0].mxu0 %v318
      %v662 = vpop.f32.mrb[0].mxu0
      %v663 = vadd.f32 0.0, %v662
      %v664 = vpop.f32.mrb[0].mxu0
      %665 = vmatprep.mubr.f32.mxu0 %v325
      %666 = vmatmul.mubr.f32.gmra.mrb[0].mxu0 %v324
      %v667 = vpop.f32.mrb[0].mxu0
      %v668 = vadd.f32 0.0, %v667
      %v669 = vpop.f32.mrb[0].mxu0
      %670 = vmatprep.mubr.f32.mxu0 %v331
      %671 = vmatmul.mubr.f32.gmra.mrb[0].mxu0 %v330
      %v672 = vpop.f32.mrb[0].mxu0
      %v673 = vadd.f32 0.0, %v672
      %v674 = vpop.f32.mrb[0].mxu0
      %675 = vmatprep.mubr.f32.mxu0 %v337
      %676 = vmatmul.mubr.f32.gmra.mrb[0].mxu0 %v336
      %v677 = vpop.f32.mrb[0].mxu0
      %v678 = vadd.f32 0.0, %v677
      %v679 = vpop.f32.mrb[0].mxu0
      %680 = vmatprep.mubr.f32.mxu0 %v343
      %681 = vmatmul.mubr.f32.gmra.mrb[0].mxu0 %v342
      %v682 = vpop.f32.mrb[0].mxu0
      %v683 = vadd.f32 0.0, %v682
      %v684 = vpop.f32.mrb[0].mxu0
      %685 = vmatprep.mubr.f32.mxu0 %v349
      %686 = vmatmul.mubr.f32.gmra.mrb[0].mxu0 %v348
      %v687 = vpop.f32.mrb[0].mxu0
      %v688 = vadd.f32 0.0, %v687
      %v689 = vpop.f32.mrb[0].mxu0
      %690 = vmatprep.mubr.f32.mxu0 %v355
      %691 = vmatmul.mubr.f32.gmra.mrb[0].mxu0 %v354
      %v692 = vpop.f32.mrb[0].mxu0
      %v693 = vadd.f32 0.0, %v692
      %v694 = vpop.f32.mrb[0].mxu0
      %695 = vmatprep.mubr.f32.mxu0 %v361
      %696 = vmatmul.mubr.f32.gmra.mrb[0].mxu0 %v360
      %v697 = vpop.f32.mrb[0].mxu0
      %v698 = vadd.f32 0.0, %v697
      %v699 = vpop.f32.mrb[0].mxu0
      %700 = vmatprep.mubr.f32.mxu0 %v367
      %701 = vmatmul.mubr.f32.gmra.mrb[0].mxu0 %v366
      %v702 = vpop.f32.mrb[0].mxu0
      %v703 = vadd.f32 0.0, %v702
      %v704 = vpop.f32.mrb[0].mxu0
      %705 = vmatprep.mubr.f32.mxu0 %v373
      %706 = vmatmul.mubr.f32.gmra.mrb[0].mxu0 %v372
      %v707 = vpop.f32.mrb[0].mxu0
      %v708 = vadd.f32 0.0, %v707
      %v709 = vpop.f32.mrb[0].mxu0
      %710 = vmatprep.mubr.f32.mxu0 %v379
      %711 = vmatmul.mubr.f32.gmra.mrb[0].mxu0 %v378
      %v712 = vpop.f32.mrb[0].mxu0
      %v713 = vadd.f32 0.0, %v712
      %v714 = vpop.f32.mrb[0].mxu0
      %715 = vmatprep.mubr.f32.mxu0 %v385
      %716 = vmatmul.mubr.f32.gmra.mrb[0].mxu0 %v384
      %v717 = vpop.f32.mrb[0].mxu0
      %v718 = vadd.f32 0.0, %v717
      %v719 = vpop.f32.mrb[0].mxu0
      %720 = vmatprep.mubr.f32.mxu0 %v391
      %721 = vmatmul.mubr.f32.gmra.mrb[0].mxu0 %v390
      %v722 = vpop.f32.mrb[0].mxu0
      %v723 = vadd.f32 0.0, %v722
      %v724 = vpop.f32.mrb[0].mxu0
      %725 = vmatprep.mubr.f32.mxu0 %v397
      %726 = vmatmul.mubr.f32.gmra.mrb[0].mxu0 %v396
      %v727 = vpop.f32.mrb[0].mxu0
      %v728 = vadd.f32 0.0, %v727
      %v729 = vpop.f32.mrb[0].mxu0
      %730 = vmatprep.mubr.f32.mxu0 %v403
      %731 = vmatmul.mubr.f32.gmra.mrb[0].mxu0 %v402
      %v732 = vpop.f32.mrb[0].mxu0
      %v733 = vadd.f32 0.0, %v732
      %v734 = vpop.f32.mrb[0].mxu0
      %735 = vmatprep.mubr.f32.mxu0 %v409
      %736 = vmatmul.mubr.f32.gmra.mrb[0].mxu0 %v408
      %v737 = vpop.f32.mrb[0].mxu0
      %v738 = vadd.f32 0.0, %v737
      %v739 = vpop.f32.mrb[0].mxu0
      %740 = vmatprep.mubr.f32.mxu0 %v415
      %741 = vmatmul.mubr.f32.gmra.mrb[0].mxu0 %v414
      %v742 = vpop.f32.mrb[0].mxu0
      %v743 = vadd.f32 0.0, %v742
      %v744 = vpop.f32.mrb[0].mxu0
      %745 = vmatprep.mubr.f32.mxu0 %v421
      %746 = vmatmul.mubr.f32.gmra.mrb[0].mxu0 %v420
      %v747 = vpop.f32.mrb[0].mxu0
      %v748 = vadd.f32 0.0, %v747
      %v749 = vpop.f32.mrb[0].mxu0
      %750 = vmatprep.mubr.f32.mxu0 %v427
      %751 = vmatmul.mubr.f32.gmra.mrb[0].mxu0 %v426
      %v752 = vpop.f32.mrb[0].mxu0
      %v753 = vadd.f32 0.0, %v752
      %v754 = vpop.f32.mrb[0].mxu0
      %755 = vmatprep.mubr.f32.mxu0 %v433
      %756 = vmatmul.mubr.f32.gmra.mrb[0].mxu0 %v432
      %v757 = vpop.f32.mrb[0].mxu0
      %v758 = vadd.f32 0.0, %v757
      %v759 = vpop.f32.mrb[0].mxu0
      %760 = vmatprep.mubr.f32.mxu0 %v439
      %761 = vmatmul.mubr.f32.gmra.mrb[0].mxu0 %v438
      %v762 = vpop.f32.mrb[0].mxu0
      %v763 = vadd.f32 0.0, %v762
      %v764 = vpop.f32.mrb[0].mxu0
      %765 = vmatprep.mubr.f32.mxu0 %v445
      %766 = vmatmul.mubr.f32.gmra.mrb[0].mxu0 %v444
      %v767 = vpop.f32.mrb[0].mxu0
      %v768 = vadd.f32 0.0, %v767
      %v769 = vpop.f32.mrb[0].mxu0
      %770 = vdwg.mxu0
      %771 = vmatprep.subr.mxu0 0.0
      %772 = vmatpush1.msra.mxu0 %v482
      %773 = vmatprep.subr.mxu0 0.0
      %774 = vmatpush1.msra.mxu0 %v483
      %775 = vmatprep.subr.mxu0 0.0
      %776 = vmatpush1.msra.mxu0 %v484
      %777 = vmatprep.subr.mxu0 0.0
      %778 = vmatpush1.msra.mxu0 %v485
      %779 = vmatprep.subr.mxu0 0.0
      %780 = vmatpush1.msra.mxu0 %v486
      %781 = vmatprep.subr.mxu0 0.0
      %782 = vmatpush1.msra.mxu0 %v487
      %783 = vmatprep.subr.mxu0 0.0
      %784 = vmatpush1.msra.mxu0 %v488
      %785 = vmatprep.subr.mxu0 0.0
      %786 = vmatpush1.msra.mxu0 %v489
      %787 = vmatprep.subr.mxu0 0.0
      %788 = vmatpush1.msra.mxu0 %v490
      %789 = vmatprep.subr.mxu0 0.0
      %790 = vmatpush1.msra.mxu0 %v491
      %791 = vmatprep.subr.mxu0 0.0
      %792 = vmatpush1.msra.mxu0 %v492
      %793 = vmatprep.subr.mxu0 0.0
      %794 = vmatpush1.msra.mxu0 %v493
      %795 = vmatprep.subr.mxu0 0.0
      %796 = vmatpush1.msra.mxu0 %v494
      %797 = vmatprep.subr.mxu0 0.0
      %798 = vmatpush1.msra.mxu0 %v495
      %799 = vmatprep.subr.mxu0 0.0
      %800 = vmatpush1.msra.mxu0 %v496
      %801 = vmatprep.subr.mxu0 0.0
      %802 = vmatpush1.msra.mxu0 %v497
      %803 = vmatprep.subr.mxu0 0.0
      %804 = vmatpush1.msra.mxu0 %v498
      %805 = vmatprep.subr.mxu0 0.0
      %806 = vmatpush1.msra.mxu0 %v499
      %807 = vmatprep.subr.mxu0 0.0
      %808 = vmatpush1.msra.mxu0 %v500
      %809 = vmatprep.subr.mxu0 0.0
      %810 = vmatpush1.msra.mxu0 %v501
      %811 = vmatprep.subr.mxu0 0.0
      %812 = vmatpush1.msra.mxu0 %v502
      %813 = vmatprep.subr.mxu0 0.0
      %814 = vmatpush1.msra.mxu0 %v503
      %815 = vmatprep.subr.mxu0 0.0
      %816 = vmatpush1.msra.mxu0 %v504
      %817 = vmatprep.subr.mxu0 0.0
      %818 = vmatpush1.msra.mxu0 %v505
      %819 = vmatprep.subr.mxu0 0.0
      %820 = vmatpush1.msra.mxu0 %v506
      %821 = vmatprep.subr.mxu0 0.0
      %822 = vmatpush1.msra.mxu0 %v507
      %823 = vmatprep.subr.mxu0 0.0
      %824 = vmatpush1.msra.mxu0 %v508
      %825 = vmatprep.subr.mxu0 0.0
      %826 = vmatpush1.msra.mxu0 %v509
      %827 = vmatprep.subr.mxu0 0.0
      %828 = vmatpush1.msra.mxu0 %v510
      %829 = vmatprep.subr.mxu0 0.0
      %830 = vmatpush1.msra.mxu0 %v511
      %831 = vmatprep.subr.mxu0 0.0
      %832 = vmatpush1.msra.mxu0 %v512
      %833 = vmatprep.subr.mxu0 0.0
      %834 = vmatpush1.msra.mxu0 %v513
      %835 = vmatprep.mubr.f32.mxu0 %v261
      %836 = vmatmul.mubr.f32.gmra.mrb[0].mxu0 %v260
      %v837 = vpop.f32.mrb[0].mxu0
      %v838 = vadd.f32 %v613, %v837
      %v839 = vpop.f32.mrb[0].mxu0
      %840 = vmatprep.mubr.f32.mxu0 %v267
      %841 = vmatmul.mubr.f32.gmra.mrb[0].mxu0 %v266
      %v842 = vpop.f32.mrb[0].mxu0
      %v843 = vadd.f32 %v618, %v842
      %v844 = vpop.f32.mrb[0].mxu0
      %845 = vmatprep.mubr.f32.mxu0 %v273
      %846 = vmatmul.mubr.f32.gmra.mrb[0].mxu0 %v272
      %v847 = vpop.f32.mrb[0].mxu0
      %v848 = vadd.f32 %v623, %v847
      %v849 = vpop.f32.mrb[0].mxu0
      %850 = vmatprep.mubr.f32.mxu0 %v279
      %851 = vmatmul.mubr.f32.gmra.mrb[0].mxu0 %v278
      %v852 = vpop.f32.mrb[0].mxu0
      %v853 = vadd.f32 %v628, %v852
      %v854 = vpop.f32.mrb[0].mxu0
      %855 = vmatprep.mubr.f32.mxu0 %v285
      %856 = vmatmul.mubr.f32.gmra.mrb[0].mxu0 %v284
      %v857 = vpop.f32.mrb[0].mxu0
      %v858 = vadd.f32 %v633, %v857
      %v859 = vpop.f32.mrb[0].mxu0
      %860 = vmatprep.mubr.f32.mxu0 %v291
      %861 = vmatmul.mubr.f32.gmra.mrb[0].mxu0 %v290
      %v862 = vpop.f32.mrb[0].mxu0
      %v863 = vadd.f32 %v638, %v862
      %v864 = vpop.f32.mrb[0].mxu0
      %865 = vmatprep.mubr.f32.mxu0 %v297
      %866 = vmatmul.mubr.f32.gmra.mrb[0].mxu0 %v296
      %v867 = vpop.f32.mrb[0].mxu0
      %v868 = vadd.f32 %v643, %v867
      %v869 = vpop.f32.mrb[0].mxu0
      %870 = vmatprep.mubr.f32.mxu0 %v303
      %871 = vmatmul.mubr.f32.gmra.mrb[0].mxu0 %v302
      %v872 = vpop.f32.mrb[0].mxu0
      %v873 = vadd.f32 %v648, %v872
      %v874 = vpop.f32.mrb[0].mxu0
      %875 = vmatprep.mubr.f32.mxu0 %v309
      %876 = vmatmul.mubr.f32.gmra.mrb[0].mxu0 %v308
      %v877 = vpop.f32.mrb[0].mxu0
      %v878 = vadd.f32 %v653, %v877
      %v879 = vpop.f32.mrb[0].mxu0
      %880 = vmatprep.mubr.f32.mxu0 %v315
      %881 = vmatmul.mubr.f32.gmra.mrb[0].mxu0 %v314
      %v882 = vpop.f32.mrb[0].mxu0
      %v883 = vadd.f32 %v658, %v882
      %v884 = vpop.f32.mrb[0].mxu0
      %885 = vmatprep.mubr.f32.mxu0 %v321
      %886 = vmatmul.mubr.f32.gmra.mrb[0].mxu0 %v320
      %v887 = vpop.f32.mrb[0].mxu0
      %v888 = vadd.f32 %v663, %v887
      %v889 = vpop.f32.mrb[0].mxu0
      %890 = vmatprep.mubr.f32.mxu0 %v327
      %891 = vmatmul.mubr.f32.gmra.mrb[0].mxu0 %v326
      %v892 = vpop.f32.mrb[0].mxu0
      %v893 = vadd.f32 %v668, %v892
      %v894 = vpop.f32.mrb[0].mxu0
      %895 = vmatprep.mubr.f32.mxu0 %v333
      %896 = vmatmul.mubr.f32.gmra.mrb[0].mxu0 %v332
      %v897 = vpop.f32.mrb[0].mxu0
      %v898 = vadd.f32 %v673, %v897
      %v899 = vpop.f32.mrb[0].mxu0
      %900 = vmatprep.mubr.f32.mxu0 %v339
      %901 = vmatmul.mubr.f32.gmra.mrb[0].mxu0 %v338
      %v902 = vpop.f32.mrb[0].mxu0
      %v903 = vadd.f32 %v678, %v902
      %v904 = vpop.f32.mrb[0].mxu0
      %905 = vmatprep.mubr.f32.mxu0 %v345
      %906 = vmatmul.mubr.f32.gmra.mrb[0].mxu0 %v344
      %v907 = vpop.f32.mrb[0].mxu0
      %v908 = vadd.f32 %v683, %v907
      %v909 = vpop.f32.mrb[0].mxu0
      %910 = vmatprep.mubr.f32.mxu0 %v351
      %911 = vmatmul.mubr.f32.gmra.mrb[0].mxu0 %v350
      %v912 = vpop.f32.mrb[0].mxu0
      %v913 = vadd.f32 %v688, %v912
      %v914 = vpop.f32.mrb[0].mxu0
      %915 = vmatprep.mubr.f32.mxu0 %v357
      %916 = vmatmul.mubr.f32.gmra.mrb[0].mxu0 %v356
      %v917 = vpop.f32.mrb[0].mxu0
      %v918 = vadd.f32 %v693, %v917
      %v919 = vpop.f32.mrb[0].mxu0
      %920 = vmatprep.mubr.f32.mxu0 %v363
      %921 = vmatmul.mubr.f32.gmra.mrb[0].mxu0 %v362
      %v922 = vpop.f32.mrb[0].mxu0
      %v923 = vadd.f32 %v698, %v922
      %v924 = vpop.f32.mrb[0].mxu0
      %925 = vmatprep.mubr.f32.mxu0 %v369
      %926 = vmatmul.mubr.f32.gmra.mrb[0].mxu0 %v368
      %v927 = vpop.f32.mrb[0].mxu0
      %v928 = vadd.f32 %v703, %v927
      %v929 = vpop.f32.mrb[0].mxu0
      %930 = vmatprep.mubr.f32.mxu0 %v375
      %931 = vmatmul.mubr.f32.gmra.mrb[0].mxu0 %v374
      %v932 = vpop.f32.mrb[0].mxu0
      %v933 = vadd.f32 %v708, %v932
      %v934 = vpop.f32.mrb[0].mxu0
      %935 = vmatprep.mubr.f32.mxu0 %v381
      %936 = vmatmul.mubr.f32.gmra.mrb[0].mxu0 %v380
      %v937 = vpop.f32.mrb[0].mxu0
      %v938 = vadd.f32 %v713, %v937
      %v939 = vpop.f32.mrb[0].mxu0
      %940 = vmatprep.mubr.f32.mxu0 %v387
      %941 = vmatmul.mubr.f32.gmra.mrb[0].mxu0 %v386
      %v942 = vpop.f32.mrb[0].mxu0
      %v943 = vadd.f32 %v718, %v942
      %v944 = vpop.f32.mrb[0].mxu0
      %945 = vmatprep.mubr.f32.mxu0 %v393
      %946 = vmatmul.mubr.f32.gmra.mrb[0].mxu0 %v392
      %v947 = vpop.f32.mrb[0].mxu0
      %v948 = vadd.f32 %v723, %v947
      %v949 = vpop.f32.mrb[0].mxu0
      %950 = vmatprep.mubr.f32.mxu0 %v399
      %951 = vmatmul.mubr.f32.gmra.mrb[0].mxu0 %v398
      %v952 = vpop.f32.mrb[0].mxu0
      %v953 = vadd.f32 %v728, %v952
      %v954 = vpop.f32.mrb[0].mxu0
      %955 = vmatprep.mubr.f32.mxu0 %v405
      %956 = vmatmul.mubr.f32.gmra.mrb[0].mxu0 %v404
      %v957 = vpop.f32.mrb[0].mxu0
      %v958 = vadd.f32 %v733, %v957
      %v959 = vpop.f32.mrb[0].mxu0
      %960 = vmatprep.mubr.f32.mxu0 %v411
      %961 = vmatmul.mubr.f32.gmra.mrb[0].mxu0 %v410
      %v962 = vpop.f32.mrb[0].mxu0
      %v963 = vadd.f32 %v738, %v962
      %v964 = vpop.f32.mrb[0].mxu0
      %965 = vmatprep.mubr.f32.mxu0 %v417
      %966 = vmatmul.mubr.f32.gmra.mrb[0].mxu0 %v416
      %v967 = vpop.f32.mrb[0].mxu0
      %v968 = vadd.f32 %v743, %v967
      %v969 = vpop.f32.mrb[0].mxu0
      %970 = vmatprep.mubr.f32.mxu0 %v423
      %971 = vmatmul.mubr.f32.gmra.mrb[0].mxu0 %v422
      %v972 = vpop.f32.mrb[0].mxu0
      %v973 = vadd.f32 %v748, %v972
      %v974 = vpop.f32.mrb[0].mxu0
      %975 = vmatprep.mubr.f32.mxu0 %v429
      %976 = vmatmul.mubr.f32.gmra.mrb[0].mxu0 %v428
      %v977 = vpop.f32.mrb[0].mxu0
      %v978 = vadd.f32 %v753, %v977
      %v979 = vpop.f32.mrb[0].mxu0
      %980 = vmatprep.mubr.f32.mxu0 %v435
      %981 = vmatmul.mubr.f32.gmra.mrb[0].mxu0 %v434
      %v982 = vpop.f32.mrb[0].mxu0
      %v983 = vadd.f32 %v758, %v982
      %v984 = vpop.f32.mrb[0].mxu0
      %985 = vmatprep.mubr.f32.mxu0 %v441
      %986 = vmatmul.mubr.f32.gmra.mrb[0].mxu0 %v440
      %v987 = vpop.f32.mrb[0].mxu0
      %v988 = vadd.f32 %v763, %v987
      %v989 = vpop.f32.mrb[0].mxu0
      %990 = vmatprep.mubr.f32.mxu0 %v447
      %991 = vmatmul.mubr.f32.gmra.mrb[0].mxu0 %v446
      %v992 = vpop.f32.mrb[0].mxu0
      %v993 = vadd.f32 %v768, %v992
      %v994 = vpop.f32.mrb[0].mxu0
      %995 = vdwg.mxu0
      %996 = vmatprep.subr.mxu0 0.0
      %997 = vmatpush1.msra.mxu0 %v514
      %998 = vmatprep.subr.mxu0 0.0
      %999 = vmatpush1.msra.mxu0 %v515
      %1000 = vmatprep.subr.mxu0 0.0
      %1001 = vmatpush1.msra.mxu0 %v516
      %1002 = vmatprep.subr.mxu0 0.0
      %1003 = vmatpush1.msra.mxu0 %v517
      %1004 = vmatprep.subr.mxu0 0.0
      %1005 = vmatpush1.msra.mxu0 %v518
      %1006 = vmatprep.subr.mxu0 0.0
      %1007 = vmatpush1.msra.mxu0 %v519
      %1008 = vmatprep.subr.mxu0 0.0
      %1009 = vmatpush1.msra.mxu0 %v520
      %1010 = vmatprep.subr.mxu0 0.0
      %1011 = vmatpush1.msra.mxu0 %v521
      %1012 = vmatprep.subr.mxu0 0.0
      %1013 = vmatpush1.msra.mxu0 %v522
      %1014 = vmatprep.subr.mxu0 0.0
      %1015 = vmatpush1.msra.mxu0 %v523
      %1016 = vmatprep.subr.mxu0 0.0
      %1017 = vmatpush1.msra.mxu0 %v524
      %1018 = vmatprep.subr.mxu0 0.0
      %1019 = vmatpush1.msra.mxu0 %v525
      %1020 = vmatprep.subr.mxu0 0.0
      %1021 = vmatpush1.msra.mxu0 %v526
      %1022 = vmatprep.subr.mxu0 0.0
      %1023 = vmatpush1.msra.mxu0 %v527
      %1024 = vmatprep.subr.mxu0 0.0
      %1025 = vmatpush1.msra.mxu0 %v528
      %1026 = vmatprep.subr.mxu0 0.0
      %1027 = vmatpush1.msra.mxu0 %v529
      %1028 = vmatprep.subr.mxu0 0.0
      %1029 = vmatpush1.msra.mxu0 %v530
      %1030 = vmatprep.subr.mxu0 0.0
      %1031 = vmatpush1.msra.mxu0 %v531
      %1032 = vmatprep.subr.mxu0 0.0
      %1033 = vmatpush1.msra.mxu0 %v532
      %1034 = vmatprep.subr.mxu0 0.0
      %1035 = vmatpush1.msra.mxu0 %v533
      %1036 = vmatprep.subr.mxu0 0.0
      %1037 = vmatpush1.msra.mxu0 %v534
      %1038 = vmatprep.subr.mxu0 0.0
      %1039 = vmatpush1.msra.mxu0 %v535
      %1040 = vmatprep.subr.mxu0 0.0
      %1041 = vmatpush1.msra.mxu0 %v536
      %1042 = vmatprep.subr.mxu0 0.0
      %1043 = vmatpush1.msra.mxu0 %v537
      %1044 = vmatprep.subr.mxu0 0.0
      %1045 = vmatpush1.msra.mxu0 %v538
      %1046 = vmatprep.subr.mxu0 0.0
      %1047 = vmatpush1.msra.mxu0 %v539
      %1048 = vmatprep.subr.mxu0 0.0
      %1049 = vmatpush1.msra.mxu0 %v540
      %1050 = vmatprep.subr.mxu0 0.0
      %1051 = vmatpush1.msra.mxu0 %v541
      %1052 = vmatprep.subr.mxu0 0.0
      %1053 = vmatpush1.msra.mxu0 %v542
      %1054 = vmatprep.subr.mxu0 0.0
      %1055 = vmatpush1.msra.mxu0 %v543
      %1056 = vmatprep.subr.mxu0 0.0
      %1057 = vmatpush1.msra.mxu0 %v544
      %1058 = vmatprep.subr.mxu0 0.0
      %1059 = vmatpush1.msra.mxu0 %v545
      %1060 = vmatprep.mubr.f32.mxu0 %v263
      %1061 = vmatmul.mubr.f32.gmra.mrb[0].mxu0 %v262
      %v1062 = vpop.f32.mrb[0].mxu0
      %v1063 = vadd.f32 %v838, %v1062
      %v1064 = vpop.f32.mrb[0].mxu0
      %1065 = vmatprep.mubr.f32.mxu0 %v269
      %1066 = vmatmul.mubr.f32.gmra.mrb[0].mxu0 %v268
      %v1067 = vpop.f32.mrb[0].mxu0
      %v1068 = vadd.f32 %v843, %v1067
      %v1069 = vpop.f32.mrb[0].mxu0
      %1070 = vmatprep.mubr.f32.mxu0 %v275
      %1071 = vmatmul.mubr.f32.gmra.mrb[0].mxu0 %v274
      %v1072 = vpop.f32.mrb[0].mxu0
      %v1073 = vadd.f32 %v848, %v1072
      %v1074 = vpop.f32.mrb[0].mxu0
      %1075 = vmatprep.mubr.f32.mxu0 %v281
      %1076 = vmatmul.mubr.f32.gmra.mrb[0].mxu0 %v280
      %v1077 = vpop.f32.mrb[0].mxu0
      %v1078 = vadd.f32 %v853, %v1077
      %v1079 = vpop.f32.mrb[0].mxu0
      %1080 = vmatprep.mubr.f32.mxu0 %v287
      %1081 = vmatmul.mubr.f32.gmra.mrb[0].mxu0 %v286
      %v1082 = vpop.f32.mrb[0].mxu0
      %v1083 = vadd.f32 %v858, %v1082
      %v1084 = vpop.f32.mrb[0].mxu0
      %1085 = vmatprep.mubr.f32.mxu0 %v293
      %1086 = vmatmul.mubr.f32.gmra.mrb[0].mxu0 %v292
      %v1087 = vpop.f32.mrb[0].mxu0
      %v1088 = vadd.f32 %v863, %v1087
      %v1089 = vpop.f32.mrb[0].mxu0
      %1090 = vmatprep.mubr.f32.mxu0 %v299
      %1091 = vmatmul.mubr.f32.gmra.mrb[0].mxu0 %v298
      %v1092 = vpop.f32.mrb[0].mxu0
      %v1093 = vadd.f32 %v868, %v1092
      %v1094 = vpop.f32.mrb[0].mxu0
      %1095 = vmatprep.mubr.f32.mxu0 %v305
      %1096 = vmatmul.mubr.f32.gmra.mrb[0].mxu0 %v304
      %v1097 = vpop.f32.mrb[0].mxu0
      %v1098 = vadd.f32 %v873, %v1097
      %v1099 = vpop.f32.mrb[0].mxu0
      %1100 = vmatprep.mubr.f32.mxu0 %v311
      %1101 = vmatmul.mubr.f32.gmra.mrb[0].mxu0 %v310
      %v1102 = vpop.f32.mrb[0].mxu0
      %v1103 = vadd.f32 %v878, %v1102
      %v1104 = vpop.f32.mrb[0].mxu0
      %1105 = vmatprep.mubr.f32.mxu0 %v317
      %1106 = vmatmul.mubr.f32.gmra.mrb[0].mxu0 %v316
      %v1107 = vpop.f32.mrb[0].mxu0
      %v1108 = vadd.f32 %v883, %v1107
      %v1109 = vpop.f32.mrb[0].mxu0
      %1110 = vmatprep.mubr.f32.mxu0 %v323
      %1111 = vmatmul.mubr.f32.gmra.mrb[0].mxu0 %v322
      %v1112 = vpop.f32.mrb[0].mxu0
      %v1113 = vadd.f32 %v888, %v1112
      %v1114 = vpop.f32.mrb[0].mxu0
      %1115 = vmatprep.mubr.f32.mxu0 %v329
      %1116 = vmatmul.mubr.f32.gmra.mrb[0].mxu0 %v328
      %v1117 = vpop.f32.mrb[0].mxu0
      %v1118 = vadd.f32 %v893, %v1117
      %v1119 = vpop.f32.mrb[0].mxu0
      %1120 = vmatprep.mubr.f32.mxu0 %v335
      %1121 = vmatmul.mubr.f32.gmra.mrb[0].mxu0 %v334
      %v1122 = vpop.f32.mrb[0].mxu0
      %v1123 = vadd.f32 %v898, %v1122
      %v1124 = vpop.f32.mrb[0].mxu0
      %1125 = vmatprep.mubr.f32.mxu0 %v341
      %1126 = vmatmul.mubr.f32.gmra.mrb[0].mxu0 %v340
      %v1127 = vpop.f32.mrb[0].mxu0
      %v1128 = vadd.f32 %v903, %v1127
      %v1129 = vpop.f32.mrb[0].mxu0
      %1130 = vmatprep.mubr.f32.mxu0 %v347
      %1131 = vmatmul.mubr.f32.gmra.mrb[0].mxu0 %v346
      %v1132 = vpop.f32.mrb[0].mxu0
      %v1133 = vadd.f32 %v908, %v1132
      %v1134 = vpop.f32.mrb[0].mxu0
      %1135 = vmatprep.mubr.f32.mxu0 %v353
      %1136 = vmatmul.mubr.f32.gmra.mrb[0].mxu0 %v352
      %v1137 = vpop.f32.mrb[0].mxu0
      %v1138 = vadd.f32 %v913, %v1137
      %v1139 = vpop.f32.mrb[0].mxu0
      %1140 = vmatprep.mubr.f32.mxu0 %v359
      %1141 = vmatmul.mubr.f32.gmra.mrb[0].mxu0 %v358
      %v1142 = vpop.f32.mrb[0].mxu0
      %v1143 = vadd.f32 %v918, %v1142
      %v1144 = vpop.f32.mrb[0].mxu0
      %1145 = vmatprep.mubr.f32.mxu0 %v365
      %1146 = vmatmul.mubr.f32.gmra.mrb[0].mxu0 %v364
      %v1147 = vpop.f32.mrb[0].mxu0
      %v1148 = vadd.f32 %v923, %v1147
      %v1149 = vpop.f32.mrb[0].mxu0
      %1150 = vmatprep.mubr.f32.mxu0 %v371
      %1151 = vmatmul.mubr.f32.gmra.mrb[0].mxu0 %v370
      %v1152 = vpop.f32.mrb[0].mxu0
      %v1153 = vadd.f32 %v928, %v1152
      %v1154 = vpop.f32.mrb[0].mxu0
      %1155 = vmatprep.mubr.f32.mxu0 %v377
      %1156 = vmatmul.mubr.f32.gmra.mrb[0].mxu0 %v376
      %v1157 = vpop.f32.mrb[0].mxu0
      %v1158 = vadd.f32 %v933, %v1157
      %v1159 = vpop.f32.mrb[0].mxu0
      %1160 = vmatprep.mubr.f32.mxu0 %v383
      %1161 = vmatmul.mubr.f32.gmra.mrb[0].mxu0 %v382
      %v1162 = vpop.f32.mrb[0].mxu0
      %v1163 = vadd.f32 %v938, %v1162
      %v1164 = vpop.f32.mrb[0].mxu0
      %1165 = vmatprep.mubr.f32.mxu0 %v389
      %1166 = vmatmul.mubr.f32.gmra.mrb[0].mxu0 %v388
      %v1167 = vpop.f32.mrb[0].mxu0
      %v1168 = vadd.f32 %v943, %v1167
      %v1169 = vpop.f32.mrb[0].mxu0
      %1170 = vmatprep.mubr.f32.mxu0 %v395
      %1171 = vmatmul.mubr.f32.gmra.mrb[0].mxu0 %v394
      %v1172 = vpop.f32.mrb[0].mxu0
      %v1173 = vadd.f32 %v948, %v1172
      %v1174 = vpop.f32.mrb[0].mxu0
      %1175 = vmatprep.mubr.f32.mxu0 %v401
      %1176 = vmatmul.mubr.f32.gmra.mrb[0].mxu0 %v400
      %v1177 = vpop.f32.mrb[0].mxu0
      %v1178 = vadd.f32 %v953, %v1177
      %v1179 = vpop.f32.mrb[0].mxu0
      %1180 = vmatprep.mubr.f32.mxu0 %v407
      %1181 = vmatmul.mubr.f32.gmra.mrb[0].mxu0 %v406
      %v1182 = vpop.f32.mrb[0].mxu0
      %v1183 = vadd.f32 %v958, %v1182
      %v1184 = vpop.f32.mrb[0].mxu0
      %1185 = vmatprep.mubr.f32.mxu0 %v413
      %1186 = vmatmul.mubr.f32.gmra.mrb[0].mxu0 %v412
      %v1187 = vpop.f32.mrb[0].mxu0
      %v1188 = vadd.f32 %v963, %v1187
      %v1189 = vpop.f32.mrb[0].mxu0
      %1190 = vmatprep.mubr.f32.mxu0 %v419
      %1191 = vmatmul.mubr.f32.gmra.mrb[0].mxu0 %v418
      %v1192 = vpop.f32.mrb[0].mxu0
      %v1193 = vadd.f32 %v968, %v1192
      %v1194 = vpop.f32.mrb[0].mxu0
      %1195 = vmatprep.mubr.f32.mxu0 %v425
      %1196 = vmatmul.mubr.f32.gmra.mrb[0].mxu0 %v424
      %v1197 = vpop.f32.mrb[0].mxu0
      %v1198 = vadd.f32 %v973, %v1197
      %v1199 = vpop.f32.mrb[0].mxu0
      %1200 = vmatprep.mubr.f32.mxu0 %v431
      %1201 = vmatmul.mubr.f32.gmra.mrb[0].mxu0 %v430
      %v1202 = vpop.f32.mrb[0].mxu0
      %v1203 = vadd.f32 %v978, %v1202
      %v1204 = vpop.f32.mrb[0].mxu0
      %1205 = vmatprep.mubr.f32.mxu0 %v437
      %1206 = vmatmul.mubr.f32.gmra.mrb[0].mxu0 %v436
      %v1207 = vpop.f32.mrb[0].mxu0
      %v1208 = vadd.f32 %v983, %v1207
      %v1209 = vpop.f32.mrb[0].mxu0
      %1210 = vmatprep.mubr.f32.mxu0 %v443
      %1211 = vmatmul.mubr.f32.gmra.mrb[0].mxu0 %v442
      %v1212 = vpop.f32.mrb[0].mxu0
      %v1213 = vadd.f32 %v988, %v1212
      %v1214 = vpop.f32.mrb[0].mxu0
      %1215 = vmatprep.mubr.f32.mxu0 %v449
      %1216 = vmatmul.mubr.f32.gmra.mrb[0].mxu0 %v448
      %v1217 = vpop.f32.mrb[0].mxu0
      %v1218 = vadd.f32 %v993, %v1217
      %v1219 = vpop.f32.mrb[0].mxu0
      %1220 = vdwg.mxu0
      %v1221 = vld [vmem:[%s2] sm:$0xff]
      %v1222 = vld [vmem:[%s2 + $0x8] sm:$0xff]
      %v1223 = vld [vmem:[%s2 + $0x10] sm:$0xff]
      %v1224 = vld [vmem:[%s2 + $0x18] sm:$0xff]
      %v1225 = vld [vmem:[%s2 + $0x20] sm:$0xff]
      %v1226 = vld [vmem:[%s2 + $0x28] sm:$0xff]
      %v1227 = vld [vmem:[%s2 + $0x30] sm:$0xff]
      %v1228 = vld [vmem:[%s2 + $0x38] sm:$0xff]
      %v1229 = vld [vmem:[%s2 + $0x40] sm:$0xff]
      %v1230 = vld [vmem:[%s2 + $0x48] sm:$0xff]
      %v1231 = vld [vmem:[%s2 + $0x50] sm:$0xff]
      %v1232 = vld [vmem:[%s2 + $0x58] sm:$0xff]
      %v1233 = vld [vmem:[%s2 + $0x60] sm:$0xff]
      %v1234 = vld [vmem:[%s2 + $0x68] sm:$0xff]
      %v1235 = vld [vmem:[%s2 + $0x70] sm:$0xff]
      %v1236 = vld [vmem:[%s2 + $0x78] sm:$0xff]
      %v1237 = vld [vmem:[%s2 + $0x80] sm:$0xff]
      %v1238 = vld [vmem:[%s2 + $0x88] sm:$0xff]
      %v1239 = vld [vmem:[%s2 + $0x90] sm:$0xff]
      %v1240 = vld [vmem:[%s2 + $0x98] sm:$0xff]
      %v1241 = vld [vmem:[%s2 + $0xa0] sm:$0xff]
      %v1242 = vld [vmem:[%s2 + $0xa8] sm:$0xff]
      %v1243 = vld [vmem:[%s2 + $0xb0] sm:$0xff]
      %v1244 = vld [vmem:[%s2 + $0xb8] sm:$0xff]
      %v1245 = vld [vmem:[%s2 + $0xc0] sm:$0xff]
      %v1246 = vld [vmem:[%s2 + $0xc8] sm:$0xff]
      %v1247 = vld [vmem:[%s2 + $0xd0] sm:$0xff]
      %v1248 = vld [vmem:[%s2 + $0xd8] sm:$0xff]
      %v1249 = vld [vmem:[%s2 + $0xe0] sm:$0xff]
      %v1250 = vld [vmem:[%s2 + $0xe8] sm:$0xff]
      %v1251 = vld [vmem:[%s2 + $0xf0] sm:$0xff]
      %v1252 = vld [vmem:[%s2 + $0xf8] sm:$0xff]
      %1253 = vmatprep.subr.mxu0 %v1222
      %1254 = vmatpush1.msra.mxu0 %v1221
      %1255 = vmatprep.subr.mxu0 %v1224
      %1256 = vmatpush1.msra.mxu0 %v1223
      %1257 = vmatprep.subr.mxu0 %v1226
      %1258 = vmatpush1.msra.mxu0 %v1225
      %1259 = vmatprep.subr.mxu0 %v1228
      %1260 = vmatpush1.msra.mxu0 %v1227
      %1261 = vmatprep.subr.mxu0 %v1230
      %1262 = vmatpush1.msra.mxu0 %v1229
      %1263 = vmatprep.subr.mxu0 %v1232
      %1264 = vmatpush1.msra.mxu0 %v1231
      %1265 = vmatprep.subr.mxu0 %v1234
      %1266 = vmatpush1.msra.mxu0 %v1233
      %1267 = vmatprep.subr.mxu0 %v1236
      %1268 = vmatpush1.msra.mxu0 %v1235
      %1269 = vmatprep.subr.mxu0 %v1238
      %1270 = vmatpush1.msra.mxu0 %v1237
      %1271 = vmatprep.subr.mxu0 %v1240
      %1272 = vmatpush1.msra.mxu0 %v1239
      %1273 = vmatprep.subr.mxu0 %v1242
      %1274 = vmatpush1.msra.mxu0 %v1241
      %1275 = vmatprep.subr.mxu0 %v1244
      %1276 = vmatpush1.msra.mxu0 %v1243
      %1277 = vmatprep.subr.mxu0 %v1246
      %1278 = vmatpush1.msra.mxu0 %v1245
      %1279 = vmatprep.subr.mxu0 %v1248
      %1280 = vmatpush1.msra.mxu0 %v1247
      %1281 = vmatprep.subr.mxu0 %v1250
      %1282 = vmatpush1.msra.mxu0 %v1249
      %1283 = vmatprep.subr.mxu0 %v1252
      %1284 = vmatpush1.msra.mxu0 %v1251
      %1285 = vmatprep.subr.mxu0 0.0
      %1286 = vmatpush1.msra.mxu0 0.0
      %1287 = vmatprep.subr.mxu0 0.0
      %1288 = vmatpush1.msra.mxu0 0.0
      %1289 = vmatprep.subr.mxu0 0.0
      %1290 = vmatpush1.msra.mxu0 0.0
      %1291 = vmatprep.subr.mxu0 0.0
      %1292 = vmatpush1.msra.mxu0 0.0
      %1293 = vmatprep.subr.mxu0 0.0
      %1294 = vmatpush1.msra.mxu0 0.0
      %1295 = vmatprep.subr.mxu0 0.0
      %1296 = vmatpush1.msra.mxu0 0.0
      %1297 = vmatprep.subr.mxu0 0.0
      %1298 = vmatpush1.msra.mxu0 0.0
      %1299 = vmatprep.subr.mxu0 0.0
      %1300 = vmatpush1.msra.mxu0 0.0
      %1301 = vmatprep.subr.mxu0 0.0
      %1302 = vmatpush1.msra.mxu0 0.0
      %1303 = vmatprep.subr.mxu0 0.0
      %1304 = vmatpush1.msra.mxu0 0.0
      %1305 = vmatprep.subr.mxu0 0.0
      %1306 = vmatpush1.msra.mxu0 0.0
      %1307 = vmatprep.subr.mxu0 0.0
      %1308 = vmatpush1.msra.mxu0 0.0
      %1309 = vmatprep.subr.mxu0 0.0
      %1310 = vmatpush1.msra.mxu0 0.0
      %1311 = vmatprep.subr.mxu0 0.0
      %1312 = vmatpush1.msra.mxu0 0.0
      %1313 = vmatprep.subr.mxu0 0.0
      %1314 = vmatpush1.msra.mxu0 0.0
      %1315 = vmatprep.subr.mxu0 0.0
      %1316 = vmatpush1.msra.mxu0 0.0
      %1317 = vmatprep.mubr.f32.mxu0 0.0
      %1318 = vmatmul.mubr.f32.gmra.mrb[0].mxu0 %v1063
      %v1319 = vpop.f32.mrb[0].mxu0
      %v1320 = vadd.f32 0.0, %v1319
      %v1321 = vpop.f32.mrb[0].mxu0
      %v1322 = vadd.f32 0.0, %v1321
      %1323 = vmatprep.mubr.f32.mxu0 0.0
      %1324 = vmatmul.mubr.f32.gmra.mrb[0].mxu0 %v1068
      %v1325 = vpop.f32.mrb[0].mxu0
      %v1326 = vadd.f32 0.0, %v1325
      %v1327 = vpop.f32.mrb[0].mxu0
      %v1328 = vadd.f32 0.0, %v1327
      %1329 = vmatprep.mubr.f32.mxu0 0.0
      %1330 = vmatmul.mubr.f32.gmra.mrb[0].mxu0 %v1073
      %v1331 = vpop.f32.mrb[0].mxu0
      %v1332 = vadd.f32 0.0, %v1331
      %v1333 = vpop.f32.mrb[0].mxu0
      %v1334 = vadd.f32 0.0, %v1333
      %1335 = vmatprep.mubr.f32.mxu0 0.0
      %1336 = vmatmul.mubr.f32.gmra.mrb[0].mxu0 %v1078
      %v1337 = vpop.f32.mrb[0].mxu0
      %v1338 = vadd.f32 0.0, %v1337
      %v1339 = vpop.f32.mrb[0].mxu0
      %v1340 = vadd.f32 0.0, %v1339
      %1341 = vmatprep.mubr.f32.mxu0 0.0
      %1342 = vmatmul.mubr.f32.gmra.mrb[0].mxu0 %v1083
      %v1343 = vpop.f32.mrb[0].mxu0
      %v1344 = vadd.f32 0.0, %v1343
      %v1345 = vpop.f32.mrb[0].mxu0
      %v1346 = vadd.f32 0.0, %v1345
      %1347 = vmatprep.mubr.f32.mxu0 0.0
      %1348 = vmatmul.mubr.f32.gmra.mrb[0].mxu0 %v1088
      %v1349 = vpop.f32.mrb[0].mxu0
      %v1350 = vadd.f32 0.0, %v1349
      %v1351 = vpop.f32.mrb[0].mxu0
      %v1352 = vadd.f32 0.0, %v1351
      %1353 = vmatprep.mubr.f32.mxu0 0.0
      %1354 = vmatmul.mubr.f32.gmra.mrb[0].mxu0 %v1093
      %v1355 = vpop.f32.mrb[0].mxu0
      %v1356 = vadd.f32 0.0, %v1355
      %v1357 = vpop.f32.mrb[0].mxu0
      %v1358 = vadd.f32 0.0, %v1357
      %1359 = vmatprep.mubr.f32.mxu0 0.0
      %1360 = vmatmul.mubr.f32.gmra.mrb[0].mxu0 %v1098
      %v1361 = vpop.f32.mrb[0].mxu0
      %v1362 = vadd.f32 0.0, %v1361
      %v1363 = vpop.f32.mrb[0].mxu0
      %v1364 = vadd.f32 0.0, %v1363
      %1365 = vmatprep.mubr.f32.mxu0 0.0
      %1366 = vmatmul.mubr.f32.gmra.mrb[0].mxu0 %v1103
      %v1367 = vpop.f32.mrb[0].mxu0
      %v1368 = vadd.f32 0.0, %v1367
      %v1369 = vpop.f32.mrb[0].mxu0
      %v1370 = vadd.f32 0.0, %v1369
      %1371 = vmatprep.mubr.f32.mxu0 0.0
      %1372 = vmatmul.mubr.f32.gmra.mrb[0].mxu0 %v1108
      %v1373 = vpop.f32.mrb[0].mxu0
      %v1374 = vadd.f32 0.0, %v1373
      %v1375 = vpop.f32.mrb[0].mxu0
      %v1376 = vadd.f32 0.0, %v1375
      %1377 = vmatprep.mubr.f32.mxu0 0.0
      %1378 = vmatmul.mubr.f32.gmra.mrb[0].mxu0 %v1113
      %v1379 = vpop.f32.mrb[0].mxu0
      %v1380 = vadd.f32 0.0, %v1379
      %v1381 = vpop.f32.mrb[0].mxu0
      %v1382 = vadd.f32 0.0, %v1381
      %1383 = vmatprep.mubr.f32.mxu0 0.0
      %1384 = vmatmul.mubr.f32.gmra.mrb[0].mxu0 %v1118
      %v1385 = vpop.f32.mrb[0].mxu0
      %v1386 = vadd.f32 0.0, %v1385
      %v1387 = vpop.f32.mrb[0].mxu0
      %v1388 = vadd.f32 0.0, %v1387
      %1389 = vmatprep.mubr.f32.mxu0 0.0
      %1390 = vmatmul.mubr.f32.gmra.mrb[0].mxu0 %v1123
      %v1391 = vpop.f32.mrb[0].mxu0
      %v1392 = vadd.f32 0.0, %v1391
      %v1393 = vpop.f32.mrb[0].mxu0
      %v1394 = vadd.f32 0.0, %v1393
      %1395 = vmatprep.mubr.f32.mxu0 0.0
      %1396 = vmatmul.mubr.f32.gmra.mrb[0].mxu0 %v1128
      %v1397 = vpop.f32.mrb[0].mxu0
      %v1398 = vadd.f32 0.0, %v1397
      %v1399 = vpop.f32.mrb[0].mxu0
      %v1400 = vadd.f32 0.0, %v1399
      %1401 = vmatprep.mubr.f32.mxu0 0.0
      %1402 = vmatmul.mubr.f32.gmra.mrb[0].mxu0 %v1133
      %v1403 = vpop.f32.mrb[0].mxu0
      %v1404 = vadd.f32 0.0, %v1403
      %v1405 = vpop.f32.mrb[0].mxu0
      %v1406 = vadd.f32 0.0, %v1405
      %1407 = vmatprep.mubr.f32.mxu0 0.0
      %1408 = vmatmul.mubr.f32.gmra.mrb[0].mxu0 %v1138
      %v1409 = vpop.f32.mrb[0].mxu0
      %v1410 = vadd.f32 0.0, %v1409
      %v1411 = vpop.f32.mrb[0].mxu0
      %v1412 = vadd.f32 0.0, %v1411
      %1413 = vmatprep.mubr.f32.mxu0 0.0
      %1414 = vmatmul.mubr.f32.gmra.mrb[0].mxu0 %v1143
      %v1415 = vpop.f32.mrb[0].mxu0
      %v1416 = vadd.f32 0.0, %v1415
      %v1417 = vpop.f32.mrb[0].mxu0
      %v1418 = vadd.f32 0.0, %v1417
      %1419 = vmatprep.mubr.f32.mxu0 0.0
      %1420 = vmatmul.mubr.f32.gmra.mrb[0].mxu0 %v1148
      %v1421 = vpop.f32.mrb[0].mxu0
      %v1422 = vadd.f32 0.0, %v1421
      %v1423 = vpop.f32.mrb[0].mxu0
      %v1424 = vadd.f32 0.0, %v1423
      %1425 = vmatprep.mubr.f32.mxu0 0.0
      %1426 = vmatmul.mubr.f32.gmra.mrb[0].mxu0 %v1153
      %v1427 = vpop.f32.mrb[0].mxu0
      %v1428 = vadd.f32 0.0, %v1427
      %v1429 = vpop.f32.mrb[0].mxu0
      %v1430 = vadd.f32 0.0, %v1429
      %1431 = vmatprep.mubr.f32.mxu0 0.0
      %1432 = vmatmul.mubr.f32.gmra.mrb[0].mxu0 %v1158
      %v1433 = vpop.f32.mrb[0].mxu0
      %v1434 = vadd.f32 0.0, %v1433
      %v1435 = vpop.f32.mrb[0].mxu0
      %v1436 = vadd.f32 0.0, %v1435
      %1437 = vmatprep.mubr.f32.mxu0 0.0
      %1438 = vmatmul.mubr.f32.gmra.mrb[0].mxu0 %v1163
      %v1439 = vpop.f32.mrb[0].mxu0
      %v1440 = vadd.f32 0.0, %v1439
      %v1441 = vpop.f32.mrb[0].mxu0
      %v1442 = vadd.f32 0.0, %v1441
      %1443 = vmatprep.mubr.f32.mxu0 0.0
      %1444 = vmatmul.mubr.f32.gmra.mrb[0].mxu0 %v1168
      %v1445 = vpop.f32.mrb[0].mxu0
      %v1446 = vadd.f32 0.0, %v1445
      %v1447 = vpop.f32.mrb[0].mxu0
      %v1448 = vadd.f32 0.0, %v1447
      %1449 = vmatprep.mubr.f32.mxu0 0.0
      %1450 = vmatmul.mubr.f32.gmra.mrb[0].mxu0 %v1173
      %v1451 = vpop.f32.mrb[0].mxu0
      %v1452 = vadd.f32 0.0, %v1451
      %v1453 = vpop.f32.mrb[0].mxu0
      %v1454 = vadd.f32 0.0, %v1453
      %1455 = vmatprep.mubr.f32.mxu0 0.0
      %1456 = vmatmul.mubr.f32.gmra.mrb[0].mxu0 %v1178
      %v1457 = vpop.f32.mrb[0].mxu0
      %v1458 = vadd.f32 0.0, %v1457
      %v1459 = vpop.f32.mrb[0].mxu0
      %v1460 = vadd.f32 0.0, %v1459
      %1461 = vmatprep.mubr.f32.mxu0 0.0
      %1462 = vmatmul.mubr.f32.gmra.mrb[0].mxu0 %v1183
      %v1463 = vpop.f32.mrb[0].mxu0
      %v1464 = vadd.f32 0.0, %v1463
      %v1465 = vpop.f32.mrb[0].mxu0
      %v1466 = vadd.f32 0.0, %v1465
      %1467 = vmatprep.mubr.f32.mxu0 0.0
      %1468 = vmatmul.mubr.f32.gmra.mrb[0].mxu0 %v1188
      %v1469 = vpop.f32.mrb[0].mxu0
      %v1470 = vadd.f32 0.0, %v1469
      %v1471 = vpop.f32.mrb[0].mxu0
      %v1472 = vadd.f32 0.0, %v1471
      %1473 = vmatprep.mubr.f32.mxu0 0.0
      %1474 = vmatmul.mubr.f32.gmra.mrb[0].mxu0 %v1193
      %v1475 = vpop.f32.mrb[0].mxu0
      %v1476 = vadd.f32 0.0, %v1475
      %v1477 = vpop.f32.mrb[0].mxu0
      %v1478 = vadd.f32 0.0, %v1477
      %1479 = vmatprep.mubr.f32.mxu0 0.0
      %1480 = vmatmul.mubr.f32.gmra.mrb[0].mxu0 %v1198
      %v1481 = vpop.f32.mrb[0].mxu0
      %v1482 = vadd.f32 0.0, %v1481
      %v1483 = vpop.f32.mrb[0].mxu0
      %v1484 = vadd.f32 0.0, %v1483
      %1485 = vmatprep.mubr.f32.mxu0 0.0
      %1486 = vmatmul.mubr.f32.gmra.mrb[0].mxu0 %v1203
      %v1487 = vpop.f32.mrb[0].mxu0
      %v1488 = vadd.f32 0.0, %v1487
      %v1489 = vpop.f32.mrb[0].mxu0
      %v1490 = vadd.f32 0.0, %v1489
      %1491 = vmatprep.mubr.f32.mxu0 0.0
      %1492 = vmatmul.mubr.f32.gmra.mrb[0].mxu0 %v1208
      %v1493 = vpop.f32.mrb[0].mxu0
      %v1494 = vadd.f32 0.0, %v1493
      %v1495 = vpop.f32.mrb[0].mxu0
      %v1496 = vadd.f32 0.0, %v1495
      %1497 = vmatprep.mubr.f32.mxu0 0.0
      %1498 = vmatmul.mubr.f32.gmra.mrb[0].mxu0 %v1213
      %v1499 = vpop.f32.mrb[0].mxu0
      %v1500 = vadd.f32 0.0, %v1499
      %v1501 = vpop.f32.mrb[0].mxu0
      %v1502 = vadd.f32 0.0, %v1501
      %1503 = vmatprep.mubr.f32.mxu0 0.0
      %1504 = vmatmul.mubr.f32.gmra.mrb[0].mxu0 %v1218
      %v1505 = vpop.f32.mrb[0].mxu0
      %v1506 = vadd.f32 0.0, %v1505
      %v1507 = vpop.f32.mrb[0].mxu0
      %v1508 = vadd.f32 0.0, %v1507
      %1509 = vdwg.mxu0
      %1510 = vst [vmem:[%s244] sm:$0xff] %v1320
      %1511 = vst [vmem:[%s244 + $0x8] sm:$0xff] %v1326
      %1512 = vst [vmem:[%s244 + $0x10] sm:$0xff] %v1332
      %1513 = vst [vmem:[%s244 + $0x18] sm:$0xff] %v1338
      %1514 = vst [vmem:[%s244 + $0x20] sm:$0xff] %v1344
      %1515 = vst [vmem:[%s244 + $0x28] sm:$0xff] %v1350
      %1516 = vst [vmem:[%s244 + $0x30] sm:$0xff] %v1356
      %1517 = vst [vmem:[%s244 + $0x38] sm:$0xff] %v1362
      %1518 = vst [vmem:[%s244 + $0x40] sm:$0xff] %v1368
      %1519 = vst [vmem:[%s244 + $0x48] sm:$0xff] %v1374
      %1520 = vst [vmem:[%s244 + $0x50] sm:$0xff] %v1380
      %1521 = vst [vmem:[%s244 + $0x58] sm:$0xff] %v1386
      %1522 = vst [vmem:[%s244 + $0x60] sm:$0xff] %v1392
      %1523 = vst [vmem:[%s244 + $0x68] sm:$0xff] %v1398
      %1524 = vst [vmem:[%s244 + $0x70] sm:$0xff] %v1404
      %1525 = vst [vmem:[%s244 + $0x78] sm:$0xff] %v1410
      %1526 = vst [vmem:[%s244 + $0x80] sm:$0xff] %v1416
      %1527 = vst [vmem:[%s244 + $0x88] sm:$0xff] %v1422
      %1528 = vst [vmem:[%s244 + $0x90] sm:$0xff] %v1428
      %1529 = vst [vmem:[%s244 + $0x98] sm:$0xff] %v1434
      %1530 = vst [vmem:[%s244 + $0xa0] sm:$0xff] %v1440
      %1531 = vst [vmem:[%s244 + $0xa8] sm:$0xff] %v1446
      %1532 = vst [vmem:[%s244 + $0xb0] sm:$0xff] %v1452
      %1533 = vst [vmem:[%s244 + $0xb8] sm:$0xff] %v1458
      %1534 = vst [vmem:[%s244 + $0xc0] sm:$0xff] %v1464
      %1535 = vst [vmem:[%s244 + $0xc8] sm:$0xff] %v1470
      %1536 = vst [vmem:[%s244 + $0xd0] sm:$0xff] %v1476
      %1537 = vst [vmem:[%s244 + $0xd8] sm:$0xff] %v1482
      %1538 = vst [vmem:[%s244 + $0xe0] sm:$0xff] %v1488
      %1539 = vst [vmem:[%s244 + $0xe8] sm:$0xff] %v1494
      %1540 = vst [vmem:[%s244 + $0xf0] sm:$0xff] %v1500
      %1541 = vst [vmem:[%s244 + $0xf8] sm:$0xff] %v1506
      %1542 = vst [vmem:[%s250] sm:$0xff] %v1322
      %1543 = vst [vmem:[%s250 + $0x8] sm:$0xff] %v1328
      %1544 = vst [vmem:[%s250 + $0x10] sm:$0xff] %v1334
      %1545 = vst [vmem:[%s250 + $0x18] sm:$0xff] %v1340
      %1546 = vst [vmem:[%s250 + $0x20] sm:$0xff] %v1346
      %1547 = vst [vmem:[%s250 + $0x28] sm:$0xff] %v1352
      %1548 = vst [vmem:[%s250 + $0x30] sm:$0xff] %v1358
      %1549 = vst [vmem:[%s250 + $0x38] sm:$0xff] %v1364
      %1550 = vst [vmem:[%s250 + $0x40] sm:$0xff] %v1370
      %1551 = vst [vmem:[%s250 + $0x48] sm:$0xff] %v1376
      %1552 = vst [vmem:[%s250 + $0x50] sm:$0xff] %v1382
      %1553 = vst [vmem:[%s250 + $0x58] sm:$0xff] %v1388
      %1554 = vst [vmem:[%s250 + $0x60] sm:$0xff] %v1394
      %1555 = vst [vmem:[%s250 + $0x68] sm:$0xff] %v1400
      %1556 = vst [vmem:[%s250 + $0x70] sm:$0xff] %v1406
      %1557 = vst [vmem:[%s250 + $0x78] sm:$0xff] %v1412
      %1558 = vst [vmem:[%s250 + $0x80] sm:$0xff] %v1418
      %1559 = vst [vmem:[%s250 + $0x88] sm:$0xff] %v1424
      %1560 = vst [vmem:[%s250 + $0x90] sm:$0xff] %v1430
      %1561 = vst [vmem:[%s250 + $0x98] sm:$0xff] %v1436
      %1562 = vst [vmem:[%s250 + $0xa0] sm:$0xff] %v1442
      %1563 = vst [vmem:[%s250 + $0xa8] sm:$0xff] %v1448
      %1564 = vst [vmem:[%s250 + $0xb0] sm:$0xff] %v1454
      %1565 = vst [vmem:[%s250 + $0xb8] sm:$0xff] %v1460
      %1566 = vst [vmem:[%s250 + $0xc0] sm:$0xff] %v1466
      %1567 = vst [vmem:[%s250 + $0xc8] sm:$0xff] %v1472
      %1568 = vst [vmem:[%s250 + $0xd0] sm:$0xff] %v1478
      %1569 = vst [vmem:[%s250 + $0xd8] sm:$0xff] %v1484
      %1570 = vst [vmem:[%s250 + $0xe0] sm:$0xff] %v1490
      %1571 = vst [vmem:[%s250 + $0xe8] sm:$0xff] %v1496
      %1572 = vst [vmem:[%s250 + $0xf0] sm:$0xff] %v1502
      %1573 = vst [vmem:[%s250 + $0xf8] sm:$0xff] %v1508
      %v1574 = vpack.c.bf16 %v1326, %v1320
      %v1575 = vpack.c.bf16 %v1338, %v1332
      %v1576 = vpack.c.bf16 %v1350, %v1344
      %v1577 = vpack.c.bf16 %v1362, %v1356
      %v1578 = vpack.c.bf16 %v1374, %v1368
      %v1579 = vpack.c.bf16 %v1386, %v1380
      %v1580 = vpack.c.bf16 %v1398, %v1392
      %v1581 = vpack.c.bf16 %v1410, %v1404
      %v1582 = vpack.c.bf16 %v1422, %v1416
      %v1583 = vpack.c.bf16 %v1434, %v1428
      %v1584 = vpack.c.bf16 %v1446, %v1440
      %v1585 = vpack.c.bf16 %v1458, %v1452
      %v1586 = vpack.c.bf16 %v1470, %v1464
      %v1587 = vpack.c.bf16 %v1482, %v1476
      %v1588 = vpack.c.bf16 %v1494, %v1488
      %v1589 = vpack.c.bf16 %v1506, %v1500
      %v1606 = vunpack.c.l.b16 %v1574
      %v1607 = vunpack.c.h.b16 %v1574
      %v1608 = vunpack.c.l.b16 %v1575
      %v1609 = vunpack.c.h.b16 %v1575
      %v1610 = vunpack.c.l.b16 %v1576
      %v1611 = vunpack.c.h.b16 %v1576
      %v1612 = vunpack.c.l.b16 %v1577
      %v1613 = vunpack.c.h.b16 %v1577
      %v1614 = vunpack.c.l.b16 %v1578
      %v1615 = vunpack.c.h.b16 %v1578
      %v1616 = vunpack.c.l.b16 %v1579
      %v1617 = vunpack.c.h.b16 %v1579
      %v1618 = vunpack.c.l.b16 %v1580
      %v1619 = vunpack.c.h.b16 %v1580
      %v1620 = vunpack.c.l.b16 %v1581
      %v1621 = vunpack.c.h.b16 %v1581
      %v1622 = vunpack.c.l.b16 %v1582
      %v1623 = vunpack.c.h.b16 %v1582
      %v1624 = vunpack.c.l.b16 %v1583
      %v1625 = vunpack.c.h.b16 %v1583
      %v1626 = vunpack.c.l.b16 %v1584
      %v1627 = vunpack.c.h.b16 %v1584
      %v1628 = vunpack.c.l.b16 %v1585
      %v1629 = vunpack.c.h.b16 %v1585
      %v1630 = vunpack.c.l.b16 %v1586
      %v1631 = vunpack.c.h.b16 %v1586
      %v1632 = vunpack.c.l.b16 %v1587
      %v1633 = vunpack.c.h.b16 %v1587
      %v1634 = vunpack.c.l.b16 %v1588
      %v1635 = vunpack.c.h.b16 %v1588
      %v1636 = vunpack.c.l.b16 %v1589
      %v1637 = vunpack.c.h.b16 %v1589
      %v1638 = vpack.c.b16 %v1606, %v1606
      %v1639 = vpack.c.b16 %v1607, %v1607
      %v1640 = vpack.c.b16 %v1608, %v1608
      %v1641 = vpack.c.b16 %v1609, %v1609
      %v1642 = vpack.c.b16 %v1610, %v1610
      %v1643 = vpack.c.b16 %v1611, %v1611
      %v1644 = vpack.c.b16 %v1612, %v1612
      %v1645 = vpack.c.b16 %v1613, %v1613
      %v1646 = vpack.c.b16 %v1614, %v1614
      %v1647 = vpack.c.b16 %v1615, %v1615
      %v1648 = vpack.c.b16 %v1616, %v1616
      %v1649 = vpack.c.b16 %v1617, %v1617
      %v1650 = vpack.c.b16 %v1618, %v1618
      %v1651 = vpack.c.b16 %v1619, %v1619
      %v1652 = vpack.c.b16 %v1620, %v1620
      %v1653 = vpack.c.b16 %v1621, %v1621
      %v1654 = vpack.c.b16 %v1622, %v1622
      %v1655 = vpack.c.b16 %v1623, %v1623
      %v1656 = vpack.c.b16 %v1624, %v1624
      %v1657 = vpack.c.b16 %v1625, %v1625
      %v1658 = vpack.c.b16 %v1626, %v1626
      %v1659 = vpack.c.b16 %v1627, %v1627
      %v1660 = vpack.c.b16 %v1628, %v1628
      %v1661 = vpack.c.b16 %v1629, %v1629
      %v1662 = vpack.c.b16 %v1630, %v1630
      %v1663 = vpack.c.b16 %v1631, %v1631
      %v1664 = vpack.c.b16 %v1632, %v1632
      %v1665 = vpack.c.b16 %v1633, %v1633
      %v1666 = vpack.c.b16 %v1634, %v1634
      %v1667 = vpack.c.b16 %v1635, %v1635
      %v1668 = vpack.c.b16 %v1636, %v1636
      %v1669 = vpack.c.b16 %v1637, %v1637
      %1702 = vst [vmem:[%s256] sm:$0xf] %v1638
      %1703 = vst [vmem:[%s256 + $0x4] sm:$0xf] %v1639
      %1704 = vst [vmem:[%s256 + $0x8] sm:$0xf] %v1640
      %1705 = vst [vmem:[%s256 + $0xc] sm:$0xf] %v1641
      %1706 = vst [vmem:[%s256 + $0x10] sm:$0xf] %v1642
      %1707 = vst [vmem:[%s256 + $0x14] sm:$0xf] %v1643
      %1708 = vst [vmem:[%s256 + $0x18] sm:$0xf] %v1644
      %1709 = vst [vmem:[%s256 + $0x1c] sm:$0xf] %v1645
      %1710 = vst [vmem:[%s256 + $0x20] sm:$0xf] %v1646
      %1711 = vst [vmem:[%s256 + $0x24] sm:$0xf] %v1647
      %1712 = vst [vmem:[%s256 + $0x28] sm:$0xf] %v1648
      %1713 = vst [vmem:[%s256 + $0x2c] sm:$0xf] %v1649
      %1714 = vst [vmem:[%s256 + $0x30] sm:$0xf] %v1650
      %1715 = vst [vmem:[%s256 + $0x34] sm:$0xf] %v1651
      %1716 = vst [vmem:[%s256 + $0x38] sm:$0xf] %v1652
      %1717 = vst [vmem:[%s256 + $0x3c] sm:$0xf] %v1653
      %1718 = vst [vmem:[%s256 + $0x40] sm:$0xf] %v1654
      %1719 = vst [vmem:[%s256 + $0x44] sm:$0xf] %v1655
      %1720 = vst [vmem:[%s256 + $0x48] sm:$0xf] %v1656
      %1721 = vst [vmem:[%s256 + $0x4c] sm:$0xf] %v1657
      %1722 = vst [vmem:[%s256 + $0x50] sm:$0xf] %v1658
      %1723 = vst [vmem:[%s256 + $0x54] sm:$0xf] %v1659
      %1724 = vst [vmem:[%s256 + $0x58] sm:$0xf] %v1660
      %1725 = vst [vmem:[%s256 + $0x5c] sm:$0xf] %v1661
      %1726 = vst [vmem:[%s256 + $0x60] sm:$0xf] %v1662
      %1727 = vst [vmem:[%s256 + $0x64] sm:$0xf] %v1663
      %1728 = vst [vmem:[%s256 + $0x68] sm:$0xf] %v1664
      %1729 = vst [vmem:[%s256 + $0x6c] sm:$0xf] %v1665
      %1730 = vst [vmem:[%s256 + $0x70] sm:$0xf] %v1666
      %1731 = vst [vmem:[%s256 + $0x74] sm:$0xf] %v1667
      %1732 = vst [vmem:[%s256 + $0x78] sm:$0xf] %v1668
      %1733 = vst [vmem:[%s256 + $0x7c] sm:$0xf] %v1669
      %s1734 = smul.u32 32, %s17
      %p1735 = scmp.lt.s32.totalorder %s1734, 95
      %s1736 = scalar_select %p1735, %s1734, 95
      %s1737 = smul.addr %s1736, 8
      %s1738 = scalar_lea.vmem %s3, %s1737
      %s1739 = smul.u32 32, %s17
      %p1740 = scmp.lt.s32.totalorder %s1739, 95
      %s1741 = scalar_select %p1740, %s1739, 95
      %s1742 = smul.addr %s1741, 8
      %s1743 = scalar_lea.vmem %s4, %s1742
      %s1744 = smul.u32 32, %s17
      %p1745 = scmp.lt.s32.totalorder %s1744, 95
      %s1746 = scalar_select %p1745, %s1744, 95
      %s1747 = smul.addr %s1746, 4
      %s1748 = scalar_lea.vmem %s5, %s1747
      // Predicated region
      $region33: #{gae_forward.4} parent=31 // pred_check
        %p1749 = pneg %p103
      $region34: #{gae_forward.4} parent=31 // pred_check_branch
        %1751 = sbr.rel (%p1749) target = $region36
      $region35: #{gae_forward.4} parent=31 // pred_region
        %s1752 = smul.u32 32, %s17
      $region36: #{gae_forward.4} parent=31 // pred_fallthru
        _
      // Predicated region
      $region37: #{gae_forward.4} parent=31 // pred_check
        %p1753 = pneg %p129
      $region38: #{gae_forward.4} parent=31 // pred_check_branch
        %1755 = sbr.rel (%p1753) target = $region40
      $region39: #{gae_forward.4} parent=31 // pred_region
        %s1756 = smul.u32 32, %s17
      $region40: #{gae_forward.4} parent=31 // pred_fallthru
        _
      // Predicated region
      $region41: #{gae_forward.4} parent=31 // pred_check
        %p1757 = pneg %p155
      $region42: #{gae_forward.4} parent=31 // pred_check_branch
        %1759 = sbr.rel (%p1757) target = $region44
      $region43: #{gae_forward.4} parent=31 // pred_region
        %s1760 = smul.u32 32, %s17
      $region44: #{gae_forward.4} parent=31 // pred_fallthru
        _
    $region32: #{gae_forward.4} parent=5 // pred_fallthru
      _
    %p1761 = scmp.le.s32.totalorder 2, %s12
    // Predicated region
    $region45: #{gae_forward.4} parent=5 // pred_check
      %p1762 = pneg %p1761
    $region46: #{gae_forward.4} parent=5 // pred_check_branch
      %1764 = sbr.rel (%p1762) target = $region48
    $region47: #{gae_forward.4} parent=5 // pred_region
      %s1765 = ssub.s32 %s12, 2
      // Predicated region
      $region49: #{gae_forward.4} parent=47 // pred_check
        %p1766 = pneg %p109
      $region50: #{gae_forward.4} parent=47 // pred_check_branch
        %1768 = sbr.rel (%p1766) target = $region52
      $region51: #{gae_forward.4} parent=47 // pred_region
        %s1769 = smul.u32 32, %s18
        %p1770 = scmp.lt.s32.totalorder %s1769, 95
        %s1771 = scalar_select %p1770, %s1769, 95
        %s1772 = smul.addr %s1771, 8
        %s1773 = scalar_lea.vmem %s3, %s1772
      $region52: #{gae_forward.4} parent=47 // pred_fallthru
        _
      // Predicated region
      $region53: #{gae_forward.4} parent=47 // pred_check
        %p1774 = pneg %p135
      $region54: #{gae_forward.4} parent=47 // pred_check_branch
        %1776 = sbr.rel (%p1774) target = $region56
      $region55: #{gae_forward.4} parent=47 // pred_region
        %s1777 = smul.u32 32, %s18
        %p1778 = scmp.lt.s32.totalorder %s1777, 95
        %s1779 = scalar_select %p1778, %s1777, 95
        %s1780 = smul.addr %s1779, 8
        %s1781 = scalar_lea.vmem %s4, %s1780
      $region56: #{gae_forward.4} parent=47 // pred_fallthru
        _
      // Predicated region
      $region57: #{gae_forward.4} parent=47 // pred_check
        %p1782 = pneg %p161
      $region58: #{gae_forward.4} parent=47 // pred_check_branch
        %1784 = sbr.rel (%p1782) target = $region60
      $region59: #{gae_forward.4} parent=47 // pred_region
        %s1785 = smul.u32 32, %s18
        %p1786 = scmp.lt.s32.totalorder %s1785, 95
        %s1787 = scalar_select %p1786, %s1785, 95
        %s1788 = smul.addr %s1787, 4
        %s1789 = scalar_lea.vmem %s5, %s1788
      $region60: #{gae_forward.4} parent=47 // pred_fallthru
        _
    $region48: #{gae_forward.4} parent=5 // pred_fallthru
      _
  $region6: #{gae_forward.4} parent=0 // loop_footer
    %s16 = sadd.s32 1, %s12
  $region7: #{gae_forward.4} parent=0 // loop_footer_branch
    %11 = sbr.rel target = $region3
  $region8: #{gae_forward.4} parent=0 // loop_exit
    _

// kernel: gae_forward.5
$region0: #{gae_forward.5}
  #allocation0 [shape = 'u32[]', space=smem, size = 0x4, offset = 0x4, fixed_abs, tag = 'smem constant byte address 0x4 - core index']
  #allocation1 [shape = 'u32[144,128]{1,0:T(1,128)}', space=vmem, size = 0x12000, scoped, tag = 'internal scratch']
  %s0 = inlined_call_operand.vmem [shape: bf16[768,128], index: 0, kind: input, shape index: {}, may-alias: {0,1}]
  %s1 = inlined_call_operand.vmem [shape: bf16[768,128], index: 1, kind: input, shape index: {}, may-alias: {0,1}]
  %s2 = inlined_call_operand.vmem [shape: f32[768,768], index: 2, kind: output, shape index: {}]
  %s3 = sld [smem:[#allocation0]]
  $region41: #{gae_forward.5} parent=0
    _
  %s5 = ssub.s32 1, %s3
  %s6 = scalar_select 0, %s5, %s3
  loop: start=0, step=1, limit=5
  $region2: #{gae_forward.5} parent=0 // loop_pre_header
    _
  $region3: #{gae_forward.5} parent=0 // loop_header
    %s8 = sphi 0, %s12
    %p9 = scmp.ge.s32.totalorder %s8, 5
    %s18 = sphi 0, %s20
    %s21 = sphi 0, %s18
    %s22 = sphi 0, %s21
    %s38 = sphi 0, %s22
    %s42 = sphi 0, %s42
    %s44 = sphi 0, %s42
    %s45 = sphi 0, %s44
    %s59 = sphi 0, %s45
    %s65 = sphi 0, %s67
    %s68 = sphi 0, %s65
    %s69 = sphi 0, %s68
    %s85 = sphi 0, %s69
  $region4: #{gae_forward.5} parent=0 // loop_header_branch
    %11 = sbr.rel (%p9) target = $region8
  $region5: #{gae_forward.5} parent=0 // loop_body
    %s13 = ssub.s32 %s8, 1
    %s14 = ssub.s32 %s8, 2
    %s15 = sadd.s32 %s8, 1
    %s16 = ssub.s32 %s8, %s15
    %p17 = scmp.eq.s32.totalorder %s16, 0
    %s19 = sadd.s32 %s18, 1
    %s20 = scalar_select %p17, %s18, %s19
    %p23 = pneg %p17
    %p24 = scmp.eq.s32.totalorder %s8, 2
    %p25 = por %p23, %p24
    %p26 = scmp.ne.s32.totalorder %s18, %s21
    %p27 = scmp.eq.s32.totalorder %s8, 0
    %p28 = por %p26, %p27
    %p29 = scmp.ne.s32.totalorder %s18, %s21
    %p30 = scmp.eq.s32.totalorder %s13, 2
    %p31 = por %p29, %p30
    %p32 = scmp.ne.s32.totalorder %s21, %s22
    %p33 = scmp.eq.s32.totalorder %s13, 0
    %p34 = por %p32, %p33
    %p35 = scmp.ne.s32.totalorder %s21, %s22
    %p36 = scmp.eq.s32.totalorder %s14, 2
    %p37 = por %p35, %p36
    %p39 = scmp.ne.s32.totalorder %s22, %s38
    %p40 = scmp.eq.s32.totalorder %s14, 0
    %p41 = por %p39, %p40
    %s43 = sadd.s32 %s42, 1
    %p46 = scmp.eq.s32.totalorder %s8, 2
    %p47 = scmp.ne.s32.totalorder %s42, %s44
    %p48 = scmp.eq.s32.totalorder %s8, 0
    %p49 = por %p47, %p48
    %p50 = scmp.ne.s32.totalorder %s42, %s44
    %p51 = scmp.eq.s32.totalorder %s13, 2
    %p52 = por %p50, %p51
    %p53 = scmp.ne.s32.totalorder %s44, %s45
    %p54 = scmp.eq.s32.totalorder %s13, 0
    %p55 = por %p53, %p54
    %p56 = scmp.ne.s32.totalorder %s44, %s45
    %p57 = scmp.eq.s32.totalorder %s14, 2
    %p58 = por %p56, %p57
    %p60 = scmp.ne.s32.totalorder %s45, %s59
    %p61 = scmp.eq.s32.totalorder %s14, 0
    %p62 = por %p60, %p61
    %s63 = ssub.s32 %s8, %s15
    %p64 = scmp.eq.s32.totalorder %s63, 0
    %s66 = sadd.s32 %s65, 1
    %s67 = scalar_select %p64, %s65, %s66
    %p70 = pneg %p64
    %p71 = scmp.eq.s32.totalorder %s8, 2
    %p72 = por %p70, %p71
    %p73 = scmp.ne.s32.totalorder %s65, %s68
    %p74 = scmp.eq.s32.totalorder %s8, 0
    %p75 = por %p73, %p74
    %p76 = scmp.ne.s32.totalorder %s65, %s68
    %p77 = scmp.eq.s32.totalorder %s13, 2
    %p78 = por %p76, %p77
    %p79 = scmp.ne.s32.totalorder %s68, %s69
    %p80 = scmp.eq.s32.totalorder %s13, 0
    %p81 = por %p79, %p80
    %p82 = scmp.ne.s32.totalorder %s68, %s69
    %p83 = scmp.eq.s32.totalorder %s14, 2
    %p84 = por %p82, %p83
    %p86 = scmp.ne.s32.totalorder %s69, %s85
    %p87 = scmp.eq.s32.totalorder %s14, 0
    %p88 = por %p86, %p87
    %p89 = scmp.le.s32.totalorder 1, %s8
    %p90 = scmp.lt.s32.totalorder %s8, 4
    %p91 = pnand %p89, %p90
    %p92 = pneg %p91
    // Predicated region
    $region9: #{gae_forward.5} parent=5 // pred_check
      _
    $region10: #{gae_forward.5} parent=5 // pred_check_branch
      %94 = sbr.rel (%p91) target = $region12
    $region11: #{gae_forward.5} parent=5 // pred_region
      %s95 = ssub.s32 %s8, 1
      // Predicated region
      $region13: #{gae_forward.5} parent=11 // pred_check
        %p96 = pneg %p55
      $region14: #{gae_forward.5} parent=11 // pred_check_branch
        %98 = sbr.rel (%p96) target = $region16
      $region15: #{gae_forward.5} parent=11 // pred_region
        _
      $region16: #{gae_forward.5} parent=11 // pred_fallthru
        _
    $region12: #{gae_forward.5} parent=5 // pred_fallthru
      _
    %p99 = scmp.lt.s32.totalorder %s8, 3
    // Predicated region
    $region17: #{gae_forward.5} parent=5 // pred_check
      %p100 = pneg %p99
    $region18: #{gae_forward.5} parent=5 // pred_check_branch
      %102 = sbr.rel (%p100) target = $region20
    $region19: #{gae_forward.5} parent=5 // pred_region
      // Predicated region
      $region21: #{gae_forward.5} parent=19 // pred_check
        %p103 = pneg %p28
      $region22: #{gae_forward.5} parent=19 // pred_check_branch
        %105 = sbr.rel (%p103) target = $region24
      $region23: #{gae_forward.5} parent=19 // pred_region
        %s106 = smul.u32 32, %s8
        %p107 = scmp.lt.s32.totalorder %s106, 95
        %s108 = scalar_select %p107, %s106, 95
        %s109 = smul.addr %s108, 4
        %s110 = scalar_lea.vmem %s0, %s109
        %s111 = smul.u32 32, %s8
      $region24: #{gae_forward.5} parent=19 // pred_fallthru
        _
    $region20: #{gae_forward.5} parent=5 // pred_fallthru
      _
    %p112 = scmp.le.s32.totalorder 1, %s8
    %p113 = scmp.lt.s32.totalorder %s8, 4
    %p114 = pnand %p112, %p113
    %p115 = pneg %p114
    // Predicated region
    $region25: #{gae_forward.5} parent=5 // pred_check
      _
    $region26: #{gae_forward.5} parent=5 // pred_check_branch
      %117 = sbr.rel (%p114) target = $region28
    $region27: #{gae_forward.5} parent=5 // pred_region
      %s118 = ssub.s32 %s8, 1
      %s119 = smul.u32 32, %s13
      %p120 = scmp.lt.s32.totalorder %s119, 95
      %s121 = scalar_select %p120, %s119, 95
      %s122 = smul.addr %s121, 4
      %s123 = scalar_lea.vmem %s0, %s122
      %p124 = pneg %p34
      %p125 = pneg %p31
      %p126 = pneg %p55
      %p127 = pneg %p52
      %p128 = pneg %p81
      %p129 = pneg %p78
      %s130 = smul.u32 32, %s13
      %p131 = scmp.lt.s32.totalorder %s130, 95
      %s132 = scalar_select %p131, %s130, 95
      %s133 = smul.addr %s132, 6
      %s134 = smul.addr %s133, 8
      %s135 = scalar_lea.vmem %s2, %s134
      %s136 = smul.u32 32, %s13
      %p137 = scmp.lt.s32.totalorder %s136, 95
      %s138 = scalar_select %p137, %s136, 95
      %s139 = smul.addr %s138, 4
      %s140 = scalar_lea.vmem %s0, %s139
      %s141 = smul.u32 32, %s13
      %s142 = smul.u32 32, %s13
      %p143 = scmp.lt.s32.totalorder %s142, 95
      %s144 = scalar_select %p143, %s142, 95
      %s145 = smul.addr %s144, 6
      %s146 = smul.addr %s145, 8
      %s147 = scalar_lea.vmem %s2, %s146
      %s148 = smul.u32 32, %s13
      %v150 = vld [vmem:[%s140] sm:$0xf]
      %v151 = vld [vmem:[%s140 + $0x4] sm:$0xf]
      %v152 = vld [vmem:[%s140 + $0x8] sm:$0xf]
      %v153 = vld [vmem:[%s140 + $0xc] sm:$0xf]
      %v154 = vld [vmem:[%s140 + $0x10] sm:$0xf]
      %v155 = vld [vmem:[%s140 + $0x14] sm:$0xf]
      %v156 = vld [vmem:[%s140 + $0x18] sm:$0xf]
      %v157 = vld [vmem:[%s140 + $0x1c] sm:$0xf]
      %v158 = vld [vmem:[%s140 + $0x20] sm:$0xf]
      %v159 = vld [vmem:[%s140 + $0x24] sm:$0xf]
      %v160 = vld [vmem:[%s140 + $0x28] sm:$0xf]
      %v161 = vld [vmem:[%s140 + $0x2c] sm:$0xf]
      %v162 = vld [vmem:[%s140 + $0x30] sm:$0xf]
      %v163 = vld [vmem:[%s140 + $0x34] sm:$0xf]
      %v164 = vld [vmem:[%s140 + $0x38] sm:$0xf]
      %v165 = vld [vmem:[%s140 + $0x3c] sm:$0xf]
      %v166 = vld [vmem:[%s140 + $0x40] sm:$0xf]
      %v167 = vld [vmem:[%s140 + $0x44] sm:$0xf]
      %v168 = vld [vmem:[%s140 + $0x48] sm:$0xf]
      %v169 = vld [vmem:[%s140 + $0x4c] sm:$0xf]
      %v170 = vld [vmem:[%s140 + $0x50] sm:$0xf]
      %v171 = vld [vmem:[%s140 + $0x54] sm:$0xf]
      %v172 = vld [vmem:[%s140 + $0x58] sm:$0xf]
      %v173 = vld [vmem:[%s140 + $0x5c] sm:$0xf]
      %v174 = vld [vmem:[%s140 + $0x60] sm:$0xf]
      %v175 = vld [vmem:[%s140 + $0x64] sm:$0xf]
      %v176 = vld [vmem:[%s140 + $0x68] sm:$0xf]
      %v177 = vld [vmem:[%s140 + $0x6c] sm:$0xf]
      %v178 = vld [vmem:[%s140 + $0x70] sm:$0xf]
      %v179 = vld [vmem:[%s140 + $0x74] sm:$0xf]
      %v180 = vld [vmem:[%s140 + $0x78] sm:$0xf]
      %v181 = vld [vmem:[%s140 + $0x7c] sm:$0xf]
      %v182 = vld [vmem:[%s1] sm:$0xf]
      %v183 = vld [vmem:[%s1 + $0x4] sm:$0xf]
      %v184 = vld [vmem:[%s1 + $0x8] sm:$0xf]
      %v185 = vld [vmem:[%s1 + $0xc] sm:$0xf]
      %v186 = vld [vmem:[%s1 + $0x10] sm:$0xf]
      %v187 = vld [vmem:[%s1 + $0x14] sm:$0xf]
      %v188 = vld [vmem:[%s1 + $0x18] sm:$0xf]
      %v189 = vld [vmem:[%s1 + $0x1c] sm:$0xf]
      %v190 = vld [vmem:[%s1 + $0x20] sm:$0xf]
      %v191 = vld [vmem:[%s1 + $0x24] sm:$0xf]
      %v192 = vld [vmem:[%s1 + $0x28] sm:$0xf]
      %v193 = vld [vmem:[%s1 + $0x2c] sm:$0xf]
      %v194 = vld [vmem:[%s1 + $0x30] sm:$0xf]
      %v195 = vld [vmem:[%s1 + $0x34] sm:$0xf]
      %v196 = vld [vmem:[%s1 + $0x38] sm:$0xf]
      %v197 = vld [vmem:[%s1 + $0x3c] sm:$0xf]
      %v198 = vld [vmem:[%s1 + $0x40] sm:$0xf]
      %v199 = vld [vmem:[%s1 + $0x44] sm:$0xf]
      %v200 = vld [vmem:[%s1 + $0x48] sm:$0xf]
      %v201 = vld [vmem:[%s1 + $0x4c] sm:$0xf]
      %v202 = vld [vmem:[%s1 + $0x50] sm:$0xf]
      %v203 = vld [vmem:[%s1 + $0x54] sm:$0xf]
      %v204 = vld [vmem:[%s1 + $0x58] sm:$0xf]
      %v205 = vld [vmem:[%s1 + $0x5c] sm:$0xf]
      %v206 = vld [vmem:[%s1 + $0x60] sm:$0xf]
      %v207 = vld [vmem:[%s1 + $0x64] sm:$0xf]
      %v208 = vld [vmem:[%s1 + $0x68] sm:$0xf]
      %v209 = vld [vmem:[%s1 + $0x6c] sm:$0xf]
      %v210 = vld [vmem:[%s1 + $0x70] sm:$0xf]
      %v211 = vld [vmem:[%s1 + $0x74] sm:$0xf]
      %v212 = vld [vmem:[%s1 + $0x78] sm:$0xf]
      %v213 = vld [vmem:[%s1 + $0x7c] sm:$0xf]
      %v214 = vld [vmem:[%s1 + $0x80] sm:$0xf]
      %v215 = vld [vmem:[%s1 + $0x84] sm:$0xf]
      %v216 = vld [vmem:[%s1 + $0x88] sm:$0xf]
      %v217 = vld [vmem:[%s1 + $0x8c] sm:$0xf]
      %v218 = vld [vmem:[%s1 + $0x90] sm:$0xf]
      %v219 = vld [vmem:[%s1 + $0x94] sm:$0xf]
      %v220 = vld [vmem:[%s1 + $0x98] sm:$0xf]
      %v221 = vld [vmem:[%s1 + $0x9c] sm:$0xf]
      %v222 = vld [vmem:[%s1 + $0xa0] sm:$0xf]
      %v223 = vld [vmem:[%s1 + $0xa4] sm:$0xf]
      %v224 = vld [vmem:[%s1 + $0xa8] sm:$0xf]
      %v225 = vld [vmem:[%s1 + $0xac] sm:$0xf]
      %v226 = vld [vmem:[%s1 + $0xb0] sm:$0xf]
      %v227 = vld [vmem:[%s1 + $0xb4] sm:$0xf]
      %v228 = vld [vmem:[%s1 + $0xb8] sm:$0xf]
      %v229 = vld [vmem:[%s1 + $0xbc] sm:$0xf]
      %v230 = vld [vmem:[%s1 + $0xc0] sm:$0xf]
      %v231 = vld [vmem:[%s1 + $0xc4] sm:$0xf]
      %v232 = vld [vmem:[%s1 + $0xc8] sm:$0xf]
      %v233 = vld [vmem:[%s1 + $0xcc] sm:$0xf]
      %v234 = vld [vmem:[%s1 + $0xd0] sm:$0xf]
      %v235 = vld [vmem:[%s1 + $0xd4] sm:$0xf]
      %v236 = vld [vmem:[%s1 + $0xd8] sm:$0xf]
      %v237 = vld [vmem:[%s1 + $0xdc] sm:$0xf]
      %v238 = vld [vmem:[%s1 + $0xe0] sm:$0xf]
      %v239 = vld [vmem:[%s1 + $0xe4] sm:$0xf]
      %v240 = vld [vmem:[%s1 + $0xe8] sm:$0xf]
      %v241 = vld [vmem:[%s1 + $0xec] sm:$0xf]
      %v242 = vld [vmem:[%s1 + $0xf0] sm:$0xf]
      %v243 = vld [vmem:[%s1 + $0xf4] sm:$0xf]
      %v244 = vld [vmem:[%s1 + $0xf8] sm:$0xf]
      %v245 = vld [vmem:[%s1 + $0xfc] sm:$0xf]
      %v246 = vld [vmem:[%s1 + $0x100] sm:$0xf]
      %v247 = vld [vmem:[%s1 + $0x104] sm:$0xf]
      %v248 = vld [vmem:[%s1 + $0x108] sm:$0xf]
      %v249 = vld [vmem:[%s1 + $0x10c] sm:$0xf]
      %v250 = vld [vmem:[%s1 + $0x110] sm:$0xf]
      %v251 = vld [vmem:[%s1 + $0x114] sm:$0xf]
      %v252 = vld [vmem:[%s1 + $0x118] sm:$0xf]
      %v253 = vld [vmem:[%s1 + $0x11c] sm:$0xf]
      %v254 = vld [vmem:[%s1 + $0x120] sm:$0xf]
      %v255 = vld [vmem:[%s1 + $0x124] sm:$0xf]
      %v256 = vld [vmem:[%s1 + $0x128] sm:$0xf]
      %v257 = vld [vmem:[%s1 + $0x12c] sm:$0xf]
      %v258 = vld [vmem:[%s1 + $0x130] sm:$0xf]
      %v259 = vld [vmem:[%s1 + $0x134] sm:$0xf]
      %v260 = vld [vmem:[%s1 + $0x138] sm:$0xf]
      %v261 = vld [vmem:[%s1 + $0x13c] sm:$0xf]
      %v262 = vld [vmem:[%s1 + $0x140] sm:$0xf]
      %v263 = vld [vmem:[%s1 + $0x144] sm:$0xf]
      %v264 = vld [vmem:[%s1 + $0x148] sm:$0xf]
      %v265 = vld [vmem:[%s1 + $0x14c] sm:$0xf]
      %v266 = vld [vmem:[%s1 + $0x150] sm:$0xf]
      %v267 = vld [vmem:[%s1 + $0x154] sm:$0xf]
      %v268 = vld [vmem:[%s1 + $0x158] sm:$0xf]
      %v269 = vld [vmem:[%s1 + $0x15c] sm:$0xf]
      %v270 = vld [vmem:[%s1 + $0x160] sm:$0xf]
      %v271 = vld [vmem:[%s1 + $0x164] sm:$0xf]
      %v272 = vld [vmem:[%s1 + $0x168] sm:$0xf]
      %v273 = vld [vmem:[%s1 + $0x16c] sm:$0xf]
      %v274 = vld [vmem:[%s1 + $0x170] sm:$0xf]
      %v275 = vld [vmem:[%s1 + $0x174] sm:$0xf]
      %v276 = vld [vmem:[%s1 + $0x178] sm:$0xf]
      %v277 = vld [vmem:[%s1 + $0x17c] sm:$0xf]
      %v310 = vunpack.c.l.b16 %v150
      %v311 = vunpack.c.l.b16 %v151
      %v312 = vunpack.c.l.b16 %v152
      %v313 = vunpack.c.l.b16 %v153
      %v314 = vunpack.c.l.b16 %v154
      %v315 = vunpack.c.l.b16 %v155
      %v316 = vunpack.c.l.b16 %v156
      %v317 = vunpack.c.l.b16 %v157
      %v318 = vunpack.c.l.b16 %v158
      %v319 = vunpack.c.l.b16 %v159
      %v320 = vunpack.c.l.b16 %v160
      %v321 = vunpack.c.l.b16 %v161
      %v322 = vunpack.c.l.b16 %v162
      %v323 = vunpack.c.l.b16 %v163
      %v324 = vunpack.c.l.b16 %v164
      %v325 = vunpack.c.l.b16 %v165
      %v326 = vunpack.c.l.b16 %v166
      %v327 = vunpack.c.l.b16 %v167
      %v328 = vunpack.c.l.b16 %v168
      %v329 = vunpack.c.l.b16 %v169
      %v330 = vunpack.c.l.b16 %v170
      %v331 = vunpack.c.l.b16 %v171
      %v332 = vunpack.c.l.b16 %v172
      %v333 = vunpack.c.l.b16 %v173
      %v334 = vunpack.c.l.b16 %v174
      %v335 = vunpack.c.l.b16 %v175
      %v336 = vunpack.c.l.b16 %v176
      %v337 = vunpack.c.l.b16 %v177
      %v338 = vunpack.c.l.b16 %v178
      %v339 = vunpack.c.l.b16 %v179
      %v340 = vunpack.c.l.b16 %v180
      %v341 = vunpack.c.l.b16 %v181
      %v342 = vpack.c.b16 %v311, %v310
      %v343 = vpack.c.b16 %v313, %v312
      %v344 = vpack.c.b16 %v315, %v314
      %v345 = vpack.c.b16 %v317, %v316
      %v346 = vpack.c.b16 %v319, %v318
      %v347 = vpack.c.b16 %v321, %v320
      %v348 = vpack.c.b16 %v323, %v322
      %v349 = vpack.c.b16 %v325, %v324
      %v350 = vpack.c.b16 %v327, %v326
      %v351 = vpack.c.b16 %v329, %v328
      %v352 = vpack.c.b16 %v331, %v330
      %v353 = vpack.c.b16 %v333, %v332
      %v354 = vpack.c.b16 %v335, %v334
      %v355 = vpack.c.b16 %v337, %v336
      %v356 = vpack.c.b16 %v339, %v338
      %v357 = vpack.c.b16 %v341, %v340
      %v470 = vunpack.c.l.b16 %v182
      %v471 = vunpack.c.l.b16 %v183
      %v472 = vunpack.c.l.b16 %v184
      %v473 = vunpack.c.l.b16 %v185
      %v474 = vunpack.c.l.b16 %v186
      %v475 = vunpack.c.l.b16 %v187
      %v476 = vunpack.c.l.b16 %v188
      %v477 = vunpack.c.l.b16 %v189
      %v478 = vunpack.c.l.b16 %v190
      %v479 = vunpack.c.l.b16 %v191
      %v480 = vunpack.c.l.b16 %v192
      %v481 = vunpack.c.l.b16 %v193
      %v482 = vunpack.c.l.b16 %v194
      %v483 = vunpack.c.l.b16 %v195
      %v484 = vunpack.c.l.b16 %v196
      %v485 = vunpack.c.l.b16 %v197
      %v486 = vunpack.c.l.b16 %v198
      %v487 = vunpack.c.l.b16 %v199
      %v488 = vunpack.c.l.b16 %v200
      %v489 = vunpack.c.l.b16 %v201
      %v490 = vunpack.c.l.b16 %v202
      %v491 = vunpack.c.l.b16 %v203
      %v492 = vunpack.c.l.b16 %v204
      %v493 = vunpack.c.l.b16 %v205
      %v494 = vunpack.c.l.b16 %v206
      %v495 = vunpack.c.l.b16 %v207
      %v496 = vunpack.c.l.b16 %v208
      %v497 = vunpack.c.l.b16 %v209
      %v498 = vunpack.c.l.b16 %v210
      %v499 = vunpack.c.l.b16 %v211
      %v500 = vunpack.c.l.b16 %v212
      %v501 = vunpack.c.l.b16 %v213
      %v502 = vunpack.c.l.b16 %v214
      %v503 = vunpack.c.l.b16 %v215
      %v504 = vunpack.c.l.b16 %v216
      %v505 = vunpack.c.l.b16 %v217
      %v506 = vunpack.c.l.b16 %v218
      %v507 = vunpack.c.l.b16 %v219
      %v508 = vunpack.c.l.b16 %v220
      %v509 = vunpack.c.l.b16 %v221
      %v510 = vunpack.c.l.b16 %v222
      %v511 = vunpack.c.l.b16 %v223
      %v512 = vunpack.c.l.b16 %v224
      %v513 = vunpack.c.l.b16 %v225
      %v514 = vunpack.c.l.b16 %v226
      %v515 = vunpack.c.l.b16 %v227
      %v516 = vunpack.c.l.b16 %v228
      %v517 = vunpack.c.l.b16 %v229
      %v518 = vunpack.c.l.b16 %v230
      %v519 = vunpack.c.l.b16 %v231
      %v520 = vunpack.c.l.b16 %v232
      %v521 = vunpack.c.l.b16 %v233
      %v522 = vunpack.c.l.b16 %v234
      %v523 = vunpack.c.l.b16 %v235
      %v524 = vunpack.c.l.b16 %v236
      %v525 = vunpack.c.l.b16 %v237
      %v526 = vunpack.c.l.b16 %v238
      %v527 = vunpack.c.l.b16 %v239
      %v528 = vunpack.c.l.b16 %v240
      %v529 = vunpack.c.l.b16 %v241
      %v530 = vunpack.c.l.b16 %v242
      %v531 = vunpack.c.l.b16 %v243
      %v532 = vunpack.c.l.b16 %v244
      %v533 = vunpack.c.l.b16 %v245
      %v534 = vunpack.c.l.b16 %v246
      %v535 = vunpack.c.l.b16 %v247
      %v536 = vunpack.c.l.b16 %v248
      %v537 = vunpack.c.l.b16 %v249
      %v538 = vunpack.c.l.b16 %v250
      %v539 = vunpack.c.l.b16 %v251
      %v540 = vunpack.c.l.b16 %v252
      %v541 = vunpack.c.l.b16 %v253
      %v542 = vunpack.c.l.b16 %v254
      %v543 = vunpack.c.l.b16 %v255
      %v544 = vunpack.c.l.b16 %v256
      %v545 = vunpack.c.l.b16 %v257
      %v546 = vunpack.c.l.b16 %v258
      %v547 = vunpack.c.l.b16 %v259
      %v548 = vunpack.c.l.b16 %v260
      %v549 = vunpack.c.l.b16 %v261
      %v550 = vunpack.c.l.b16 %v262
      %v551 = vunpack.c.l.b16 %v263
      %v552 = vunpack.c.l.b16 %v264
      %v553 = vunpack.c.l.b16 %v265
      %v554 = vunpack.c.l.b16 %v266
      %v555 = vunpack.c.l.b16 %v267
      %v556 = vunpack.c.l.b16 %v268
      %v557 = vunpack.c.l.b16 %v269
      %v558 = vunpack.c.l.b16 %v270
      %v559 = vunpack.c.l.b16 %v271
      %v560 = vunpack.c.l.b16 %v272
      %v561 = vunpack.c.l.b16 %v273
      %v562 = vunpack.c.l.b16 %v274
      %v563 = vunpack.c.l.b16 %v275
      %v564 = vunpack.c.l.b16 %v276
      %v565 = vunpack.c.l.b16 %v277
      %v566 = vpack.c.b16 %v471, %v470
      %v567 = vpack.c.b16 %v473, %v472
      %v568 = vpack.c.b16 %v475, %v474
      %v569 = vpack.c.b16 %v477, %v476
      %v570 = vpack.c.b16 %v479, %v478
      %v571 = vpack.c.b16 %v481, %v480
      %v572 = vpack.c.b16 %v483, %v482
      %v573 = vpack.c.b16 %v485, %v484
      %v574 = vpack.c.b16 %v487, %v486
      %v575 = vpack.c.b16 %v489, %v488
      %v576 = vpack.c.b16 %v491, %v490
      %v577 = vpack.c.b16 %v493, %v492
      %v578 = vpack.c.b16 %v495, %v494
      %v579 = vpack.c.b16 %v497, %v496
      %v580 = vpack.c.b16 %v499, %v498
      %v581 = vpack.c.b16 %v501, %v500
      %v582 = vpack.c.b16 %v503, %v502
      %v583 = vpack.c.b16 %v505, %v504
      %v584 = vpack.c.b16 %v507, %v506
      %v585 = vpack.c.b16 %v509, %v508
      %v586 = vpack.c.b16 %v511, %v510
      %v587 = vpack.c.b16 %v513, %v512
      %v588 = vpack.c.b16 %v515, %v514
      %v589 = vpack.c.b16 %v517, %v516
      %v590 = vpack.c.b16 %v519, %v518
      %v591 = vpack.c.b16 %v521, %v520
      %v592 = vpack.c.b16 %v523, %v522
      %v593 = vpack.c.b16 %v525, %v524
      %v594 = vpack.c.b16 %v527, %v526
      %v595 = vpack.c.b16 %v529, %v528
      %v596 = vpack.c.b16 %v531, %v530
      %v597 = vpack.c.b16 %v533, %v532
      %v598 = vpack.c.b16 %v535, %v534
      %v599 = vpack.c.b16 %v537, %v536
      %v600 = vpack.c.b16 %v539, %v538
      %v601 = vpack.c.b16 %v541, %v540
      %v602 = vpack.c.b16 %v543, %v542
      %v603 = vpack.c.b16 %v545, %v544
      %v604 = vpack.c.b16 %v547, %v546
      %v605 = vpack.c.b16 %v549, %v548
      %v606 = vpack.c.b16 %v551, %v550
      %v607 = vpack.c.b16 %v553, %v552
      %v608 = vpack.c.b16 %v555, %v554
      %v609 = vpack.c.b16 %v557, %v556
      %v610 = vpack.c.b16 %v559, %v558
      %v611 = vpack.c.b16 %v561, %v560
      %v612 = vpack.c.b16 %v563, %v562
      %v613 = vpack.c.b16 %v565, %v564
      %662 = vmatprep.subr.bf16.mxu0 0
      %663 = vmatpush1.bf16.xpose.msra.mxu0 %v566
      %664 = vmatprep.subr.bf16.mxu0 0
      %665 = vmatpush1.bf16.xpose.msra.mxu0 %v567
      %666 = vmatprep.subr.bf16.mxu0 0
      %667 = vmatpush1.bf16.xpose.msra.mxu0 %v568
      %668 = vmatprep.subr.bf16.mxu0 0
      %669 = vmatpush1.bf16.xpose.msra.mxu0 %v569
      %670 = vmatprep.subr.bf16.mxu0 0
      %671 = vmatpush1.bf16.xpose.msra.mxu0 %v570
      %672 = vmatprep.subr.bf16.mxu0 0
      %673 = vmatpush1.bf16.xpose.msra.mxu0 %v571
      %674 = vmatprep.subr.bf16.mxu0 0
      %675 = vmatpush1.bf16.xpose.msra.mxu0 %v572
      %676 = vmatprep.subr.bf16.mxu0 0
      %677 = vmatpush1.bf16.xpose.msra.mxu0 %v573
      %678 = vmatprep.subr.bf16.mxu0 0
      %679 = vmatpush1.bf16.xpose.msra.mxu0 %v574
      %680 = vmatprep.subr.bf16.mxu0 0
      %681 = vmatpush1.bf16.xpose.msra.mxu0 %v575
      %682 = vmatprep.subr.bf16.mxu0 0
      %683 = vmatpush1.bf16.xpose.msra.mxu0 %v576
      %684 = vmatprep.subr.bf16.mxu0 0
      %685 = vmatpush1.bf16.xpose.msra.mxu0 %v577
      %686 = vmatprep.subr.bf16.mxu0 0
      %687 = vmatpush1.bf16.xpose.msra.mxu0 %v578
      %688 = vmatprep.subr.bf16.mxu0 0
      %689 = vmatpush1.bf16.xpose.msra.mxu0 %v579
      %690 = vmatprep.subr.bf16.mxu0 0
      %691 = vmatpush1.bf16.xpose.msra.mxu0 %v580
      %692 = vmatprep.subr.bf16.mxu0 0
      %693 = vmatpush1.bf16.xpose.msra.mxu0 %v581
      %694 = vmatprep.mubr.bf16.mxu0 0
      %695 = vmatmul.mubr.bf16.gmra.mrb[0].mxu0 %v342
      %v696 = vpop.f32.mrb[0].mxu0
      %v697 = vadd.f32 0.0, %v696
      %v698 = vpop.f32.mrb[0].mxu0
      %v699 = vadd.f32 0.0, %v698
      %v700 = vpop.f32.mrb[0].mxu0
      %v701 = vadd.f32 0.0, %v700
      %v702 = vpop.f32.mrb[0].mxu0
      %v703 = vadd.f32 0.0, %v702
      %704 = vmatprep.mubr.bf16.mxu0 0
      %705 = vmatmul.mubr.bf16.gmra.mrb[0].mxu0 %v343
      %v706 = vpop.f32.mrb[0].mxu0
      %v707 = vadd.f32 0.0, %v706
      %v708 = vpop.f32.mrb[0].mxu0
      %v709 = vadd.f32 0.0, %v708
      %v710 = vpop.f32.mrb[0].mxu0
      %v711 = vadd.f32 0.0, %v710
      %v712 = vpop.f32.mrb[0].mxu0
      %v713 = vadd.f32 0.0, %v712
      %714 = vmatprep.mubr.bf16.mxu0 0
      %715 = vmatmul.mubr.bf16.gmra.mrb[0].mxu0 %v344
      %v716 = vpop.f32.mrb[0].mxu0
      %v717 = vadd.f32 0.0, %v716
      %v718 = vpop.f32.mrb[0].mxu0
      %v719 = vadd.f32 0.0, %v718
      %v720 = vpop.f32.mrb[0].mxu0
      %v721 = vadd.f32 0.0, %v720
      %v722 = vpop.f32.mrb[0].mxu0
      %v723 = vadd.f32 0.0, %v722
      %724 = vmatprep.mubr.bf16.mxu0 0
      %725 = vmatmul.mubr.bf16.gmra.mrb[0].mxu0 %v345
      %v726 = vpop.f32.mrb[0].mxu0
      %v727 = vadd.f32 0.0, %v726
      %v728 = vpop.f32.mrb[0].mxu0
      %v729 = vadd.f32 0.0, %v728
      %v730 = vpop.f32.mrb[0].mxu0
      %v731 = vadd.f32 0.0, %v730
      %v732 = vpop.f32.mrb[0].mxu0
      %v733 = vadd.f32 0.0, %v732
      %734 = vmatprep.mubr.bf16.mxu0 0
      %735 = vmatmul.mubr.bf16.gmra.mrb[0].mxu0 %v346
      %v736 = vpop.f32.mrb[0].mxu0
      %v737 = vadd.f32 0.0, %v736
      %v738 = vpop.f32.mrb[0].mxu0
      %v739 = vadd.f32 0.0, %v738
      %v740 = vpop.f32.mrb[0].mxu0
      %v741 = vadd.f32 0.0, %v740
      %v742 = vpop.f32.mrb[0].mxu0
      %v743 = vadd.f32 0.0, %v742
      %744 = vmatprep.mubr.bf16.mxu0 0
      %745 = vmatmul.mubr.bf16.gmra.mrb[0].mxu0 %v347
      %v746 = vpop.f32.mrb[0].mxu0
      %v747 = vadd.f32 0.0, %v746
      %v748 = vpop.f32.mrb[0].mxu0
      %v749 = vadd.f32 0.0, %v748
      %v750 = vpop.f32.mrb[0].mxu0
      %v751 = vadd.f32 0.0, %v750
      %v752 = vpop.f32.mrb[0].mxu0
      %v753 = vadd.f32 0.0, %v752
      %754 = vmatprep.mubr.bf16.mxu0 0
      %755 = vmatmul.mubr.bf16.gmra.mrb[0].mxu0 %v348
      %v756 = vpop.f32.mrb[0].mxu0
      %v757 = vadd.f32 0.0, %v756
      %v758 = vpop.f32.mrb[0].mxu0
      %v759 = vadd.f32 0.0, %v758
      %v760 = vpop.f32.mrb[0].mxu0
      %v761 = vadd.f32 0.0, %v760
      %v762 = vpop.f32.mrb[0].mxu0
      %v763 = vadd.f32 0.0, %v762
      %764 = vmatprep.mubr.bf16.mxu0 0
      %765 = vmatmul.mubr.bf16.gmra.mrb[0].mxu0 %v349
      %v766 = vpop.f32.mrb[0].mxu0
      %v767 = vadd.f32 0.0, %v766
      %v768 = vpop.f32.mrb[0].mxu0
      %v769 = vadd.f32 0.0, %v768
      %v770 = vpop.f32.mrb[0].mxu0
      %v771 = vadd.f32 0.0, %v770
      %v772 = vpop.f32.mrb[0].mxu0
      %v773 = vadd.f32 0.0, %v772
      %774 = vmatprep.mubr.bf16.mxu0 0
      %775 = vmatmul.mubr.bf16.gmra.mrb[0].mxu0 %v350
      %v776 = vpop.f32.mrb[0].mxu0
      %v777 = vadd.f32 0.0, %v776
      %v778 = vpop.f32.mrb[0].mxu0
      %v779 = vadd.f32 0.0, %v778
      %v780 = vpop.f32.mrb[0].mxu0
      %v781 = vadd.f32 0.0, %v780
      %v782 = vpop.f32.mrb[0].mxu0
      %v783 = vadd.f32 0.0, %v782
      %784 = vmatprep.mubr.bf16.mxu0 0
      %785 = vmatmul.mubr.bf16.gmra.mrb[0].mxu0 %v351
      %v786 = vpop.f32.mrb[0].mxu0
      %v787 = vadd.f32 0.0, %v786
      %v788 = vpop.f32.mrb[0].mxu0
      %v789 = vadd.f32 0.0, %v788
      %v790 = vpop.f32.mrb[0].mxu0
      %v791 = vadd.f32 0.0, %v790
      %v792 = vpop.f32.mrb[0].mxu0
      %v793 = vadd.f32 0.0, %v792
      %794 = vmatprep.mubr.bf16.mxu0 0
      %795 = vmatmul.mubr.bf16.gmra.mrb[0].mxu0 %v352
      %v796 = vpop.f32.mrb[0].mxu0
      %v797 = vadd.f32 0.0, %v796
      %v798 = vpop.f32.mrb[0].mxu0
      %v799 = vadd.f32 0.0, %v798
      %v800 = vpop.f32.mrb[0].mxu0
      %v801 = vadd.f32 0.0, %v800
      %v802 = vpop.f32.mrb[0].mxu0
      %v803 = vadd.f32 0.0, %v802
      %804 = vmatprep.mubr.bf16.mxu0 0
      %805 = vmatmul.mubr.bf16.gmra.mrb[0].mxu0 %v353
      %v806 = vpop.f32.mrb[0].mxu0
      %v807 = vadd.f32 0.0, %v806
      %v808 = vpop.f32.mrb[0].mxu0
      %v809 = vadd.f32 0.0, %v808
      %v810 = vpop.f32.mrb[0].mxu0
      %v811 = vadd.f32 0.0, %v810
      %v812 = vpop.f32.mrb[0].mxu0
      %v813 = vadd.f32 0.0, %v812
      %814 = vmatprep.mubr.bf16.mxu0 0
      %815 = vmatmul.mubr.bf16.gmra.mrb[0].mxu0 %v354
      %v816 = vpop.f32.mrb[0].mxu0
      %v817 = vadd.f32 0.0, %v816
      %v818 = vpop.f32.mrb[0].mxu0
      %v819 = vadd.f32 0.0, %v818
      %v820 = vpop.f32.mrb[0].mxu0
      %v821 = vadd.f32 0.0, %v820
      %v822 = vpop.f32.mrb[0].mxu0
      %v823 = vadd.f32 0.0, %v822
      %824 = vmatprep.mubr.bf16.mxu0 0
      %825 = vmatmul.mubr.bf16.gmra.mrb[0].mxu0 %v355
      %v826 = vpop.f32.mrb[0].mxu0
      %v827 = vadd.f32 0.0, %v826
      %v828 = vpop.f32.mrb[0].mxu0
      %v829 = vadd.f32 0.0, %v828
      %v830 = vpop.f32.mrb[0].mxu0
      %v831 = vadd.f32 0.0, %v830
      %v832 = vpop.f32.mrb[0].mxu0
      %v833 = vadd.f32 0.0, %v832
      %834 = vmatprep.mubr.bf16.mxu0 0
      %835 = vmatmul.mubr.bf16.gmra.mrb[0].mxu0 %v356
      %v836 = vpop.f32.mrb[0].mxu0
      %v837 = vadd.f32 0.0, %v836
      %v838 = vpop.f32.mrb[0].mxu0
      %v839 = vadd.f32 0.0, %v838
      %v840 = vpop.f32.mrb[0].mxu0
      %v841 = vadd.f32 0.0, %v840
      %v842 = vpop.f32.mrb[0].mxu0
      %v843 = vadd.f32 0.0, %v842
      %844 = vmatprep.mubr.bf16.mxu0 0
      %845 = vmatmul.mubr.bf16.gmra.mrb[0].mxu0 %v357
      %v846 = vpop.f32.mrb[0].mxu0
      %v847 = vadd.f32 0.0, %v846
      %v848 = vpop.f32.mrb[0].mxu0
      %v849 = vadd.f32 0.0, %v848
      %v850 = vpop.f32.mrb[0].mxu0
      %v851 = vadd.f32 0.0, %v850
      %v852 = vpop.f32.mrb[0].mxu0
      %v853 = vadd.f32 0.0, %v852
      %854 = vdwg.mxu0
      %855 = vmatprep.subr.bf16.mxu0 0
      %856 = vmatpush1.bf16.xpose.msra.mxu0 %v582
      %857 = vmatprep.subr.bf16.mxu0 0
      %858 = vmatpush1.bf16.xpose.msra.mxu0 %v583
      %859 = vmatprep.subr.bf16.mxu0 0
      %860 = vmatpush1.bf16.xpose.msra.mxu0 %v584
      %861 = vmatprep.subr.bf16.mxu0 0
      %862 = vmatpush1.bf16.xpose.msra.mxu0 %v585
      %863 = vmatprep.subr.bf16.mxu0 0
      %864 = vmatpush1.bf16.xpose.msra.mxu0 %v586
      %865 = vmatprep.subr.bf16.mxu0 0
      %866 = vmatpush1.bf16.xpose.msra.mxu0 %v587
      %867 = vmatprep.subr.bf16.mxu0 0
      %868 = vmatpush1.bf16.xpose.msra.mxu0 %v588
      %869 = vmatprep.subr.bf16.mxu0 0
      %870 = vmatpush1.bf16.xpose.msra.mxu0 %v589
      %871 = vmatprep.subr.bf16.mxu0 0
      %872 = vmatpush1.bf16.xpose.msra.mxu0 %v590
      %873 = vmatprep.subr.bf16.mxu0 0
      %874 = vmatpush1.bf16.xpose.msra.mxu0 %v591
      %875 = vmatprep.subr.bf16.mxu0 0
      %876 = vmatpush1.bf16.xpose.msra.mxu0 %v592
      %877 = vmatprep.subr.bf16.mxu0 0
      %878 = vmatpush1.bf16.xpose.msra.mxu0 %v593
      %879 = vmatprep.subr.bf16.mxu0 0
      %880 = vmatpush1.bf16.xpose.msra.mxu0 %v594
      %881 = vmatprep.subr.bf16.mxu0 0
      %882 = vmatpush1.bf16.xpose.msra.mxu0 %v595
      %883 = vmatprep.subr.bf16.mxu0 0
      %884 = vmatpush1.bf16.xpose.msra.mxu0 %v596
      %885 = vmatprep.subr.bf16.mxu0 0
      %886 = vmatpush1.bf16.xpose.msra.mxu0 %v597
      %887 = vmatprep.mubr.bf16.mxu0 0
      %888 = vmatmul.mubr.bf16.gmra.mrb[0].mxu0 %v342
      %v889 = vpop.f32.mrb[0].mxu0
      %v890 = vadd.f32 0.0, %v889
      %v891 = vpop.f32.mrb[0].mxu0
      %v892 = vadd.f32 0.0, %v891
      %v893 = vpop.f32.mrb[0].mxu0
      %v894 = vadd.f32 0.0, %v893
      %v895 = vpop.f32.mrb[0].mxu0
      %v896 = vadd.f32 0.0, %v895
      %897 = vmatprep.mubr.bf16.mxu0 0
      %898 = vmatmul.mubr.bf16.gmra.mrb[0].mxu0 %v343
      %v899 = vpop.f32.mrb[0].mxu0
      %v900 = vadd.f32 0.0, %v899
      %v901 = vpop.f32.mrb[0].mxu0
      %v902 = vadd.f32 0.0, %v901
      %v903 = vpop.f32.mrb[0].mxu0
      %v904 = vadd.f32 0.0, %v903
      %v905 = vpop.f32.mrb[0].mxu0
      %v906 = vadd.f32 0.0, %v905
      %907 = vmatprep.mubr.bf16.mxu0 0
      %908 = vmatmul.mubr.bf16.gmra.mrb[0].mxu0 %v344
      %v909 = vpop.f32.mrb[0].mxu0
      %v910 = vadd.f32 0.0, %v909
      %v911 = vpop.f32.mrb[0].mxu0
      %v912 = vadd.f32 0.0, %v911
      %v913 = vpop.f32.mrb[0].mxu0
      %v914 = vadd.f32 0.0, %v913
      %v915 = vpop.f32.mrb[0].mxu0
      %v916 = vadd.f32 0.0, %v915
      %917 = vmatprep.mubr.bf16.mxu0 0
      %918 = vmatmul.mubr.bf16.gmra.mrb[0].mxu0 %v345
      %v919 = vpop.f32.mrb[0].mxu0
      %v920 = vadd.f32 0.0, %v919
      %v921 = vpop.f32.mrb[0].mxu0
      %v922 = vadd.f32 0.0, %v921
      %v923 = vpop.f32.mrb[0].mxu0
      %v924 = vadd.f32 0.0, %v923
      %v925 = vpop.f32.mrb[0].mxu0
      %v926 = vadd.f32 0.0, %v925
      %927 = vmatprep.mubr.bf16.mxu0 0
      %928 = vmatmul.mubr.bf16.gmra.mrb[0].mxu0 %v346
      %v929 = vpop.f32.mrb[0].mxu0
      %v930 = vadd.f32 0.0, %v929
      %v931 = vpop.f32.mrb[0].mxu0
      %v932 = vadd.f32 0.0, %v931
      %v933 = vpop.f32.mrb[0].mxu0
      %v934 = vadd.f32 0.0, %v933
      %v935 = vpop.f32.mrb[0].mxu0
      %v936 = vadd.f32 0.0, %v935
      %937 = vmatprep.mubr.bf16.mxu0 0
      %938 = vmatmul.mubr.bf16.gmra.mrb[0].mxu0 %v347
      %v939 = vpop.f32.mrb[0].mxu0
      %v940 = vadd.f32 0.0, %v939
      %v941 = vpop.f32.mrb[0].mxu0
      %v942 = vadd.f32 0.0, %v941
      %v943 = vpop.f32.mrb[0].mxu0
      %v944 = vadd.f32 0.0, %v943
      %v945 = vpop.f32.mrb[0].mxu0
      %v946 = vadd.f32 0.0, %v945
      %947 = vmatprep.mubr.bf16.mxu0 0
      %948 = vmatmul.mubr.bf16.gmra.mrb[0].mxu0 %v348
      %v949 = vpop.f32.mrb[0].mxu0
      %v950 = vadd.f32 0.0, %v949
      %v951 = vpop.f32.mrb[0].mxu0
      %v952 = vadd.f32 0.0, %v951
      %v953 = vpop.f32.mrb[0].mxu0
      %v954 = vadd.f32 0.0, %v953
      %v955 = vpop.f32.mrb[0].mxu0
      %v956 = vadd.f32 0.0, %v955
      %957 = vmatprep.mubr.bf16.mxu0 0
      %958 = vmatmul.mubr.bf16.gmra.mrb[0].mxu0 %v349
      %v959 = vpop.f32.mrb[0].mxu0
      %v960 = vadd.f32 0.0, %v959
      %v961 = vpop.f32.mrb[0].mxu0
      %v962 = vadd.f32 0.0, %v961
      %v963 = vpop.f32.mrb[0].mxu0
      %v964 = vadd.f32 0.0, %v963
      %v965 = vpop.f32.mrb[0].mxu0
      %v966 = vadd.f32 0.0, %v965
      %967 = vmatprep.mubr.bf16.mxu0 0
      %968 = vmatmul.mubr.bf16.gmra.mrb[0].mxu0 %v350
      %v969 = vpop.f32.mrb[0].mxu0
      %v970 = vadd.f32 0.0, %v969
      %v971 = vpop.f32.mrb[0].mxu0
      %v972 = vadd.f32 0.0, %v971
      %v973 = vpop.f32.mrb[0].mxu0
      %v974 = vadd.f32 0.0, %v973
      %v975 = vpop.f32.mrb[0].mxu0
      %v976 = vadd.f32 0.0, %v975
      %977 = vmatprep.mubr.bf16.mxu0 0
      %978 = vmatmul.mubr.bf16.gmra.mrb[0].mxu0 %v351
      %v979 = vpop.f32.mrb[0].mxu0
      %v980 = vadd.f32 0.0, %v979
      %v981 = vpop.f32.mrb[0].mxu0
      %v982 = vadd.f32 0.0, %v981
      %v983 = vpop.f32.mrb[0].mxu0
      %v984 = vadd.f32 0.0, %v983
      %v985 = vpop.f32.mrb[0].mxu0
      %v986 = vadd.f32 0.0, %v985
      %987 = vmatprep.mubr.bf16.mxu0 0
      %988 = vmatmul.mubr.bf16.gmra.mrb[0].mxu0 %v352
      %v989 = vpop.f32.mrb[0].mxu0
      %v990 = vadd.f32 0.0, %v989
      %v991 = vpop.f32.mrb[0].mxu0
      %v992 = vadd.f32 0.0, %v991
      %v993 = vpop.f32.mrb[0].mxu0
      %v994 = vadd.f32 0.0, %v993
      %v995 = vpop.f32.mrb[0].mxu0
      %v996 = vadd.f32 0.0, %v995
      %997 = vmatprep.mubr.bf16.mxu0 0
      %998 = vmatmul.mubr.bf16.gmra.mrb[0].mxu0 %v353
      %v999 = vpop.f32.mrb[0].mxu0
      %v1000 = vadd.f32 0.0, %v999
      %v1001 = vpop.f32.mrb[0].mxu0
      %v1002 = vadd.f32 0.0, %v1001
      %v1003 = vpop.f32.mrb[0].mxu0
      %v1004 = vadd.f32 0.0, %v1003
      %v1005 = vpop.f32.mrb[0].mxu0
      %v1006 = vadd.f32 0.0, %v1005
      %1007 = vmatprep.mubr.bf16.mxu0 0
      %1008 = vmatmul.mubr.bf16.gmra.mrb[0].mxu0 %v354
      %v1009 = vpop.f32.mrb[0].mxu0
      %v1010 = vadd.f32 0.0, %v1009
      %v1011 = vpop.f32.mrb[0].mxu0
      %v1012 = vadd.f32 0.0, %v1011
      %v1013 = vpop.f32.mrb[0].mxu0
      %v1014 = vadd.f32 0.0, %v1013
      %v1015 = vpop.f32.mrb[0].mxu0
      %v1016 = vadd.f32 0.0, %v1015
      %1017 = vmatprep.mubr.bf16.mxu0 0
      %1018 = vmatmul.mubr.bf16.gmra.mrb[0].mxu0 %v355
      %v1019 = vpop.f32.mrb[0].mxu0
      %v1020 = vadd.f32 0.0, %v1019
      %v1021 = vpop.f32.mrb[0].mxu0
      %v1022 = vadd.f32 0.0, %v1021
      %v1023 = vpop.f32.mrb[0].mxu0
      %v1024 = vadd.f32 0.0, %v1023
      %v1025 = vpop.f32.mrb[0].mxu0
      %v1026 = vadd.f32 0.0, %v1025
      %1027 = vmatprep.mubr.bf16.mxu0 0
      %1028 = vmatmul.mubr.bf16.gmra.mrb[0].mxu0 %v356
      %v1029 = vpop.f32.mrb[0].mxu0
      %v1030 = vadd.f32 0.0, %v1029
      %v1031 = vpop.f32.mrb[0].mxu0
      %v1032 = vadd.f32 0.0, %v1031
      %v1033 = vpop.f32.mrb[0].mxu0
      %v1034 = vadd.f32 0.0, %v1033
      %v1035 = vpop.f32.mrb[0].mxu0
      %v1036 = vadd.f32 0.0, %v1035
      %1037 = vmatprep.mubr.bf16.mxu0 0
      %1038 = vmatmul.mubr.bf16.gmra.mrb[0].mxu0 %v357
      %v1039 = vpop.f32.mrb[0].mxu0
      %v1040 = vadd.f32 0.0, %v1039
      %v1041 = vpop.f32.mrb[0].mxu0
      %v1042 = vadd.f32 0.0, %v1041
      %v1043 = vpop.f32.mrb[0].mxu0
      %v1044 = vadd.f32 0.0, %v1043
      %v1045 = vpop.f32.mrb[0].mxu0
      %v1046 = vadd.f32 0.0, %v1045
      %1047 = vdwg.mxu0
      %1048 = vmatprep.subr.bf16.mxu0 0
      %1049 = vmatpush1.bf16.xpose.msra.mxu0 %v598
      %1050 = vmatprep.subr.bf16.mxu0 0
      %1051 = vmatpush1.bf16.xpose.msra.mxu0 %v599
      %1052 = vmatprep.subr.bf16.mxu0 0
      %1053 = vmatpush1.bf16.xpose.msra.mxu0 %v600
      %1054 = vmatprep.subr.bf16.mxu0 0
      %1055 = vmatpush1.bf16.xpose.msra.mxu0 %v601
      %1056 = vmatprep.subr.bf16.mxu0 0
      %1057 = vmatpush1.bf16.xpose.msra.mxu0 %v602
      %1058 = vmatprep.subr.bf16.mxu0 0
      %1059 = vmatpush1.bf16.xpose.msra.mxu0 %v603
      %1060 = vmatprep.subr.bf16.mxu0 0
      %1061 = vmatpush1.bf16.xpose.msra.mxu0 %v604
      %1062 = vmatprep.subr.bf16.mxu0 0
      %1063 = vmatpush1.bf16.xpose.msra.mxu0 %v605
      %1064 = vmatprep.subr.bf16.mxu0 0
      %1065 = vmatpush1.bf16.xpose.msra.mxu0 %v606
      %1066 = vmatprep.subr.bf16.mxu0 0
      %1067 = vmatpush1.bf16.xpose.msra.mxu0 %v607
      %1068 = vmatprep.subr.bf16.mxu0 0
      %1069 = vmatpush1.bf16.xpose.msra.mxu0 %v608
      %1070 = vmatprep.subr.bf16.mxu0 0
      %1071 = vmatpush1.bf16.xpose.msra.mxu0 %v609
      %1072 = vmatprep.subr.bf16.mxu0 0
      %1073 = vmatpush1.bf16.xpose.msra.mxu0 %v610
      %1074 = vmatprep.subr.bf16.mxu0 0
      %1075 = vmatpush1.bf16.xpose.msra.mxu0 %v611
      %1076 = vmatprep.subr.bf16.mxu0 0
      %1077 = vmatpush1.bf16.xpose.msra.mxu0 %v612
      %1078 = vmatprep.subr.bf16.mxu0 0
      %1079 = vmatpush1.bf16.xpose.msra.mxu0 %v613
      %1080 = vmatprep.mubr.bf16.mxu0 0
      %1081 = vmatmul.mubr.bf16.gmra.mrb[0].mxu0 %v342
      %v1082 = vpop.f32.mrb[0].mxu0
      %v1083 = vadd.f32 0.0, %v1082
      %v1084 = vpop.f32.mrb[0].mxu0
      %v1085 = vadd.f32 0.0, %v1084
      %v1086 = vpop.f32.mrb[0].mxu0
      %v1087 = vadd.f32 0.0, %v1086
      %v1088 = vpop.f32.mrb[0].mxu0
      %v1089 = vadd.f32 0.0, %v1088
      %1090 = vmatprep.mubr.bf16.mxu0 0
      %1091 = vmatmul.mubr.bf16.gmra.mrb[0].mxu0 %v343
      %v1092 = vpop.f32.mrb[0].mxu0
      %v1093 = vadd.f32 0.0, %v1092
      %v1094 = vpop.f32.mrb[0].mxu0
      %v1095 = vadd.f32 0.0, %v1094
      %v1096 = vpop.f32.mrb[0].mxu0
      %v1097 = vadd.f32 0.0, %v1096
      %v1098 = vpop.f32.mrb[0].mxu0
      %v1099 = vadd.f32 0.0, %v1098
      %1100 = vmatprep.mubr.bf16.mxu0 0
      %1101 = vmatmul.mubr.bf16.gmra.mrb[0].mxu0 %v344
      %v1102 = vpop.f32.mrb[0].mxu0
      %v1103 = vadd.f32 0.0, %v1102
      %v1104 = vpop.f32.mrb[0].mxu0
      %v1105 = vadd.f32 0.0, %v1104
      %v1106 = vpop.f32.mrb[0].mxu0
      %v1107 = vadd.f32 0.0, %v1106
      %v1108 = vpop.f32.mrb[0].mxu0
      %v1109 = vadd.f32 0.0, %v1108
      %1110 = vmatprep.mubr.bf16.mxu0 0
      %1111 = vmatmul.mubr.bf16.gmra.mrb[0].mxu0 %v345
      %v1112 = vpop.f32.mrb[0].mxu0
      %v1113 = vadd.f32 0.0, %v1112
      %v1114 = vpop.f32.mrb[0].mxu0
      %v1115 = vadd.f32 0.0, %v1114
      %v1116 = vpop.f32.mrb[0].mxu0
      %v1117 = vadd.f32 0.0, %v1116
      %v1118 = vpop.f32.mrb[0].mxu0
      %v1119 = vadd.f32 0.0, %v1118
      %1120 = vmatprep.mubr.bf16.mxu0 0
      %1121 = vmatmul.mubr.bf16.gmra.mrb[0].mxu0 %v346
      %v1122 = vpop.f32.mrb[0].mxu0
      %v1123 = vadd.f32 0.0, %v1122
      %v1124 = vpop.f32.mrb[0].mxu0
      %v1125 = vadd.f32 0.0, %v1124
      %v1126 = vpop.f32.mrb[0].mxu0
      %v1127 = vadd.f32 0.0, %v1126
      %v1128 = vpop.f32.mrb[0].mxu0
      %v1129 = vadd.f32 0.0, %v1128
      %1130 = vmatprep.mubr.bf16.mxu0 0
      %1131 = vmatmul.mubr.bf16.gmra.mrb[0].mxu0 %v347
      %v1132 = vpop.f32.mrb[0].mxu0
      %v1133 = vadd.f32 0.0, %v1132
      %v1134 = vpop.f32.mrb[0].mxu0
      %v1135 = vadd.f32 0.0, %v1134
      %v1136 = vpop.f32.mrb[0].mxu0
      %v1137 = vadd.f32 0.0, %v1136
      %v1138 = vpop.f32.mrb[0].mxu0
      %v1139 = vadd.f32 0.0, %v1138
      %1140 = vmatprep.mubr.bf16.mxu0 0
      %1141 = vmatmul.mubr.bf16.gmra.mrb[0].mxu0 %v348
      %v1142 = vpop.f32.mrb[0].mxu0
      %v1143 = vadd.f32 0.0, %v1142
      %v1144 = vpop.f32.mrb[0].mxu0
      %v1145 = vadd.f32 0.0, %v1144
      %v1146 = vpop.f32.mrb[0].mxu0
      %v1147 = vadd.f32 0.0, %v1146
      %v1148 = vpop.f32.mrb[0].mxu0
      %v1149 = vadd.f32 0.0, %v1148
      %1150 = vmatprep.mubr.bf16.mxu0 0
      %1151 = vmatmul.mubr.bf16.gmra.mrb[0].mxu0 %v349
      %v1152 = vpop.f32.mrb[0].mxu0
      %v1153 = vadd.f32 0.0, %v1152
      %v1154 = vpop.f32.mrb[0].mxu0
      %v1155 = vadd.f32 0.0, %v1154
      %v1156 = vpop.f32.mrb[0].mxu0
      %v1157 = vadd.f32 0.0, %v1156
      %v1158 = vpop.f32.mrb[0].mxu0
      %v1159 = vadd.f32 0.0, %v1158
      %1160 = vmatprep.mubr.bf16.mxu0 0
      %1161 = vmatmul.mubr.bf16.gmra.mrb[0].mxu0 %v350
      %v1162 = vpop.f32.mrb[0].mxu0
      %v1163 = vadd.f32 0.0, %v1162
      %v1164 = vpop.f32.mrb[0].mxu0
      %v1165 = vadd.f32 0.0, %v1164
      %v1166 = vpop.f32.mrb[0].mxu0
      %v1167 = vadd.f32 0.0, %v1166
      %v1168 = vpop.f32.mrb[0].mxu0
      %v1169 = vadd.f32 0.0, %v1168
      %1170 = vmatprep.mubr.bf16.mxu0 0
      %1171 = vmatmul.mubr.bf16.gmra.mrb[0].mxu0 %v351
      %v1172 = vpop.f32.mrb[0].mxu0
      %v1173 = vadd.f32 0.0, %v1172
      %v1174 = vpop.f32.mrb[0].mxu0
      %v1175 = vadd.f32 0.0, %v1174
      %v1176 = vpop.f32.mrb[0].mxu0
      %v1177 = vadd.f32 0.0, %v1176
      %v1178 = vpop.f32.mrb[0].mxu0
      %v1179 = vadd.f32 0.0, %v1178
      %1180 = vmatprep.mubr.bf16.mxu0 0
      %1181 = vmatmul.mubr.bf16.gmra.mrb[0].mxu0 %v352
      %v1182 = vpop.f32.mrb[0].mxu0
      %v1183 = vadd.f32 0.0, %v1182
      %v1184 = vpop.f32.mrb[0].mxu0
      %v1185 = vadd.f32 0.0, %v1184
      %v1186 = vpop.f32.mrb[0].mxu0
      %v1187 = vadd.f32 0.0, %v1186
      %v1188 = vpop.f32.mrb[0].mxu0
      %v1189 = vadd.f32 0.0, %v1188
      %1190 = vmatprep.mubr.bf16.mxu0 0
      %1191 = vmatmul.mubr.bf16.gmra.mrb[0].mxu0 %v353
      %v1192 = vpop.f32.mrb[0].mxu0
      %v1193 = vadd.f32 0.0, %v1192
      %v1194 = vpop.f32.mrb[0].mxu0
      %v1195 = vadd.f32 0.0, %v1194
      %v1196 = vpop.f32.mrb[0].mxu0
      %v1197 = vadd.f32 0.0, %v1196
      %v1198 = vpop.f32.mrb[0].mxu0
      %v1199 = vadd.f32 0.0, %v1198
      %1200 = vmatprep.mubr.bf16.mxu0 0
      %1201 = vmatmul.mubr.bf16.gmra.mrb[0].mxu0 %v354
      %v1202 = vpop.f32.mrb[0].mxu0
      %v1203 = vadd.f32 0.0, %v1202
      %v1204 = vpop.f32.mrb[0].mxu0
      %v1205 = vadd.f32 0.0, %v1204
      %v1206 = vpop.f32.mrb[0].mxu0
      %v1207 = vadd.f32 0.0, %v1206
      %v1208 = vpop.f32.mrb[0].mxu0
      %v1209 = vadd.f32 0.0, %v1208
      %1210 = vmatprep.mubr.bf16.mxu0 0
      %1211 = vmatmul.mubr.bf16.gmra.mrb[0].mxu0 %v355
      %v1212 = vpop.f32.mrb[0].mxu0
      %v1213 = vadd.f32 0.0, %v1212
      %v1214 = vpop.f32.mrb[0].mxu0
      %v1215 = vadd.f32 0.0, %v1214
      %v1216 = vpop.f32.mrb[0].mxu0
      %v1217 = vadd.f32 0.0, %v1216
      %v1218 = vpop.f32.mrb[0].mxu0
      %v1219 = vadd.f32 0.0, %v1218
      %1220 = vmatprep.mubr.bf16.mxu0 0
      %1221 = vmatmul.mubr.bf16.gmra.mrb[0].mxu0 %v356
      %v1222 = vpop.f32.mrb[0].mxu0
      %v1223 = vadd.f32 0.0, %v1222
      %v1224 = vpop.f32.mrb[0].mxu0
      %v1225 = vadd.f32 0.0, %v1224
      %v1226 = vpop.f32.mrb[0].mxu0
      %v1227 = vadd.f32 0.0, %v1226
      %v1228 = vpop.f32.mrb[0].mxu0
      %v1229 = vadd.f32 0.0, %v1228
      %1230 = vmatprep.mubr.bf16.mxu0 0
      %1231 = vmatmul.mubr.bf16.gmra.mrb[0].mxu0 %v357
      %v1232 = vpop.f32.mrb[0].mxu0
      %v1233 = vadd.f32 0.0, %v1232
      %v1234 = vpop.f32.mrb[0].mxu0
      %v1235 = vadd.f32 0.0, %v1234
      %v1236 = vpop.f32.mrb[0].mxu0
      %v1237 = vadd.f32 0.0, %v1236
      %v1238 = vpop.f32.mrb[0].mxu0
      %v1239 = vadd.f32 0.0, %v1238
      %1240 = vdwg.mxu0
      %v1241 = vmul.f32 %v697, 0.5
      %v1242 = vmul.f32 %v699, 0.5
      %v1243 = vmul.f32 %v890, 0.5
      %v1244 = vmul.f32 %v892, 0.5
      %v1245 = vmul.f32 %v1083, 0.5
      %v1246 = vmul.f32 %v1085, 0.5
      %v1247 = vmul.f32 %v701, 0.5
      %v1248 = vmul.f32 %v703, 0.5
      %v1249 = vmul.f32 %v894, 0.5
      %v1250 = vmul.f32 %v896, 0.5
      %v1251 = vmul.f32 %v1087, 0.5
      %v1252 = vmul.f32 %v1089, 0.5
      %v1253 = vmul.f32 %v707, 0.5
      %v1254 = vmul.f32 %v709, 0.5
      %v1255 = vmul.f32 %v900, 0.5
      %v1256 = vmul.f32 %v902, 0.5
      %v1257 = vmul.f32 %v1093, 0.5
      %v1258 = vmul.f32 %v1095, 0.5
      %v1259 = vmul.f32 %v711, 0.5
      %v1260 = vmul.f32 %v713, 0.5
      %v1261 = vmul.f32 %v904, 0.5
      %v1262 = vmul.f32 %v906, 0.5
      %v1263 = vmul.f32 %v1097, 0.5
      %v1264 = vmul.f32 %v1099, 0.5
      %v1265 = vmul.f32 %v717, 0.5
      %v1266 = vmul.f32 %v719, 0.5
      %v1267 = vmul.f32 %v910, 0.5
      %v1268 = vmul.f32 %v912, 0.5
      %v1269 = vmul.f32 %v1103, 0.5
      %v1270 = vmul.f32 %v1105, 0.5
      %v1271 = vmul.f32 %v721, 0.5
      %v1272 = vmul.f32 %v723, 0.5
      %v1273 = vmul.f32 %v914, 0.5
      %v1274 = vmul.f32 %v916, 0.5
      %v1275 = vmul.f32 %v1107, 0.5
      %v1276 = vmul.f32 %v1109, 0.5
      %v1277 = vmul.f32 %v727, 0.5
      %v1278 = vmul.f32 %v729, 0.5
      %v1279 = vmul.f32 %v920, 0.5
      %v1280 = vmul.f32 %v922, 0.5
      %v1281 = vmul.f32 %v1113, 0.5
      %v1282 = vmul.f32 %v1115, 0.5
      %v1283 = vmul.f32 %v731, 0.5
      %v1284 = vmul.f32 %v733, 0.5
      %v1285 = vmul.f32 %v924, 0.5
      %v1286 = vmul.f32 %v926, 0.5
      %v1287 = vmul.f32 %v1117, 0.5
      %v1288 = vmul.f32 %v1119, 0.5
      %v1289 = vmul.f32 %v737, 0.5
      %v1290 = vmul.f32 %v739, 0.5
      %v1291 = vmul.f32 %v930, 0.5
      %v1292 = vmul.f32 %v932, 0.5
      %v1293 = vmul.f32 %v1123, 0.5
      %v1294 = vmul.f32 %v1125, 0.5
      %v1295 = vmul.f32 %v741, 0.5
      %v1296 = vmul.f32 %v743, 0.5
      %v1297 = vmul.f32 %v934, 0.5
      %v1298 = vmul.f32 %v936, 0.5
      %v1299 = vmul.f32 %v1127, 0.5
      %v1300 = vmul.f32 %v1129, 0.5
      %v1301 = vmul.f32 %v747, 0.5
      %v1302 = vmul.f32 %v749, 0.5
      %v1303 = vmul.f32 %v940, 0.5
      %v1304 = vmul.f32 %v942, 0.5
      %v1305 = vmul.f32 %v1133, 0.5
      %v1306 = vmul.f32 %v1135, 0.5
      %v1307 = vmul.f32 %v751, 0.5
      %v1308 = vmul.f32 %v753, 0.5
      %v1309 = vmul.f32 %v944, 0.5
      %v1310 = vmul.f32 %v946, 0.5
      %v1311 = vmul.f32 %v1137, 0.5
      %v1312 = vmul.f32 %v1139, 0.5
      %v1313 = vmul.f32 %v757, 0.5
      %v1314 = vmul.f32 %v759, 0.5
      %v1315 = vmul.f32 %v950, 0.5
      %v1316 = vmul.f32 %v952, 0.5
      %v1317 = vmul.f32 %v1143, 0.5
      %v1318 = vmul.f32 %v1145, 0.5
      %v1319 = vmul.f32 %v761, 0.5
      %v1320 = vmul.f32 %v763, 0.5
      %v1321 = vmul.f32 %v954, 0.5
      %v1322 = vmul.f32 %v956, 0.5
      %v1323 = vmul.f32 %v1147, 0.5
      %v1324 = vmul.f32 %v1149, 0.5
      %v1325 = vmul.f32 %v767, 0.5
      %v1326 = vmul.f32 %v769, 0.5
      %v1327 = vmul.f32 %v960, 0.5
      %v1328 = vmul.f32 %v962, 0.5
      %v1329 = vmul.f32 %v1153, 0.5
      %v1330 = vmul.f32 %v1155, 0.5
      %v1331 = vmul.f32 %v771, 0.5
      %v1332 = vmul.f32 %v773, 0.5
      %v1333 = vmul.f32 %v964, 0.5
      %v1334 = vmul.f32 %v966, 0.5
      %v1335 = vmul.f32 %v1157, 0.5
      %v1336 = vmul.f32 %v1159, 0.5
      %v1337 = vmul.f32 %v777, 0.5
      %v1338 = vmul.f32 %v779, 0.5
      %v1339 = vmul.f32 %v970, 0.5
      %v1340 = vmul.f32 %v972, 0.5
      %v1341 = vmul.f32 %v1163, 0.5
      %v1342 = vmul.f32 %v1165, 0.5
      %v1343 = vmul.f32 %v781, 0.5
      %v1344 = vmul.f32 %v783, 0.5
      %v1345 = vmul.f32 %v974, 0.5
      %v1346 = vmul.f32 %v976, 0.5
      %v1347 = vmul.f32 %v1167, 0.5
      %v1348 = vmul.f32 %v1169, 0.5
      %v1349 = vmul.f32 %v787, 0.5
      %v1350 = vmul.f32 %v789, 0.5
      %v1351 = vmul.f32 %v980, 0.5
      %v1352 = vmul.f32 %v982, 0.5
      %v1353 = vmul.f32 %v1173, 0.5
      %v1354 = vmul.f32 %v1175, 0.5
      %v1355 = vmul.f32 %v791, 0.5
      %v1356 = vmul.f32 %v793, 0.5
      %v1357 = vmul.f32 %v984, 0.5
      %v1358 = vmul.f32 %v986, 0.5
      %v1359 = vmul.f32 %v1177, 0.5
      %v1360 = vmul.f32 %v1179, 0.5
      %v1361 = vmul.f32 %v797, 0.5
      %v1362 = vmul.f32 %v799, 0.5
      %v1363 = vmul.f32 %v990, 0.5
      %v1364 = vmul.f32 %v992, 0.5
      %v1365 = vmul.f32 %v1183, 0.5
      %v1366 = vmul.f32 %v1185, 0.5
      %v1367 = vmul.f32 %v801, 0.5
      %v1368 = vmul.f32 %v803, 0.5
      %v1369 = vmul.f32 %v994, 0.5
      %v1370 = vmul.f32 %v996, 0.5
      %v1371 = vmul.f32 %v1187, 0.5
      %v1372 = vmul.f32 %v1189, 0.5
      %v1373 = vmul.f32 %v807, 0.5
      %v1374 = vmul.f32 %v809, 0.5
      %v1375 = vmul.f32 %v1000, 0.5
      %v1376 = vmul.f32 %v1002, 0.5
      %v1377 = vmul.f32 %v1193, 0.5
      %v1378 = vmul.f32 %v1195, 0.5
      %v1379 = vmul.f32 %v811, 0.5
      %v1380 = vmul.f32 %v813, 0.5
      %v1381 = vmul.f32 %v1004, 0.5
      %v1382 = vmul.f32 %v1006, 0.5
      %v1383 = vmul.f32 %v1197, 0.5
      %v1384 = vmul.f32 %v1199, 0.5
      %v1385 = vmul.f32 %v817, 0.5
      %v1386 = vmul.f32 %v819, 0.5
      %v1387 = vmul.f32 %v1010, 0.5
      %v1388 = vmul.f32 %v1012, 0.5
      %v1389 = vmul.f32 %v1203, 0.5
      %v1390 = vmul.f32 %v1205, 0.5
      %v1391 = vmul.f32 %v821, 0.5
      %v1392 = vmul.f32 %v823, 0.5
      %v1393 = vmul.f32 %v1014, 0.5
      %v1394 = vmul.f32 %v1016, 0.5
      %v1395 = vmul.f32 %v1207, 0.5
      %v1396 = vmul.f32 %v1209, 0.5
      %v1397 = vmul.f32 %v827, 0.5
      %v1398 = vmul.f32 %v829, 0.5
      %v1399 = vmul.f32 %v1020, 0.5
      %v1400 = vmul.f32 %v1022, 0.5
      %v1401 = vmul.f32 %v1213, 0.5
      %v1402 = vmul.f32 %v1215, 0.5
      %v1403 = vmul.f32 %v831, 0.5
      %v1404 = vmul.f32 %v833, 0.5
      %v1405 = vmul.f32 %v1024, 0.5
      %v1406 = vmul.f32 %v1026, 0.5
      %v1407 = vmul.f32 %v1217, 0.5
      %v1408 = vmul.f32 %v1219, 0.5
      %v1409 = vmul.f32 %v837, 0.5
      %v1410 = vmul.f32 %v839, 0.5
      %v1411 = vmul.f32 %v1030, 0.5
      %v1412 = vmul.f32 %v1032, 0.5
      %v1413 = vmul.f32 %v1223, 0.5
      %v1414 = vmul.f32 %v1225, 0.5
      %v1415 = vmul.f32 %v841, 0.5
      %v1416 = vmul.f32 %v843, 0.5
      %v1417 = vmul.f32 %v1034, 0.5
      %v1418 = vmul.f32 %v1036, 0.5
      %v1419 = vmul.f32 %v1227, 0.5
      %v1420 = vmul.f32 %v1229, 0.5
      %v1421 = vmul.f32 %v847, 0.5
      %v1422 = vmul.f32 %v849, 0.5
      %v1423 = vmul.f32 %v1040, 0.5
      %v1424 = vmul.f32 %v1042, 0.5
      %v1425 = vmul.f32 %v1233, 0.5
      %v1426 = vmul.f32 %v1235, 0.5
      %v1427 = vmul.f32 %v851, 0.5
      %v1428 = vmul.f32 %v853, 0.5
      %v1429 = vmul.f32 %v1044, 0.5
      %v1430 = vmul.f32 %v1046, 0.5
      %v1431 = vmul.f32 %v1237, 0.5
      %v1432 = vmul.f32 %v1239, 0.5
      %v1433 = vtanh.pop %v1241
      %v1434 = vtanh.pop %v1242
      %v1435 = vtanh.pop %v1243
      %v1436 = vtanh.pop %v1244
      %v1437 = vtanh.pop %v1245
      %v1438 = vtanh.pop %v1246
      %v1439 = vtanh.pop %v1247
      %v1440 = vtanh.pop %v1248
      %v1441 = vtanh.pop %v1249
      %v1442 = vtanh.pop %v1250
      %v1443 = vtanh.pop %v1251
      %v1444 = vtanh.pop %v1252
      %v1445 = vtanh.pop %v1253
      %v1446 = vtanh.pop %v1254
      %v1447 = vtanh.pop %v1255
      %v1448 = vtanh.pop %v1256
      %v1449 = vtanh.pop %v1257
      %v1450 = vtanh.pop %v1258
      %v1451 = vtanh.pop %v1259
      %v1452 = vtanh.pop %v1260
      %v1453 = vtanh.pop %v1261
      %v1454 = vtanh.pop %v1262
      %v1455 = vtanh.pop %v1263
      %v1456 = vtanh.pop %v1264
      %v1457 = vtanh.pop %v1265
      %v1458 = vtanh.pop %v1266
      %v1459 = vtanh.pop %v1267
      %v1460 = vtanh.pop %v1268
      %v1461 = vtanh.pop %v1269
      %v1462 = vtanh.pop %v1270
      %v1463 = vtanh.pop %v1271
      %v1464 = vtanh.pop %v1272
      %v1465 = vtanh.pop %v1273
      %v1466 = vtanh.pop %v1274
      %v1467 = vtanh.pop %v1275
      %v1468 = vtanh.pop %v1276
      %v1469 = vtanh.pop %v1277
      %v1470 = vtanh.pop %v1278
      %v1471 = vtanh.pop %v1279
      %v1472 = vtanh.pop %v1280
      %v1473 = vtanh.pop %v1281
      %v1474 = vtanh.pop %v1282
      %v1475 = vtanh.pop %v1283
      %v1476 = vtanh.pop %v1284
      %v1477 = vtanh.pop %v1285
      %v1478 = vtanh.pop %v1286
      %v1479 = vtanh.pop %v1287
      %v1480 = vtanh.pop %v1288
      %v1481 = vtanh.pop %v1289
      %v1482 = vtanh.pop %v1290
      %v1483 = vtanh.pop %v1291
      %v1484 = vtanh.pop %v1292
      %v1485 = vtanh.pop %v1293
      %v1486 = vtanh.pop %v1294
      %v1487 = vtanh.pop %v1295
      %v1488 = vtanh.pop %v1296
      %v1489 = vtanh.pop %v1297
      %v1490 = vtanh.pop %v1298
      %v1491 = vtanh.pop %v1299
      %v1492 = vtanh.pop %v1300
      %v1493 = vtanh.pop %v1301
      %v1494 = vtanh.pop %v1302
      %v1495 = vtanh.pop %v1303
      %v1496 = vtanh.pop %v1304
      %v1497 = vtanh.pop %v1305
      %v1498 = vtanh.pop %v1306
      %v1499 = vtanh.pop %v1307
      %v1500 = vtanh.pop %v1308
      %v1501 = vtanh.pop %v1309
      %v1502 = vtanh.pop %v1310
      %v1503 = vtanh.pop %v1311
      %v1504 = vtanh.pop %v1312
      %v1505 = vtanh.pop %v1313
      %v1506 = vtanh.pop %v1314
      %v1507 = vtanh.pop %v1315
      %v1508 = vtanh.pop %v1316
      %v1509 = vtanh.pop %v1317
      %v1510 = vtanh.pop %v1318
      %v1511 = vtanh.pop %v1319
      %v1512 = vtanh.pop %v1320
      %v1513 = vtanh.pop %v1321
      %v1514 = vtanh.pop %v1322
      %v1515 = vtanh.pop %v1323
      %v1516 = vtanh.pop %v1324
      %v1517 = vtanh.pop %v1325
      %v1518 = vtanh.pop %v1326
      %v1519 = vtanh.pop %v1327
      %v1520 = vtanh.pop %v1328
      %v1521 = vtanh.pop %v1329
      %v1522 = vtanh.pop %v1330
      %v1523 = vtanh.pop %v1331
      %v1524 = vtanh.pop %v1332
      %v1525 = vtanh.pop %v1333
      %v1526 = vtanh.pop %v1334
      %v1527 = vtanh.pop %v1335
      %v1528 = vtanh.pop %v1336
      %v1529 = vtanh.pop %v1337
      %v1530 = vtanh.pop %v1338
      %v1531 = vtanh.pop %v1339
      %v1532 = vtanh.pop %v1340
      %v1533 = vtanh.pop %v1341
      %v1534 = vtanh.pop %v1342
      %v1535 = vtanh.pop %v1343
      %v1536 = vtanh.pop %v1344
      %v1537 = vtanh.pop %v1345
      %v1538 = vtanh.pop %v1346
      %v1539 = vtanh.pop %v1347
      %v1540 = vtanh.pop %v1348
      %v1541 = vtanh.pop %v1349
      %v1542 = vtanh.pop %v1350
      %v1543 = vtanh.pop %v1351
      %v1544 = vtanh.pop %v1352
      %v1545 = vtanh.pop %v1353
      %v1546 = vtanh.pop %v1354
      %v1547 = vtanh.pop %v1355
      %v1548 = vtanh.pop %v1356
      %v1549 = vtanh.pop %v1357
      %v1550 = vtanh.pop %v1358
      %v1551 = vtanh.pop %v1359
      %v1552 = vtanh.pop %v1360
      %v1553 = vtanh.pop %v1361
      %v1554 = vtanh.pop %v1362
      %v1555 = vtanh.pop %v1363
      %v1556 = vtanh.pop %v1364
      %v1557 = vtanh.pop %v1365
      %v1558 = vtanh.pop %v1366
      %v1559 = vtanh.pop %v1367
      %v1560 = vtanh.pop %v1368
      %v1561 = vtanh.pop %v1369
      %v1562 = vtanh.pop %v1370
      %v1563 = vtanh.pop %v1371
      %v1564 = vtanh.pop %v1372
      %v1565 = vtanh.pop %v1373
      %v1566 = vtanh.pop %v1374
      %v1567 = vtanh.pop %v1375
      %v1568 = vtanh.pop %v1376
      %v1569 = vtanh.pop %v1377
      %v1570 = vtanh.pop %v1378
      %v1571 = vtanh.pop %v1379
      %v1572 = vtanh.pop %v1380
      %v1573 = vtanh.pop %v1381
      %v1574 = vtanh.pop %v1382
      %v1575 = vtanh.pop %v1383
      %v1576 = vtanh.pop %v1384
      %v1577 = vtanh.pop %v1385
      %v1578 = vtanh.pop %v1386
      %v1579 = vtanh.pop %v1387
      %v1580 = vtanh.pop %v1388
      %v1581 = vtanh.pop %v1389
      %v1582 = vtanh.pop %v1390
      %v1583 = vtanh.pop %v1391
      %v1584 = vtanh.pop %v1392
      %v1585 = vtanh.pop %v1393
      %v1586 = vtanh.pop %v1394
      %v1587 = vtanh.pop %v1395
      %v1588 = vtanh.pop %v1396
      %v1589 = vtanh.pop %v1397
      %v1590 = vtanh.pop %v1398
      %v1591 = vtanh.pop %v1399
      %v1592 = vtanh.pop %v1400
      %v1593 = vtanh.pop %v1401
      %v1594 = vtanh.pop %v1402
      %v1595 = vtanh.pop %v1403
      %v1596 = vtanh.pop %v1404
      %v1597 = vtanh.pop %v1405
      %v1598 = vtanh.pop %v1406
      %v1599 = vtanh.pop %v1407
      %v1600 = vtanh.pop %v1408
      %v1601 = vtanh.pop %v1409
      %v1602 = vtanh.pop %v1410
      %v1603 = vtanh.pop %v1411
      %v1604 = vtanh.pop %v1412
      %v1605 = vtanh.pop %v1413
      %v1606 = vtanh.pop %v1414
      %v1607 = vtanh.pop %v1415
      %v1608 = vtanh.pop %v1416
      %v1609 = vtanh.pop %v1417
      %v1610 = vtanh.pop %v1418
      %v1611 = vtanh.pop %v1419
      %v1612 = vtanh.pop %v1420
      %v1613 = vtanh.pop %v1421
      %v1614 = vtanh.pop %v1422
      %v1615 = vtanh.pop %v1423
      %v1616 = vtanh.pop %v1424
      %v1617 = vtanh.pop %v1425
      %v1618 = vtanh.pop %v1426
      %v1619 = vtanh.pop %v1427
      %v1620 = vtanh.pop %v1428
      %v1621 = vtanh.pop %v1429
      %v1622 = vtanh.pop %v1430
      %v1623 = vtanh.pop %v1431
      %v1624 = vtanh.pop %v1432
      %v1625 = vadd.f32 %v1433, 1.0
      %v1626 = vadd.f32 %v1434, 1.0
      %v1627 = vadd.f32 %v1435, 1.0
      %v1628 = vadd.f32 %v1436, 1.0
      %v1629 = vadd.f32 %v1437, 1.0
      %v1630 = vadd.f32 %v1438, 1.0
      %v1631 = vadd.f32 %v1439, 1.0
      %v1632 = vadd.f32 %v1440, 1.0
      %v1633 = vadd.f32 %v1441, 1.0
      %v1634 = vadd.f32 %v1442, 1.0
      %v1635 = vadd.f32 %v1443, 1.0
      %v1636 = vadd.f32 %v1444, 1.0
      %v1637 = vadd.f32 %v1445, 1.0
      %v1638 = vadd.f32 %v1446, 1.0
      %v1639 = vadd.f32 %v1447, 1.0
      %v1640 = vadd.f32 %v1448, 1.0
      %v1641 = vadd.f32 %v1449, 1.0
      %v1642 = vadd.f32 %v1450, 1.0
      %v1643 = vadd.f32 %v1451, 1.0
      %v1644 = vadd.f32 %v1452, 1.0
      %v1645 = vadd.f32 %v1453, 1.0
      %v1646 = vadd.f32 %v1454, 1.0
      %v1647 = vadd.f32 %v1455, 1.0
      %v1648 = vadd.f32 %v1456, 1.0
      %v1649 = vadd.f32 %v1457, 1.0
      %v1650 = vadd.f32 %v1458, 1.0
      %v1651 = vadd.f32 %v1459, 1.0
      %v1652 = vadd.f32 %v1460, 1.0
      %v1653 = vadd.f32 %v1461, 1.0
      %v1654 = vadd.f32 %v1462, 1.0
      %v1655 = vadd.f32 %v1463, 1.0
      %v1656 = vadd.f32 %v1464, 1.0
      %v1657 = vadd.f32 %v1465, 1.0
      %v1658 = vadd.f32 %v1466, 1.0
      %v1659 = vadd.f32 %v1467, 1.0
      %v1660 = vadd.f32 %v1468, 1.0
      %v1661 = vadd.f32 %v1469, 1.0
      %v1662 = vadd.f32 %v1470, 1.0
      %v1663 = vadd.f32 %v1471, 1.0
      %v1664 = vadd.f32 %v1472, 1.0
      %v1665 = vadd.f32 %v1473, 1.0
      %v1666 = vadd.f32 %v1474, 1.0
      %v1667 = vadd.f32 %v1475, 1.0
      %v1668 = vadd.f32 %v1476, 1.0
      %v1669 = vadd.f32 %v1477, 1.0
      %v1670 = vadd.f32 %v1478, 1.0
      %v1671 = vadd.f32 %v1479, 1.0
      %v1672 = vadd.f32 %v1480, 1.0
      %v1673 = vadd.f32 %v1481, 1.0
      %v1674 = vadd.f32 %v1482, 1.0
      %v1675 = vadd.f32 %v1483, 1.0
      %v1676 = vadd.f32 %v1484, 1.0
      %v1677 = vadd.f32 %v1485, 1.0
      %v1678 = vadd.f32 %v1486, 1.0
      %v1679 = vadd.f32 %v1487, 1.0
      %v1680 = vadd.f32 %v1488, 1.0
      %v1681 = vadd.f32 %v1489, 1.0
      %v1682 = vadd.f32 %v1490, 1.0
      %v1683 = vadd.f32 %v1491, 1.0
      %v1684 = vadd.f32 %v1492, 1.0
      %v1685 = vadd.f32 %v1493, 1.0
      %v1686 = vadd.f32 %v1494, 1.0
      %v1687 = vadd.f32 %v1495, 1.0
      %v1688 = vadd.f32 %v1496, 1.0
      %v1689 = vadd.f32 %v1497, 1.0
      %v1690 = vadd.f32 %v1498, 1.0
      %v1691 = vadd.f32 %v1499, 1.0
      %v1692 = vadd.f32 %v1500, 1.0
      %v1693 = vadd.f32 %v1501, 1.0
      %v1694 = vadd.f32 %v1502, 1.0
      %v1695 = vadd.f32 %v1503, 1.0
      %v1696 = vadd.f32 %v1504, 1.0
      %v1697 = vadd.f32 %v1505, 1.0
      %v1698 = vadd.f32 %v1506, 1.0
      %v1699 = vadd.f32 %v1507, 1.0
      %v1700 = vadd.f32 %v1508, 1.0
      %v1701 = vadd.f32 %v1509, 1.0
      %v1702 = vadd.f32 %v1510, 1.0
      %v1703 = vadd.f32 %v1511, 1.0
      %v1704 = vadd.f32 %v1512, 1.0
      %v1705 = vadd.f32 %v1513, 1.0
      %v1706 = vadd.f32 %v1514, 1.0
      %v1707 = vadd.f32 %v1515, 1.0
      %v1708 = vadd.f32 %v1516, 1.0
      %v1709 = vadd.f32 %v1517, 1.0
      %v1710 = vadd.f32 %v1518, 1.0
      %v1711 = vadd.f32 %v1519, 1.0
      %v1712 = vadd.f32 %v1520, 1.0
      %v1713 = vadd.f32 %v1521, 1.0
      %v1714 = vadd.f32 %v1522, 1.0
      %v1715 = vadd.f32 %v1523, 1.0
      %v1716 = vadd.f32 %v1524, 1.0
      %v1717 = vadd.f32 %v1525, 1.0
      %v1718 = vadd.f32 %v1526, 1.0
      %v1719 = vadd.f32 %v1527, 1.0
      %v1720 = vadd.f32 %v1528, 1.0
      %v1721 = vadd.f32 %v1529, 1.0
      %v1722 = vadd.f32 %v1530, 1.0
      %v1723 = vadd.f32 %v1531, 1.0
      %v1724 = vadd.f32 %v1532, 1.0
      %v1725 = vadd.f32 %v1533, 1.0
      %v1726 = vadd.f32 %v1534, 1.0
      %v1727 = vadd.f32 %v1535, 1.0
      %v1728 = vadd.f32 %v1536, 1.0
      %v1729 = vadd.f32 %v1537, 1.0
      %v1730 = vadd.f32 %v1538, 1.0
      %v1731 = vadd.f32 %v1539, 1.0
      %v1732 = vadd.f32 %v1540, 1.0
      %v1733 = vadd.f32 %v1541, 1.0
      %v1734 = vadd.f32 %v1542, 1.0
      %v1735 = vadd.f32 %v1543, 1.0
      %v1736 = vadd.f32 %v1544, 1.0
      %v1737 = vadd.f32 %v1545, 1.0
      %v1738 = vadd.f32 %v1546, 1.0
      %v1739 = vadd.f32 %v1547, 1.0
      %v1740 = vadd.f32 %v1548, 1.0
      %v1741 = vadd.f32 %v1549, 1.0
      %v1742 = vadd.f32 %v1550, 1.0
      %v1743 = vadd.f32 %v1551, 1.0
      %v1744 = vadd.f32 %v1552, 1.0
      %v1745 = vadd.f32 %v1553, 1.0
      %v1746 = vadd.f32 %v1554, 1.0
      %v1747 = vadd.f32 %v1555, 1.0
      %v1748 = vadd.f32 %v1556, 1.0
      %v1749 = vadd.f32 %v1557, 1.0
      %v1750 = vadd.f32 %v1558, 1.0
      %v1751 = vadd.f32 %v1559, 1.0
      %v1752 = vadd.f32 %v1560, 1.0
      %v1753 = vadd.f32 %v1561, 1.0
      %v1754 = vadd.f32 %v1562, 1.0
      %v1755 = vadd.f32 %v1563, 1.0
      %v1756 = vadd.f32 %v1564, 1.0
      %v1757 = vadd.f32 %v1565, 1.0
      %v1758 = vadd.f32 %v1566, 1.0
      %v1759 = vadd.f32 %v1567, 1.0
      %v1760 = vadd.f32 %v1568, 1.0
      %v1761 = vadd.f32 %v1569, 1.0
      %v1762 = vadd.f32 %v1570, 1.0
      %v1763 = vadd.f32 %v1571, 1.0
      %v1764 = vadd.f32 %v1572, 1.0
      %v1765 = vadd.f32 %v1573, 1.0
      %v1766 = vadd.f32 %v1574, 1.0
      %v1767 = vadd.f32 %v1575, 1.0
      %v1768 = vadd.f32 %v1576, 1.0
      %v1769 = vadd.f32 %v1577, 1.0
      %v1770 = vadd.f32 %v1578, 1.0
      %v1771 = vadd.f32 %v1579, 1.0
      %v1772 = vadd.f32 %v1580, 1.0
      %v1773 = vadd.f32 %v1581, 1.0
      %v1774 = vadd.f32 %v1582, 1.0
      %v1775 = vadd.f32 %v1583, 1.0
      %v1776 = vadd.f32 %v1584, 1.0
      %v1777 = vadd.f32 %v1585, 1.0
      %v1778 = vadd.f32 %v1586, 1.0
      %v1779 = vadd.f32 %v1587, 1.0
      %v1780 = vadd.f32 %v1588, 1.0
      %v1781 = vadd.f32 %v1589, 1.0
      %v1782 = vadd.f32 %v1590, 1.0
      %v1783 = vadd.f32 %v1591, 1.0
      %v1784 = vadd.f32 %v1592, 1.0
      %v1785 = vadd.f32 %v1593, 1.0
      %v1786 = vadd.f32 %v1594, 1.0
      %v1787 = vadd.f32 %v1595, 1.0
      %v1788 = vadd.f32 %v1596, 1.0
      %v1789 = vadd.f32 %v1597, 1.0
      %v1790 = vadd.f32 %v1598, 1.0
      %v1791 = vadd.f32 %v1599, 1.0
      %v1792 = vadd.f32 %v1600, 1.0
      %v1793 = vadd.f32 %v1601, 1.0
      %v1794 = vadd.f32 %v1602, 1.0
      %v1795 = vadd.f32 %v1603, 1.0
      %v1796 = vadd.f32 %v1604, 1.0
      %v1797 = vadd.f32 %v1605, 1.0
      %v1798 = vadd.f32 %v1606, 1.0
      %v1799 = vadd.f32 %v1607, 1.0
      %v1800 = vadd.f32 %v1608, 1.0
      %v1801 = vadd.f32 %v1609, 1.0
      %v1802 = vadd.f32 %v1610, 1.0
      %v1803 = vadd.f32 %v1611, 1.0
      %v1804 = vadd.f32 %v1612, 1.0
      %v1805 = vadd.f32 %v1613, 1.0
      %v1806 = vadd.f32 %v1614, 1.0
      %v1807 = vadd.f32 %v1615, 1.0
      %v1808 = vadd.f32 %v1616, 1.0
      %v1809 = vadd.f32 %v1617, 1.0
      %v1810 = vadd.f32 %v1618, 1.0
      %v1811 = vadd.f32 %v1619, 1.0
      %v1812 = vadd.f32 %v1620, 1.0
      %v1813 = vadd.f32 %v1621, 1.0
      %v1814 = vadd.f32 %v1622, 1.0
      %v1815 = vadd.f32 %v1623, 1.0
      %v1816 = vadd.f32 %v1624, 1.0
      %v1817 = vmul.f32 %v1625, 0.5
      %v1818 = vmul.f32 %v1626, 0.5
      %v1819 = vmul.f32 %v1627, 0.5
      %v1820 = vmul.f32 %v1628, 0.5
      %v1821 = vmul.f32 %v1629, 0.5
      %v1822 = vmul.f32 %v1630, 0.5
      %v1823 = vmul.f32 %v1631, 0.5
      %v1824 = vmul.f32 %v1632, 0.5
      %v1825 = vmul.f32 %v1633, 0.5
      %v1826 = vmul.f32 %v1634, 0.5
      %v1827 = vmul.f32 %v1635, 0.5
      %v1828 = vmul.f32 %v1636, 0.5
      %v1829 = vmul.f32 %v1637, 0.5
      %v1830 = vmul.f32 %v1638, 0.5
      %v1831 = vmul.f32 %v1639, 0.5
      %v1832 = vmul.f32 %v1640, 0.5
      %v1833 = vmul.f32 %v1641, 0.5
      %v1834 = vmul.f32 %v1642, 0.5
      %v1835 = vmul.f32 %v1643, 0.5
      %v1836 = vmul.f32 %v1644, 0.5
      %v1837 = vmul.f32 %v1645, 0.5
      %v1838 = vmul.f32 %v1646, 0.5
      %v1839 = vmul.f32 %v1647, 0.5
      %v1840 = vmul.f32 %v1648, 0.5
      %v1841 = vmul.f32 %v1649, 0.5
      %v1842 = vmul.f32 %v1650, 0.5
      %v1843 = vmul.f32 %v1651, 0.5
      %v1844 = vmul.f32 %v1652, 0.5
      %v1845 = vmul.f32 %v1653, 0.5
      %v1846 = vmul.f32 %v1654, 0.5
      %v1847 = vmul.f32 %v1655, 0.5
      %v1848 = vmul.f32 %v1656, 0.5
      %v1849 = vmul.f32 %v1657, 0.5
      %v1850 = vmul.f32 %v1658, 0.5
      %v1851 = vmul.f32 %v1659, 0.5
      %v1852 = vmul.f32 %v1660, 0.5
      %v1853 = vmul.f32 %v1661, 0.5
      %v1854 = vmul.f32 %v1662, 0.5
      %v1855 = vmul.f32 %v1663, 0.5
      %v1856 = vmul.f32 %v1664, 0.5
      %v1857 = vmul.f32 %v1665, 0.5
      %v1858 = vmul.f32 %v1666, 0.5
      %v1859 = vmul.f32 %v1667, 0.5
      %v1860 = vmul.f32 %v1668, 0.5
      %v1861 = vmul.f32 %v1669, 0.5
      %v1862 = vmul.f32 %v1670, 0.5
      %v1863 = vmul.f32 %v1671, 0.5
      %v1864 = vmul.f32 %v1672, 0.5
      %v1865 = vmul.f32 %v1673, 0.5
      %v1866 = vmul.f32 %v1674, 0.5
      %v1867 = vmul.f32 %v1675, 0.5
      %v1868 = vmul.f32 %v1676, 0.5
      %v1869 = vmul.f32 %v1677, 0.5
      %v1870 = vmul.f32 %v1678, 0.5
      %v1871 = vmul.f32 %v1679, 0.5
      %v1872 = vmul.f32 %v1680, 0.5
      %v1873 = vmul.f32 %v1681, 0.5
      %v1874 = vmul.f32 %v1682, 0.5
      %v1875 = vmul.f32 %v1683, 0.5
      %v1876 = vmul.f32 %v1684, 0.5
      %v1877 = vmul.f32 %v1685, 0.5
      %v1878 = vmul.f32 %v1686, 0.5
      %v1879 = vmul.f32 %v1687, 0.5
      %v1880 = vmul.f32 %v1688, 0.5
      %v1881 = vmul.f32 %v1689, 0.5
      %v1882 = vmul.f32 %v1690, 0.5
      %v1883 = vmul.f32 %v1691, 0.5
      %v1884 = vmul.f32 %v1692, 0.5
      %v1885 = vmul.f32 %v1693, 0.5
      %v1886 = vmul.f32 %v1694, 0.5
      %v1887 = vmul.f32 %v1695, 0.5
      %v1888 = vmul.f32 %v1696, 0.5
      %v1889 = vmul.f32 %v1697, 0.5
      %v1890 = vmul.f32 %v1698, 0.5
      %v1891 = vmul.f32 %v1699, 0.5
      %v1892 = vmul.f32 %v1700, 0.5
      %v1893 = vmul.f32 %v1701, 0.5
      %v1894 = vmul.f32 %v1702, 0.5
      %v1895 = vmul.f32 %v1703, 0.5
      %v1896 = vmul.f32 %v1704, 0.5
      %v1897 = vmul.f32 %v1705, 0.5
      %v1898 = vmul.f32 %v1706, 0.5
      %v1899 = vmul.f32 %v1707, 0.5
      %v1900 = vmul.f32 %v1708, 0.5
      %v1901 = vmul.f32 %v1709, 0.5
      %v1902 = vmul.f32 %v1710, 0.5
      %v1903 = vmul.f32 %v1711, 0.5
      %v1904 = vmul.f32 %v1712, 0.5
      %v1905 = vmul.f32 %v1713, 0.5
      %v1906 = vmul.f32 %v1714, 0.5
      %v1907 = vmul.f32 %v1715, 0.5
      %v1908 = vmul.f32 %v1716, 0.5
      %v1909 = vmul.f32 %v1717, 0.5
      %v1910 = vmul.f32 %v1718, 0.5
      %v1911 = vmul.f32 %v1719, 0.5
      %v1912 = vmul.f32 %v1720, 0.5
      %v1913 = vmul.f32 %v1721, 0.5
      %v1914 = vmul.f32 %v1722, 0.5
      %v1915 = vmul.f32 %v1723, 0.5
      %v1916 = vmul.f32 %v1724, 0.5
      %v1917 = vmul.f32 %v1725, 0.5
      %v1918 = vmul.f32 %v1726, 0.5
      %v1919 = vmul.f32 %v1727, 0.5
      %v1920 = vmul.f32 %v1728, 0.5
      %v1921 = vmul.f32 %v1729, 0.5
      %v1922 = vmul.f32 %v1730, 0.5
      %v1923 = vmul.f32 %v1731, 0.5
      %v1924 = vmul.f32 %v1732, 0.5
      %v1925 = vmul.f32 %v1733, 0.5
      %v1926 = vmul.f32 %v1734, 0.5
      %v1927 = vmul.f32 %v1735, 0.5
      %v1928 = vmul.f32 %v1736, 0.5
      %v1929 = vmul.f32 %v1737, 0.5
      %v1930 = vmul.f32 %v1738, 0.5
      %v1931 = vmul.f32 %v1739, 0.5
      %v1932 = vmul.f32 %v1740, 0.5
      %v1933 = vmul.f32 %v1741, 0.5
      %v1934 = vmul.f32 %v1742, 0.5
      %v1935 = vmul.f32 %v1743, 0.5
      %v1936 = vmul.f32 %v1744, 0.5
      %v1937 = vmul.f32 %v1745, 0.5
      %v1938 = vmul.f32 %v1746, 0.5
      %v1939 = vmul.f32 %v1747, 0.5
      %v1940 = vmul.f32 %v1748, 0.5
      %v1941 = vmul.f32 %v1749, 0.5
      %v1942 = vmul.f32 %v1750, 0.5
      %v1943 = vmul.f32 %v1751, 0.5
      %v1944 = vmul.f32 %v1752, 0.5
      %v1945 = vmul.f32 %v1753, 0.5
      %v1946 = vmul.f32 %v1754, 0.5
      %v1947 = vmul.f32 %v1755, 0.5
      %v1948 = vmul.f32 %v1756, 0.5
      %v1949 = vmul.f32 %v1757, 0.5
      %v1950 = vmul.f32 %v1758, 0.5
      %v1951 = vmul.f32 %v1759, 0.5
      %v1952 = vmul.f32 %v1760, 0.5
      %v1953 = vmul.f32 %v1761, 0.5
      %v1954 = vmul.f32 %v1762, 0.5
      %v1955 = vmul.f32 %v1763, 0.5
      %v1956 = vmul.f32 %v1764, 0.5
      %v1957 = vmul.f32 %v1765, 0.5
      %v1958 = vmul.f32 %v1766, 0.5
      %v1959 = vmul.f32 %v1767, 0.5
      %v1960 = vmul.f32 %v1768, 0.5
      %v1961 = vmul.f32 %v1769, 0.5
      %v1962 = vmul.f32 %v1770, 0.5
      %v1963 = vmul.f32 %v1771, 0.5
      %v1964 = vmul.f32 %v1772, 0.5
      %v1965 = vmul.f32 %v1773, 0.5
      %v1966 = vmul.f32 %v1774, 0.5
      %v1967 = vmul.f32 %v1775, 0.5
      %v1968 = vmul.f32 %v1776, 0.5
      %v1969 = vmul.f32 %v1777, 0.5
      %v1970 = vmul.f32 %v1778, 0.5
      %v1971 = vmul.f32 %v1779, 0.5
      %v1972 = vmul.f32 %v1780, 0.5
      %v1973 = vmul.f32 %v1781, 0.5
      %v1974 = vmul.f32 %v1782, 0.5
      %v1975 = vmul.f32 %v1783, 0.5
      %v1976 = vmul.f32 %v1784, 0.5
      %v1977 = vmul.f32 %v1785, 0.5
      %v1978 = vmul.f32 %v1786, 0.5
      %v1979 = vmul.f32 %v1787, 0.5
      %v1980 = vmul.f32 %v1788, 0.5
      %v1981 = vmul.f32 %v1789, 0.5
      %v1982 = vmul.f32 %v1790, 0.5
      %v1983 = vmul.f32 %v1791, 0.5
      %v1984 = vmul.f32 %v1792, 0.5
      %v1985 = vmul.f32 %v1793, 0.5
      %v1986 = vmul.f32 %v1794, 0.5
      %v1987 = vmul.f32 %v1795, 0.5
      %v1988 = vmul.f32 %v1796, 0.5
      %v1989 = vmul.f32 %v1797, 0.5
      %v1990 = vmul.f32 %v1798, 0.5
      %v1991 = vmul.f32 %v1799, 0.5
      %v1992 = vmul.f32 %v1800, 0.5
      %v1993 = vmul.f32 %v1801, 0.5
      %v1994 = vmul.f32 %v1802, 0.5
      %v1995 = vmul.f32 %v1803, 0.5
      %v1996 = vmul.f32 %v1804, 0.5
      %v1997 = vmul.f32 %v1805, 0.5
      %v1998 = vmul.f32 %v1806, 0.5
      %v1999 = vmul.f32 %v1807, 0.5
      %v2000 = vmul.f32 %v1808, 0.5
      %v2001 = vmul.f32 %v1809, 0.5
      %v2002 = vmul.f32 %v1810, 0.5
      %v2003 = vmul.f32 %v1811, 0.5
      %v2004 = vmul.f32 %v1812, 0.5
      %v2005 = vmul.f32 %v1813, 0.5
      %v2006 = vmul.f32 %v1814, 0.5
      %v2007 = vmul.f32 %v1815, 0.5
      %v2008 = vmul.f32 %v1816, 0.5
      %2009 = vst [vmem:[%s147] sm:$0xff] %v1817
      %2010 = vst [vmem:[%s147 + $0x8] sm:$0xff] %v1818
      %2011 = vst [vmem:[%s147 + $0x10] sm:$0xff] %v1819
      %2012 = vst [vmem:[%s147 + $0x18] sm:$0xff] %v1820
      %2013 = vst [vmem:[%s147 + $0x20] sm:$0xff] %v1821
      %2014 = vst [vmem:[%s147 + $0x28] sm:$0xff] %v1822
      %2015 = vst [vmem:[%s147 + $0x30] sm:$0xff] %v1823
      %2016 = vst [vmem:[%s147 + $0x38] sm:$0xff] %v1824
      %2017 = vst [vmem:[%s147 + $0x40] sm:$0xff] %v1825
      %2018 = vst [vmem:[%s147 + $0x48] sm:$0xff] %v1826
      %2019 = vst [vmem:[%s147 + $0x50] sm:$0xff] %v1827
      %2020 = vst [vmem:[%s147 + $0x58] sm:$0xff] %v1828
      %2021 = vst [vmem:[%s147 + $0x60] sm:$0xff] %v1829
      %2022 = vst [vmem:[%s147 + $0x68] sm:$0xff] %v1830
      %2023 = vst [vmem:[%s147 + $0x70] sm:$0xff] %v1831
      %2024 = vst [vmem:[%s147 + $0x78] sm:$0xff] %v1832
      %2025 = vst [vmem:[%s147 + $0x80] sm:$0xff] %v1833
      %2026 = vst [vmem:[%s147 + $0x88] sm:$0xff] %v1834
      %2027 = vst [vmem:[%s147 + $0x90] sm:$0xff] %v1835
      %2028 = vst [vmem:[%s147 + $0x98] sm:$0xff] %v1836
      %2029 = vst [vmem:[%s147 + $0xa0] sm:$0xff] %v1837
      %2030 = vst [vmem:[%s147 + $0xa8] sm:$0xff] %v1838
      %2031 = vst [vmem:[%s147 + $0xb0] sm:$0xff] %v1839
      %2032 = vst [vmem:[%s147 + $0xb8] sm:$0xff] %v1840
      %2033 = vst [vmem:[%s147 + $0xc0] sm:$0xff] %v1841
      %2034 = vst [vmem:[%s147 + $0xc8] sm:$0xff] %v1842
      %2035 = vst [vmem:[%s147 + $0xd0] sm:$0xff] %v1843
      %2036 = vst [vmem:[%s147 + $0xd8] sm:$0xff] %v1844
      %2037 = vst [vmem:[%s147 + $0xe0] sm:$0xff] %v1845
      %2038 = vst [vmem:[%s147 + $0xe8] sm:$0xff] %v1846
      %2039 = vst [vmem:[%s147 + $0xf0] sm:$0xff] %v1847
      %2040 = vst [vmem:[%s147 + $0xf8] sm:$0xff] %v1848
      %2041 = vst [vmem:[%s147 + $0x100] sm:$0xff] %v1849
      %2042 = vst [vmem:[%s147 + $0x108] sm:$0xff] %v1850
      %2043 = vst [vmem:[%s147 + $0x110] sm:$0xff] %v1851
      %2044 = vst [vmem:[%s147 + $0x118] sm:$0xff] %v1852
      %2045 = vst [vmem:[%s147 + $0x120] sm:$0xff] %v1853
      %2046 = vst [vmem:[%s147 + $0x128] sm:$0xff] %v1854
      %2047 = vst [vmem:[%s147 + $0x130] sm:$0xff] %v1855
      %2048 = vst [vmem:[%s147 + $0x138] sm:$0xff] %v1856
      %2049 = vst [vmem:[%s147 + $0x140] sm:$0xff] %v1857
      %2050 = vst [vmem:[%s147 + $0x148] sm:$0xff] %v1858
      %2051 = vst [vmem:[%s147 + $0x150] sm:$0xff] %v1859
      %2052 = vst [vmem:[%s147 + $0x158] sm:$0xff] %v1860
      %2053 = vst [vmem:[%s147 + $0x160] sm:$0xff] %v1861
      %2054 = vst [vmem:[%s147 + $0x168] sm:$0xff] %v1862
      %2055 = vst [vmem:[%s147 + $0x170] sm:$0xff] %v1863
      %2056 = vst [vmem:[%s147 + $0x178] sm:$0xff] %v1864
      %2057 = vst [vmem:[%s147 + $0x180] sm:$0xff] %v1865
      %2058 = vst [vmem:[%s147 + $0x188] sm:$0xff] %v1866
      %2059 = vst [vmem:[%s147 + $0x190] sm:$0xff] %v1867
      %2060 = vst [vmem:[%s147 + $0x198] sm:$0xff] %v1868
      %2061 = vst [vmem:[%s147 + $0x1a0] sm:$0xff] %v1869
      %2062 = vst [vmem:[%s147 + $0x1a8] sm:$0xff] %v1870
      %2063 = vst [vmem:[%s147 + $0x1b0] sm:$0xff] %v1871
      %2064 = vst [vmem:[%s147 + $0x1b8] sm:$0xff] %v1872
      %2065 = vst [vmem:[%s147 + $0x1c0] sm:$0xff] %v1873
      %2066 = vst [vmem:[%s147 + $0x1c8] sm:$0xff] %v1874
      %2067 = vst [vmem:[%s147 + $0x1d0] sm:$0xff] %v1875
      %2068 = vst [vmem:[%s147 + $0x1d8] sm:$0xff] %v1876
      %2069 = vst [vmem:[%s147 + $0x1e0] sm:$0xff] %v1877
      %2070 = vst [vmem:[%s147 + $0x1e8] sm:$0xff] %v1878
      %2071 = vst [vmem:[%s147 + $0x1f0] sm:$0xff] %v1879
      %2072 = vst [vmem:[%s147 + $0x1f8] sm:$0xff] %v1880
      %2073 = vst [vmem:[%s147 + $0x200] sm:$0xff] %v1881
      %2074 = vst [vmem:[%s147 + $0x208] sm:$0xff] %v1882
      %2075 = vst [vmem:[%s147 + $0x210] sm:$0xff] %v1883
      %2076 = vst [vmem:[%s147 + $0x218] sm:$0xff] %v1884
      %2077 = vst [vmem:[%s147 + $0x220] sm:$0xff] %v1885
      %2078 = vst [vmem:[%s147 + $0x228] sm:$0xff] %v1886
      %2079 = vst [vmem:[%s147 + $0x230] sm:$0xff] %v1887
      %2080 = vst [vmem:[%s147 + $0x238] sm:$0xff] %v1888
      %2081 = vst [vmem:[%s147 + $0x240] sm:$0xff] %v1889
      %2082 = vst [vmem:[%s147 + $0x248] sm:$0xff] %v1890
      %2083 = vst [vmem:[%s147 + $0x250] sm:$0xff] %v1891
      %2084 = vst [vmem:[%s147 + $0x258] sm:$0xff] %v1892
      %2085 = vst [vmem:[%s147 + $0x260] sm:$0xff] %v1893
      %2086 = vst [vmem:[%s147 + $0x268] sm:$0xff] %v1894
      %2087 = vst [vmem:[%s147 + $0x270] sm:$0xff] %v1895
      %2088 = vst [vmem:[%s147 + $0x278] sm:$0xff] %v1896
      %2089 = vst [vmem:[%s147 + $0x280] sm:$0xff] %v1897
      %2090 = vst [vmem:[%s147 + $0x288] sm:$0xff] %v1898
      %2091 = vst [vmem:[%s147 + $0x290] sm:$0xff] %v1899
      %2092 = vst [vmem:[%s147 + $0x298] sm:$0xff] %v1900
      %2093 = vst [vmem:[%s147 + $0x2a0] sm:$0xff] %v1901
      %2094 = vst [vmem:[%s147 + $0x2a8] sm:$0xff] %v1902
      %2095 = vst [vmem:[%s147 + $0x2b0] sm:$0xff] %v1903
      %2096 = vst [vmem:[%s147 + $0x2b8] sm:$0xff] %v1904
      %2097 = vst [vmem:[%s147 + $0x2c0] sm:$0xff] %v1905
      %2098 = vst [vmem:[%s147 + $0x2c8] sm:$0xff] %v1906
      %2099 = vst [vmem:[%s147 + $0x2d0] sm:$0xff] %v1907
      %2100 = vst [vmem:[%s147 + $0x2d8] sm:$0xff] %v1908
      %2101 = vst [vmem:[%s147 + $0x2e0] sm:$0xff] %v1909
      %2102 = vst [vmem:[%s147 + $0x2e8] sm:$0xff] %v1910
      %2103 = vst [vmem:[%s147 + $0x2f0] sm:$0xff] %v1911
      %2104 = vst [vmem:[%s147 + $0x2f8] sm:$0xff] %v1912
      %2105 = vst [vmem:[%s147 + $0x300] sm:$0xff] %v1913
      %2106 = vst [vmem:[%s147 + $0x308] sm:$0xff] %v1914
      %2107 = vst [vmem:[%s147 + $0x310] sm:$0xff] %v1915
      %2108 = vst [vmem:[%s147 + $0x318] sm:$0xff] %v1916
      %2109 = vst [vmem:[%s147 + $0x320] sm:$0xff] %v1917
      %2110 = vst [vmem:[%s147 + $0x328] sm:$0xff] %v1918
      %2111 = vst [vmem:[%s147 + $0x330] sm:$0xff] %v1919
      %2112 = vst [vmem:[%s147 + $0x338] sm:$0xff] %v1920
      %2113 = vst [vmem:[%s147 + $0x340] sm:$0xff] %v1921
      %2114 = vst [vmem:[%s147 + $0x348] sm:$0xff] %v1922
      %2115 = vst [vmem:[%s147 + $0x350] sm:$0xff] %v1923
      %2116 = vst [vmem:[%s147 + $0x358] sm:$0xff] %v1924
      %2117 = vst [vmem:[%s147 + $0x360] sm:$0xff] %v1925
      %2118 = vst [vmem:[%s147 + $0x368] sm:$0xff] %v1926
      %2119 = vst [vmem:[%s147 + $0x370] sm:$0xff] %v1927
      %2120 = vst [vmem:[%s147 + $0x378] sm:$0xff] %v1928
      %2121 = vst [vmem:[%s147 + $0x380] sm:$0xff] %v1929
      %2122 = vst [vmem:[%s147 + $0x388] sm:$0xff] %v1930
      %2123 = vst [vmem:[%s147 + $0x390] sm:$0xff] %v1931
      %2124 = vst [vmem:[%s147 + $0x398] sm:$0xff] %v1932
      %2125 = vst [vmem:[%s147 + $0x3a0] sm:$0xff] %v1933
      %2126 = vst [vmem:[%s147 + $0x3a8] sm:$0xff] %v1934
      %2127 = vst [vmem:[%s147 + $0x3b0] sm:$0xff] %v1935
      %2128 = vst [vmem:[%s147 + $0x3b8] sm:$0xff] %v1936
      %2129 = vst [vmem:[%s147 + $0x3c0] sm:$0xff] %v1937
      %2130 = vst [vmem:[%s147 + $0x3c8] sm:$0xff] %v1938
      %2131 = vst [vmem:[%s147 + $0x3d0] sm:$0xff] %v1939
      %2132 = vst [vmem:[%s147 + $0x3d8] sm:$0xff] %v1940
      %2133 = vst [vmem:[%s147 + $0x3e0] sm:$0xff] %v1941
      %2134 = vst [vmem:[%s147 + $0x3e8] sm:$0xff] %v1942
      %2135 = vst [vmem:[%s147 + $0x3f0] sm:$0xff] %v1943
      %2136 = vst [vmem:[%s147 + $0x3f8] sm:$0xff] %v1944
      %2137 = vst [vmem:[%s147 + $0x400] sm:$0xff] %v1945
      %2138 = vst [vmem:[%s147 + $0x408] sm:$0xff] %v1946
      %2139 = vst [vmem:[%s147 + $0x410] sm:$0xff] %v1947
      %2140 = vst [vmem:[%s147 + $0x418] sm:$0xff] %v1948
      %2141 = vst [vmem:[%s147 + $0x420] sm:$0xff] %v1949
      %2142 = vst [vmem:[%s147 + $0x428] sm:$0xff] %v1950
      %2143 = vst [vmem:[%s147 + $0x430] sm:$0xff] %v1951
      %2144 = vst [vmem:[%s147 + $0x438] sm:$0xff] %v1952
      %2145 = vst [vmem:[%s147 + $0x440] sm:$0xff] %v1953
      %2146 = vst [vmem:[%s147 + $0x448] sm:$0xff] %v1954
      %2147 = vst [vmem:[%s147 + $0x450] sm:$0xff] %v1955
      %2148 = vst [vmem:[%s147 + $0x458] sm:$0xff] %v1956
      %2149 = vst [vmem:[%s147 + $0x460] sm:$0xff] %v1957
      %2150 = vst [vmem:[%s147 + $0x468] sm:$0xff] %v1958
      %2151 = vst [vmem:[%s147 + $0x470] sm:$0xff] %v1959
      %2152 = vst [vmem:[%s147 + $0x478] sm:$0xff] %v1960
      %2153 = vst [vmem:[%s147 + $0x480] sm:$0xff] %v1961
      %2154 = vst [vmem:[%s147 + $0x488] sm:$0xff] %v1962
      %2155 = vst [vmem:[%s147 + $0x490] sm:$0xff] %v1963
      %2156 = vst [vmem:[%s147 + $0x498] sm:$0xff] %v1964
      %2157 = vst [vmem:[%s147 + $0x4a0] sm:$0xff] %v1965
      %2158 = vst [vmem:[%s147 + $0x4a8] sm:$0xff] %v1966
      %2159 = vst [vmem:[%s147 + $0x4b0] sm:$0xff] %v1967
      %2160 = vst [vmem:[%s147 + $0x4b8] sm:$0xff] %v1968
      %2161 = vst [vmem:[%s147 + $0x4c0] sm:$0xff] %v1969
      %2162 = vst [vmem:[%s147 + $0x4c8] sm:$0xff] %v1970
      %2163 = vst [vmem:[%s147 + $0x4d0] sm:$0xff] %v1971
      %2164 = vst [vmem:[%s147 + $0x4d8] sm:$0xff] %v1972
      %2165 = vst [vmem:[%s147 + $0x4e0] sm:$0xff] %v1973
      %2166 = vst [vmem:[%s147 + $0x4e8] sm:$0xff] %v1974
      %2167 = vst [vmem:[%s147 + $0x4f0] sm:$0xff] %v1975
      %2168 = vst [vmem:[%s147 + $0x4f8] sm:$0xff] %v1976
      %2169 = vst [vmem:[%s147 + $0x500] sm:$0xff] %v1977
      %2170 = vst [vmem:[%s147 + $0x508] sm:$0xff] %v1978
      %2171 = vst [vmem:[%s147 + $0x510] sm:$0xff] %v1979
      %2172 = vst [vmem:[%s147 + $0x518] sm:$0xff] %v1980
      %2173 = vst [vmem:[%s147 + $0x520] sm:$0xff] %v1981
      %2174 = vst [vmem:[%s147 + $0x528] sm:$0xff] %v1982
      %2175 = vst [vmem:[%s147 + $0x530] sm:$0xff] %v1983
      %2176 = vst [vmem:[%s147 + $0x538] sm:$0xff] %v1984
      %2177 = vst [vmem:[%s147 + $0x540] sm:$0xff] %v1985
      %2178 = vst [vmem:[%s147 + $0x548] sm:$0xff] %v1986
      %2179 = vst [vmem:[%s147 + $0x550] sm:$0xff] %v1987
      %2180 = vst [vmem:[%s147 + $0x558] sm:$0xff] %v1988
      %2181 = vst [vmem:[%s147 + $0x560] sm:$0xff] %v1989
      %2182 = vst [vmem:[%s147 + $0x568] sm:$0xff] %v1990
      %2183 = vst [vmem:[%s147 + $0x570] sm:$0xff] %v1991
      %2184 = vst [vmem:[%s147 + $0x578] sm:$0xff] %v1992
      %2185 = vst [vmem:[%s147 + $0x580] sm:$0xff] %v1993
      %2186 = vst [vmem:[%s147 + $0x588] sm:$0xff] %v1994
      %2187 = vst [vmem:[%s147 + $0x590] sm:$0xff] %v1995
      %2188 = vst [vmem:[%s147 + $0x598] sm:$0xff] %v1996
      %2189 = vst [vmem:[%s147 + $0x5a0] sm:$0xff] %v1997
      %2190 = vst [vmem:[%s147 + $0x5a8] sm:$0xff] %v1998
      %2191 = vst [vmem:[%s147 + $0x5b0] sm:$0xff] %v1999
      %2192 = vst [vmem:[%s147 + $0x5b8] sm:$0xff] %v2000
      %2193 = vst [vmem:[%s147 + $0x5c0] sm:$0xff] %v2001
      %2194 = vst [vmem:[%s147 + $0x5c8] sm:$0xff] %v2002
      %2195 = vst [vmem:[%s147 + $0x5d0] sm:$0xff] %v2003
      %2196 = vst [vmem:[%s147 + $0x5d8] sm:$0xff] %v2004
      %2197 = vst [vmem:[%s147 + $0x5e0] sm:$0xff] %v2005
      %2198 = vst [vmem:[%s147 + $0x5e8] sm:$0xff] %v2006
      %2199 = vst [vmem:[%s147 + $0x5f0] sm:$0xff] %v2007
      %2200 = vst [vmem:[%s147 + $0x5f8] sm:$0xff] %v2008
      %s2201 = smul.u32 32, %s13
      %p2202 = scmp.lt.s32.totalorder %s2201, 95
      %s2203 = scalar_select %p2202, %s2201, 95
      %s2204 = smul.addr %s2203, 6
      %s2205 = smul.addr %s2204, 8
      %s2206 = scalar_lea.vmem %s2, %s2205
      // Predicated region
      $region29: #{gae_forward.5} parent=27 // pred_check
        %p2207 = pneg %p78
      $region30: #{gae_forward.5} parent=27 // pred_check_branch
        %2209 = sbr.rel (%p2207) target = $region32
      $region31: #{gae_forward.5} parent=27 // pred_region
        %s2210 = smul.u32 32, %s13
      $region32: #{gae_forward.5} parent=27 // pred_fallthru
        _
    $region28: #{gae_forward.5} parent=5 // pred_fallthru
      _
    %p2211 = scmp.le.s32.totalorder 2, %s8
    // Predicated region
    $region33: #{gae_forward.5} parent=5 // pred_check
      %p2212 = pneg %p2211
    $region34: #{gae_forward.5} parent=5 // pred_check_branch
      %2214 = sbr.rel (%p2212) target = $region36
    $region35: #{gae_forward.5} parent=5 // pred_region
      %s2215 = ssub.s32 %s8, 2
      // Predicated region
      $region37: #{gae_forward.5} parent=35 // pred_check
        %p2216 = pneg %p84
      $region38: #{gae_forward.5} parent=35 // pred_check_branch
        %2218 = sbr.rel (%p2216) target = $region40
      $region39: #{gae_forward.5} parent=35 // pred_region
        %s2219 = smul.u32 32, %s14
        %p2220 = scmp.lt.s32.totalorder %s2219, 95
        %s2221 = scalar_select %p2220, %s2219, 95
        %s2222 = smul.addr %s2221, 6
        %s2223 = smul.addr %s2222, 8
        %s2224 = scalar_lea.vmem %s2, %s2223
      $region40: #{gae_forward.5} parent=35 // pred_fallthru
        _
    $region36: #{gae_forward.5} parent=5 // pred_fallthru
      _
  $region6: #{gae_forward.5} parent=0 // loop_footer
    %s12 = sadd.s32 1, %s8
  $region7: #{gae_forward.5} parent=0 // loop_footer_branch
    %7 = sbr.rel target = $region3
  $region8: #{gae_forward.5} parent=0 // loop_exit
    _

</llo_original>
